<compile_context>
chip_gen: v6e
topology: v6e:2x2x1
jax: 0.10.0
libtpu: 0.0.40
codegen_flags: <defaults>
</compile_context>

<pallas_src>
import jax
import jax.numpy as jnp
from jax.experimental import pallas as pl
from jax.experimental.pallas import tpu as pltpu

LANES = 128


def _attention_fusion_kernel(
    x_ref, wp_ref, bp_ref, g_ref, be_ref,
    wa1_ref, ba1_ref, wa2_ref, ba2_ref,
    wg1_ref, bg1_ref, wg2_ref, bg2_ref,
    fused_ref, stack_ref, stats_ref):
  M, tb, E = stack_ref.shape
  cdt = jnp.bfloat16  # MXU input dtype (f32 accumulation everywhere)

  # ---- per-modality projection + LayerNorm + ReLU, and gate first layer ----
  gate_hidden = jnp.zeros((tb, E), jnp.float32)
  for i in range(M):
    x = x_ref[i]                                               # bf16 [tb, Dmax]
    # Linear(dim_i, E); zero-padded rows of Wp make feature padding harmless.
    h = jnp.dot(x, wp_ref[i], preferred_element_type=jnp.float32) + bp_ref[i]
    # LayerNorm(E), eps = 1e-5 (PyTorch default), f32 math.
    mean = jnp.mean(h, axis=-1, keepdims=True)
    var = jnp.mean(jnp.square(h - mean), axis=-1, keepdims=True)
    hn = (h - mean) * jax.lax.rsqrt(var + 1e-5)
    hn = hn * g_ref[i] + be_ref[i]
    p = jnp.maximum(hn, 0.0)                                   # f32 [tb, E]
    # Spill to the VMEM output block; re-loaded below (short vreg live ranges).
    stack_ref[i] = p.astype(stack_ref.dtype)
    # Gate first layer on concat(projected) == sum_i p_i @ Wg1[i].
    gate_hidden = gate_hidden + jnp.dot(
        p.astype(cdt), wg1_ref[i], preferred_element_type=jnp.float32)

  # ---- attention head, fused across modalities: one [M*tb, E] matmul ----
  ps = stack_ref[...].reshape(M * tb, E).astype(cdt)
  a1 = jnp.dot(ps, wa1_ref[...], preferred_element_type=jnp.float32) + ba1_ref[...]
  a1 = jnp.maximum(a1, 0.0)
  # Linear(H, 1): elementwise mul + lane reduce; ba2 is a scalar from SMEM.
  s_all = jnp.sum(a1 * wa2_ref[...], axis=-1, keepdims=True) + ba2_ref[0, 0]
  scores = jnp.concatenate(
      [s_all[i * tb:(i + 1) * tb] for i in range(M)], axis=-1)  # [tb, M]
  smax = jnp.max(scores, axis=-1, keepdims=True)
  sexp = jnp.exp(scores - smax)
  attn = sexp / jnp.sum(sexp, axis=-1, keepdims=True)

  # ---- gate network: ReLU -> (Dropout=id) -> Linear(E, M) -> Softmax ----
  gate_hidden = jnp.maximum(gate_hidden + bg1_ref[...], 0.0)
  glog = jnp.dot(gate_hidden.astype(cdt), wg2_ref[...],
                 preferred_element_type=jnp.float32) + bg2_ref[...]
  gmax = jnp.max(glog, axis=-1, keepdims=True)
  gexp = jnp.exp(glog - gmax)
  gate = gexp / jnp.sum(gexp, axis=-1, keepdims=True)

  # ---- combine attention * gate, renormalize ----
  fw = attn * gate
  fw = fw / (jnp.sum(fw, axis=-1, keepdims=True) + 1e-8)

  # ---- weighted fusion (re-load projected features from VMEM) ----
  fused = stack_ref[0] * fw[:, 0:1]
  for i in range(1, M):
    fused = fused + stack_ref[i] * fw[:, i:i + 1]
  fused_ref[...] = fused.astype(fused_ref.dtype)

  # ---- pack the three [tb, M] results into one lane-dense [tb, 128] slab ----
  pad = jnp.zeros((tb, LANES - 3 * M), jnp.float32)
  stats_ref[...] = jnp.concatenate([attn, gate, fw, pad],
                                   axis=-1).astype(stats_ref.dtype)


def make_params(input_dims, embed_dim, key):
  M = len(input_dims)
  E = embed_dim
  H = E // 2
  ks = jax.random.split(key, 16)
  scale = 0.05
  params = {
      # per-modality projection: Linear(dim_i, E) + LayerNorm(E)
      "wp": [scale * jax.random.normal(jax.random.fold_in(ks[0], i), (d, E), jnp.float32)
             for i, d in enumerate(input_dims)],
      "bp": scale * jax.random.normal(ks[1], (M, 1, E), jnp.float32),
      "gamma": 1.0 + 0.1 * jax.random.normal(ks[2], (M, 1, E), jnp.float32),
      "beta": 0.1 * jax.random.normal(ks[3], (M, 1, E), jnp.float32),
      # attention head
      "wa1": scale * jax.random.normal(ks[4], (E, H), jnp.float32),
      "ba1": scale * jax.random.normal(ks[5], (1, H), jnp.float32),
      "wa2": scale * jax.random.normal(ks[6], (1, H), jnp.float32),   # Linear(H,1) as a row
      "ba2": scale * jax.random.normal(ks[7], (1, 1), jnp.float32),
      # gate network
      "wg1": scale * jax.random.normal(ks[8], (M, E, E), jnp.float32),  # Linear(M*E,E) split per modality
      "bg1": scale * jax.random.normal(ks[9], (1, E), jnp.float32),
      "wg2": scale * jax.random.normal(ks[10], (E, M), jnp.float32),
      "bg2": scale * jax.random.normal(ks[11], (1, M), jnp.float32),
  }
  return params


def _pick_tb(B):
  """Largest tile <= 512 dividing B with at least 2 grid steps (v7x: 2 TCs)."""
  for cand in (512, 256, 128, 64, 32, 16, 8):
    if B % cand == 0 and B // cand >= 2:
      return cand
  return B


def attention_fusion_forward(modality_features, params, *, tb=None):
  M = len(modality_features)
  B = modality_features[0].shape[0]
  E = params["bp"].shape[-1]
  H = params["wa1"].shape[-1]
  assert 3 * M <= LANES
  if tb is None:
    tb = _pick_tb(B)
  assert B % tb == 0
  nb = B // tb

  Dmax = max(int(f.shape[1]) for f in modality_features)
  Dmax = ((Dmax + LANES - 1) // LANES) * LANES  # lane-align the feature axis

  cdt = jnp.bfloat16
  x_pad = jnp.stack(
      [jnp.pad(f, ((0, 0), (0, Dmax - f.shape[1]))) for f in modality_features],
      axis=0).astype(cdt)                                       # [M, B, Dmax]
  wp_pad = jnp.stack(
      [jnp.pad(w, ((0, Dmax - w.shape[0]), (0, 0))) for w in params["wp"]],
      axis=0).astype(cdt)                                       # [M, Dmax, E]
  wa1 = params["wa1"].astype(cdt)
  wg1 = params["wg1"].astype(cdt)
  wg2 = params["wg2"].astype(cdt)

  rep = lambda n: (lambda b: (0,) * n)

  out_shape = (
      jax.ShapeDtypeStruct((B, E), jnp.float32),      # fused_features
      jax.ShapeDtypeStruct((M, B, E), jnp.float32),   # modality stack (M-major)
      jax.ShapeDtypeStruct((B, LANES), jnp.float32),  # packed attn|gate|final
  )

  grid_spec = pltpu.PrefetchScalarGridSpec(
      num_scalar_prefetch=0,
      grid=(nb,),
      in_specs=[
          pl.BlockSpec((M, tb, Dmax), lambda b: (0, b, 0)),
          pl.BlockSpec((M, Dmax, E), rep(3)),
          pl.BlockSpec((M, 1, E), rep(3)),
          pl.BlockSpec((M, 1, E), rep(3)),
          pl.BlockSpec((M, 1, E), rep(3)),
          pl.BlockSpec((E, H), rep(2)),
          pl.BlockSpec((1, H), rep(2)),
          pl.BlockSpec((1, H), rep(2)),
          pl.BlockSpec(memory_space=pltpu.MemorySpace.SMEM),   # ba2 (1,1) scalar
          pl.BlockSpec((M, E, E), rep(3)),
          pl.BlockSpec((1, E), rep(2)),
          pl.BlockSpec((E, M), rep(2)),
          pl.BlockSpec((1, M), rep(2)),
      ],
      out_specs=[
          pl.BlockSpec((tb, E), lambda b: (b, 0)),
          pl.BlockSpec((M, tb, E), lambda b: (0, b, 0)),
          pl.BlockSpec((tb, LANES), lambda b: (b, 0)),
      ],
  )

  fused, stack_m, stats = pl.pallas_call(
      _attention_fusion_kernel,
      out_shape=out_shape,
      grid_spec=grid_spec,
      compiler_params=pltpu.CompilerParams(
          dimension_semantics=("parallel",),
          vmem_limit_bytes=32 * 1024 * 1024),
  )(x_pad, wp_pad, params["bp"], params["gamma"], params["beta"],
    wa1, params["ba1"], params["wa2"], params["ba2"],
    wg1, params["bg1"], wg2, params["bg2"])

  attn = stats[:, 0:M]
  gate = stats[:, M:2 * M]
  fw = stats[:, 2 * M:3 * M]
  return {
      "fused_features": fused,                                  # [B, E]
      "modality_features": jnp.transpose(stack_m, (1, 0, 2)),   # [B, M, E]
      "attention_weights": attn,                                # [B, M]
      "gate_weights": gate,                                     # [B, M]
      "final_weights": fw,                                      # [B, M]
  }


def attention_fusion_reference(modality_features, params):
  """Pure-JAX f32 reference mirroring the PyTorch forward (eval mode)."""
  M = len(modality_features)
  projs = []
  for i, f in enumerate(modality_features):
    h = f @ params["wp"][i] + params["bp"][i]
    mean = jnp.mean(h, axis=-1, keepdims=True)
    var = jnp.mean((h - mean) ** 2, axis=-1, keepdims=True)
    hn = (h - mean) / jnp.sqrt(var + 1e-5) * params["gamma"][i] + params["beta"][i]
    projs.append(jnp.maximum(hn, 0.0))
  stack = jnp.stack(projs, axis=1)
  scores = []
  for i in range(M):
    a1 = jnp.maximum(projs[i] @ params["wa1"] + params["ba1"], 0.0)
    scores.append(jnp.sum(a1 * params["wa2"], axis=-1, keepdims=True) + params["ba2"][0, 0])
  scores = jnp.concatenate(scores, axis=1)
  attn = jax.nn.softmax(scores, axis=1)
  concat = jnp.concatenate(projs, axis=1)
  wg1_flat = params["wg1"].reshape(-1, params["wg1"].shape[-1])
  gh = jnp.maximum(concat @ wg1_flat + params["bg1"], 0.0)
  gate = jax.nn.softmax(gh @ params["wg2"] + params["bg2"], axis=-1)
  fw = attn * gate
  fw = fw / (jnp.sum(fw, axis=1, keepdims=True) + 1e-8)
  fused = jnp.sum(stack * fw[:, :, None], axis=1)
  return {"fused_features": fused, "modality_features": stack,
          "attention_weights": attn, "gate_weights": gate, "final_weights": fw}


def attention_fusion_matched_reference(modality_features, params):
  """Pure-JAX reference using the SAME bf16-input / f32-accumulate matmul path
  as the kernel (validates the kernel itself to tight tolerance)."""
  bf = jnp.bfloat16
  mm = lambda a, b: jnp.dot(a.astype(bf), b.astype(bf),
                            preferred_element_type=jnp.float32)
  M = len(modality_features)
  projs = []
  for i, f in enumerate(modality_features):
    h = mm(f, params["wp"][i]) + params["bp"][i]
    mean = jnp.mean(h, axis=-1, keepdims=True)
    var = jnp.mean(jnp.square(h - mean), axis=-1, keepdims=True)
    hn = (h - mean) * jax.lax.rsqrt(var + 1e-5)
    hn = hn * params["gamma"][i] + params["beta"][i]
    projs.append(jnp.maximum(hn, 0.0))
  stack = jnp.stack(projs, axis=1)
  scores = []
  for i in range(M):
    a1 = jnp.maximum(mm(projs[i], params["wa1"]) + params["ba1"], 0.0)
    scores.append(jnp.sum(a1 * params["wa2"], axis=-1, keepdims=True) + params["ba2"][0, 0])
  scores = jnp.concatenate(scores, axis=1)
  attn = jax.nn.softmax(scores, axis=1)
  gh = sum(mm(projs[i], params["wg1"][i]) for i in range(M))
  gh = jnp.maximum(gh + params["bg1"], 0.0)
  gate = jax.nn.softmax(mm(gh, params["wg2"]) + params["bg2"], axis=-1)
  fw = attn * gate
  fw = fw / (jnp.sum(fw, axis=1, keepdims=True) + 1e-8)
  fused = jnp.sum(stack * fw[:, :, None], axis=1)
  return {"fused_features": fused, "modality_features": stack,
          "attention_weights": attn, "gate_weights": gate, "final_weights": fw}


if __name__ == "__main__":
  input_dims = [32, 64, 96]
  embed_dim = 128
  batch = 256   # -> tb=128, grid of 2 parallel steps

  key = jax.random.PRNGKey(0)
  pkey, xkey = jax.random.split(key)
  params = make_params(input_dims, embed_dim, pkey)
  xkeys = jax.random.split(xkey, len(input_dims))
  modality_features = [
      jax.random.normal(xkeys[i], (batch, d), jnp.float32)
      for i, d in enumerate(input_dims)
  ]

  out = attention_fusion_forward(modality_features, params)
  jax.block_until_ready(out["fused_features"])

  names = ("fused_features", "modality_features", "attention_weights",
           "gate_weights", "final_weights")

  # Tight check vs a pure-JAX reference with the identical bf16 MXU path.
  ref_m = attention_fusion_matched_reference(modality_features, params)
  for name in names:
    assert jnp.allclose(out[name], ref_m[name], rtol=2e-3, atol=2e-3), name

  # Loose sanity check vs the full-f32 PyTorch-equivalent reference
  # (tolerance absorbs the bf16-input quantization of the MXU matmuls).
  ref_f = attention_fusion_reference(modality_features, params)
  for name in names:
    assert jnp.allclose(out[name], ref_f[name], rtol=5e-2, atol=5e-2), name

  print("KERNEL_OK")
</pallas_src>

<mosaic_0001>
module attributes {stable_mosaic.version = 11 : i64} {
  func.func @_attention_fusion_kernel(%arg0: i32, %arg1: memref<3x128x128xbf16, #tpu.memory_space<vmem>>, %arg2: memref<3x128x128xbf16, #tpu.memory_space<vmem>>, %arg3: memref<3x1x128xf32, #tpu.memory_space<vmem>>, %arg4: memref<3x1x128xf32, #tpu.memory_space<vmem>>, %arg5: memref<3x1x128xf32, #tpu.memory_space<vmem>>, %arg6: memref<128x64xbf16, #tpu.memory_space<vmem>>, %arg7: memref<1x64xf32, #tpu.memory_space<vmem>>, %arg8: memref<1x64xf32, #tpu.memory_space<vmem>>, %arg9: memref<1x1xf32, #tpu.memory_space<smem>>, %arg10: memref<3x128x128xbf16, #tpu.memory_space<vmem>>, %arg11: memref<1x128xf32, #tpu.memory_space<vmem>>, %arg12: memref<128x3xbf16, #tpu.memory_space<vmem>>, %arg13: memref<1x3xf32, #tpu.memory_space<vmem>>, %arg14: memref<128x128xf32, #tpu.memory_space<vmem>>, %arg15: memref<3x128x128xf32, #tpu.memory_space<vmem>>, %arg16: memref<128x128xf32, #tpu.memory_space<vmem>>) attributes {dimension_semantics = [#tpu.dimension_semantics<parallel>], iteration_bounds = array<i64: 2>, scalar_prefetch = 0 : i64, scratch_operands = 0 : i64, tpu.core_type = #tpu.core_type<tc>, window_params = [{transform_indices = @transform_0, window_bounds = array<i64: 3, 128, 128>}, {pipeline_mode = #tpu.pipeline_mode<synchronous>, transform_indices = @transform_1, window_bounds = array<i64: 3, 128, 128>}, {pipeline_mode = #tpu.pipeline_mode<synchronous>, transform_indices = @transform_2, window_bounds = array<i64: 3, 1, 128>}, {pipeline_mode = #tpu.pipeline_mode<synchronous>, transform_indices = @transform_3, window_bounds = array<i64: 3, 1, 128>}, {pipeline_mode = #tpu.pipeline_mode<synchronous>, transform_indices = @transform_4, window_bounds = array<i64: 3, 1, 128>}, {pipeline_mode = #tpu.pipeline_mode<synchronous>, transform_indices = @transform_5, window_bounds = array<i64: 128, 64>}, {pipeline_mode = #tpu.pipeline_mode<synchronous>, transform_indices = @transform_6, window_bounds = array<i64: 1, 64>}, {pipeline_mode = #tpu.pipeline_mode<synchronous>, transform_indices = @transform_7, window_bounds = array<i64: 1, 64>}, {transform_indices = @transform_8, window_bounds = array<i64: 1, 1>}, {pipeline_mode = #tpu.pipeline_mode<synchronous>, transform_indices = @transform_9, window_bounds = array<i64: 3, 128, 128>}, {pipeline_mode = #tpu.pipeline_mode<synchronous>, transform_indices = @transform_10, window_bounds = array<i64: 1, 128>}, {pipeline_mode = #tpu.pipeline_mode<synchronous>, transform_indices = @transform_11, window_bounds = array<i64: 128, 3>}, {pipeline_mode = #tpu.pipeline_mode<synchronous>, transform_indices = @transform_12, window_bounds = array<i64: 1, 3>}, {transform_indices = @transform_13, window_bounds = array<i64: 128, 128>}, {transform_indices = @transform_14, window_bounds = array<i64: 3, 128, 128>}, {transform_indices = @transform_15, window_bounds = array<i64: 128, 128>}]} {
    %cst = arith.constant 0.000000e+00 : f32
    %0 = vector.broadcast %cst : f32 to vector<128x128xf32>
    %c0 = arith.constant 0 : index
    %c0_0 = arith.constant 0 : index
    %c0_1 = arith.constant 0 : index
    %1 = vector.load %arg1[%c0, %c0_0, %c0_1] : memref<3x128x128xbf16, #tpu.memory_space<vmem>>, vector<1x128x128xbf16>
    %2 = vector.shape_cast %1 : vector<1x128x128xbf16> to vector<128x128xbf16>
    %c0_2 = arith.constant 0 : index
    %c0_3 = arith.constant 0 : index
    %c0_4 = arith.constant 0 : index
    %3 = vector.load %arg2[%c0_2, %c0_3, %c0_4] : memref<3x128x128xbf16, #tpu.memory_space<vmem>>, vector<1x128x128xbf16>
    %4 = vector.shape_cast %3 : vector<1x128x128xbf16> to vector<128x128xbf16>
    %cst_5 = arith.constant dense<0.000000e+00> : vector<128x128xf32>
    %5 = tpu.matmul %2, %4, %cst_5 {dimension_numbers = #tpu.dot_dimension_numbers<[1], [0], [0], [1], [0, 0, 1, 1], [], []>} : vector<128x128xbf16>, vector<128x128xbf16>, vector<128x128xf32> -> vector<128x128xf32>
    %c0_6 = arith.constant 0 : index
    %c0_7 = arith.constant 0 : index
    %c0_8 = arith.constant 0 : index
    %6 = vector.load %arg3[%c0_6, %c0_7, %c0_8] : memref<3x1x128xf32, #tpu.memory_space<vmem>>, vector<1x1x128xf32>
    %7 = vector.shape_cast %6 : vector<1x1x128xf32> to vector<1x128xf32>
    %8 = vector.broadcast %7 : vector<1x128xf32> to vector<128x128xf32>
    %9 = arith.addf %5, %8 : vector<128x128xf32>
    %cst_9 = arith.constant dense<0.000000e+00> : vector<128xf32>
    %10 = vector.multi_reduction <add>, %9, %cst_9 [1] : vector<128x128xf32> to vector<128xf32>
    %11 = vector.shape_cast %10 : vector<128xf32> to vector<128x1xf32>
    %cst_10 = arith.constant 1.280000e+02 : f32
    %12 = vector.broadcast %cst_10 : f32 to vector<128x1xf32>
    %13 = arith.divf %11, %12 : vector<128x1xf32>
    %14 = vector.broadcast %13 : vector<128x1xf32> to vector<128x128xf32>
    %15 = arith.subf %9, %14 : vector<128x128xf32>
    %16 = arith.mulf %15, %15 : vector<128x128xf32>
    %cst_11 = arith.constant dense<0.000000e+00> : vector<128xf32>
    %17 = vector.multi_reduction <add>, %16, %cst_11 [1] : vector<128x128xf32> to vector<128xf32>
    %18 = vector.shape_cast %17 : vector<128xf32> to vector<128x1xf32>
    %cst_12 = arith.constant 1.280000e+02 : f32
    %19 = vector.broadcast %cst_12 : f32 to vector<128x1xf32>
    %20 = arith.divf %18, %19 : vector<128x1xf32>
    %21 = vector.broadcast %13 : vector<128x1xf32> to vector<128x128xf32>
    %22 = arith.subf %9, %21 : vector<128x128xf32>
    %cst_13 = arith.constant 9.99999974E-6 : f32
    %23 = vector.broadcast %cst_13 : f32 to vector<128x1xf32>
    %24 = arith.addf %20, %23 : vector<128x1xf32>
    %25 = math.rsqrt %24 : vector<128x1xf32>
    %26 = vector.broadcast %25 : vector<128x1xf32> to vector<128x128xf32>
    %27 = arith.mulf %22, %26 : vector<128x128xf32>
    %c0_14 = arith.constant 0 : index
    %c0_15 = arith.constant 0 : index
    %c0_16 = arith.constant 0 : index
    %28 = vector.load %arg4[%c0_14, %c0_15, %c0_16] : memref<3x1x128xf32, #tpu.memory_space<vmem>>, vector<1x1x128xf32>
    %29 = vector.shape_cast %28 : vector<1x1x128xf32> to vector<1x128xf32>
    %30 = vector.broadcast %29 : vector<1x128xf32> to vector<128x128xf32>
    %31 = arith.mulf %27, %30 : vector<128x128xf32>
    %c0_17 = arith.constant 0 : index
    %c0_18 = arith.constant 0 : index
    %c0_19 = arith.constant 0 : index
    %32 = vector.load %arg5[%c0_17, %c0_18, %c0_19] : memref<3x1x128xf32, #tpu.memory_space<vmem>>, vector<1x1x128xf32>
    %33 = vector.shape_cast %32 : vector<1x1x128xf32> to vector<1x128xf32>
    %34 = vector.broadcast %33 : vector<1x128xf32> to vector<128x128xf32>
    %35 = arith.addf %31, %34 : vector<128x128xf32>
    %cst_20 = arith.constant 0.000000e+00 : f32
    %36 = vector.broadcast %cst_20 : f32 to vector<128x128xf32>
    %37 = arith.maximumf %35, %36 : vector<128x128xf32>
    %c0_21 = arith.constant 0 : index
    %c0_22 = arith.constant 0 : index
    %c0_23 = arith.constant 0 : index
    %38 = vector.load %arg15[%c0_21, %c0_22, %c0_23] : memref<3x128x128xf32, #tpu.memory_space<vmem>>, vector<1x128x128xf32>
    %39 = vector.shape_cast %38 : vector<1x128x128xf32> to vector<128x128xf32>
    %40 = vector.shape_cast %37 : vector<128x128xf32> to vector<1x128x128xf32>
    tpu.vector_store %arg15[%c0_21, %c0_22, %c0_23], %40 {strides = array<i32>} : memref<3x128x128xf32, #tpu.memory_space<vmem>>, vector<1x128x128xf32>,
    %41 = arith.truncf %37 : vector<128x128xf32> to vector<128x128xbf16>
    %c0_24 = arith.constant 0 : index
    %c0_25 = arith.constant 0 : index
    %c0_26 = arith.constant 0 : index
    %42 = vector.load %arg10[%c0_24, %c0_25, %c0_26] : memref<3x128x128xbf16, #tpu.memory_space<vmem>>, vector<1x128x128xbf16>
    %43 = vector.shape_cast %42 : vector<1x128x128xbf16> to vector<128x128xbf16>
    %cst_27 = arith.constant dense<0.000000e+00> : vector<128x128xf32>
    %44 = tpu.matmul %41, %43, %cst_27 {dimension_numbers = #tpu.dot_dimension_numbers<[1], [0], [0], [1], [0, 0, 1, 1], [], []>} : vector<128x128xbf16>, vector<128x128xbf16>, vector<128x128xf32> -> vector<128x128xf32>
    %45 = arith.addf %0, %44 : vector<128x128xf32>
    %c1 = arith.constant 1 : index
    %c0_28 = arith.constant 0 : index
    %c0_29 = arith.constant 0 : index
    %46 = vector.load %arg1[%c1, %c0_28, %c0_29] : memref<3x128x128xbf16, #tpu.memory_space<vmem>>, vector<1x128x128xbf16>
    %47 = vector.shape_cast %46 : vector<1x128x128xbf16> to vector<128x128xbf16>
    %c1_30 = arith.constant 1 : index
    %c0_31 = arith.constant 0 : index
    %c0_32 = arith.constant 0 : index
    %48 = vector.load %arg2[%c1_30, %c0_31, %c0_32] : memref<3x128x128xbf16, #tpu.memory_space<vmem>>, vector<1x128x128xbf16>
    %49 = vector.shape_cast %48 : vector<1x128x128xbf16> to vector<128x128xbf16>
    %cst_33 = arith.constant dense<0.000000e+00> : vector<128x128xf32>
    %50 = tpu.matmul %47, %49, %cst_33 {dimension_numbers = #tpu.dot_dimension_numbers<[1], [0], [0], [1], [0, 0, 1, 1], [], []>} : vector<128x128xbf16>, vector<128x128xbf16>, vector<128x128xf32> -> vector<128x128xf32>
    %c1_34 = arith.constant 1 : index
    %c0_35 = arith.constant 0 : index
    %c0_36 = arith.constant 0 : index
    %51 = vector.load %arg3[%c1_34, %c0_35, %c0_36] : memref<3x1x128xf32, #tpu.memory_space<vmem>>, vector<1x1x128xf32>
    %52 = vector.shape_cast %51 : vector<1x1x128xf32> to vector<1x128xf32>
    %53 = vector.broadcast %52 : vector<1x128xf32> to vector<128x128xf32>
    %54 = arith.addf %50, %53 : vector<128x128xf32>
    %cst_37 = arith.constant dense<0.000000e+00> : vector<128xf32>
    %55 = vector.multi_reduction <add>, %54, %cst_37 [1] : vector<128x128xf32> to vector<128xf32>
    %56 = vector.shape_cast %55 : vector<128xf32> to vector<128x1xf32>
    %cst_38 = arith.constant 1.280000e+02 : f32
    %57 = vector.broadcast %cst_38 : f32 to vector<128x1xf32>
    %58 = arith.divf %56, %57 : vector<128x1xf32>
    %59 = vector.broadcast %58 : vector<128x1xf32> to vector<128x128xf32>
    %60 = arith.subf %54, %59 : vector<128x128xf32>
    %61 = arith.mulf %60, %60 : vector<128x128xf32>
    %cst_39 = arith.constant dense<0.000000e+00> : vector<128xf32>
    %62 = vector.multi_reduction <add>, %61, %cst_39 [1] : vector<128x128xf32> to vector<128xf32>
    %63 = vector.shape_cast %62 : vector<128xf32> to vector<128x1xf32>
    %cst_40 = arith.constant 1.280000e+02 : f32
    %64 = vector.broadcast %cst_40 : f32 to vector<128x1xf32>
    %65 = arith.divf %63, %64 : vector<128x1xf32>
    %66 = vector.broadcast %58 : vector<128x1xf32> to vector<128x128xf32>
    %67 = arith.subf %54, %66 : vector<128x128xf32>
    %cst_41 = arith.constant 9.99999974E-6 : f32
    %68 = vector.broadcast %cst_41 : f32 to vector<128x1xf32>
    %69 = arith.addf %65, %68 : vector<128x1xf32>
    %70 = math.rsqrt %69 : vector<128x1xf32>
    %71 = vector.broadcast %70 : vector<128x1xf32> to vector<128x128xf32>
    %72 = arith.mulf %67, %71 : vector<128x128xf32>
    %c1_42 = arith.constant 1 : index
    %c0_43 = arith.constant 0 : index
    %c0_44 = arith.constant 0 : index
    %73 = vector.load %arg4[%c1_42, %c0_43, %c0_44] : memref<3x1x128xf32, #tpu.memory_space<vmem>>, vector<1x1x128xf32>
    %74 = vector.shape_cast %73 : vector<1x1x128xf32> to vector<1x128xf32>
    %75 = vector.broadcast %74 : vector<1x128xf32> to vector<128x128xf32>
    %76 = arith.mulf %72, %75 : vector<128x128xf32>
    %c1_45 = arith.constant 1 : index
    %c0_46 = arith.constant 0 : index
    %c0_47 = arith.constant 0 : index
    %77 = vector.load %arg5[%c1_45, %c0_46, %c0_47] : memref<3x1x128xf32, #tpu.memory_space<vmem>>, vector<1x1x128xf32>
    %78 = vector.shape_cast %77 : vector<1x1x128xf32> to vector<1x128xf32>
    %79 = vector.broadcast %78 : vector<1x128xf32> to vector<128x128xf32>
    %80 = arith.addf %76, %79 : vector<128x128xf32>
    %cst_48 = arith.constant 0.000000e+00 : f32
    %81 = vector.broadcast %cst_48 : f32 to vector<128x128xf32>
    %82 = arith.maximumf %80, %81 : vector<128x128xf32>
    %c1_49 = arith.constant 1 : index
    %c0_50 = arith.constant 0 : index
    %c0_51 = arith.constant 0 : index
    %83 = vector.load %arg15[%c1_49, %c0_50, %c0_51] : memref<3x128x128xf32, #tpu.memory_space<vmem>>, vector<1x128x128xf32>
    %84 = vector.shape_cast %83 : vector<1x128x128xf32> to vector<128x128xf32>
    %85 = vector.shape_cast %82 : vector<128x128xf32> to vector<1x128x128xf32>
    tpu.vector_store %arg15[%c1_49, %c0_50, %c0_51], %85 {strides = array<i32>} : memref<3x128x128xf32, #tpu.memory_space<vmem>>, vector<1x128x128xf32>,
    %86 = arith.truncf %82 : vector<128x128xf32> to vector<128x128xbf16>
    %c1_52 = arith.constant 1 : index
    %c0_53 = arith.constant 0 : index
    %c0_54 = arith.constant 0 : index
    %87 = vector.load %arg10[%c1_52, %c0_53, %c0_54] : memref<3x128x128xbf16, #tpu.memory_space<vmem>>, vector<1x128x128xbf16>
    %88 = vector.shape_cast %87 : vector<1x128x128xbf16> to vector<128x128xbf16>
    %cst_55 = arith.constant dense<0.000000e+00> : vector<128x128xf32>
    %89 = tpu.matmul %86, %88, %cst_55 {dimension_numbers = #tpu.dot_dimension_numbers<[1], [0], [0], [1], [0, 0, 1, 1], [], []>} : vector<128x128xbf16>, vector<128x128xbf16>, vector<128x128xf32> -> vector<128x128xf32>
    %90 = arith.addf %45, %89 : vector<128x128xf32>
    %c2 = arith.constant 2 : index
    %c0_56 = arith.constant 0 : index
    %c0_57 = arith.constant 0 : index
    %91 = vector.load %arg1[%c2, %c0_56, %c0_57] : memref<3x128x128xbf16, #tpu.memory_space<vmem>>, vector<1x128x128xbf16>
    %92 = vector.shape_cast %91 : vector<1x128x128xbf16> to vector<128x128xbf16>
    %c2_58 = arith.constant 2 : index
    %c0_59 = arith.constant 0 : index
    %c0_60 = arith.constant 0 : index
    %93 = vector.load %arg2[%c2_58, %c0_59, %c0_60] : memref<3x128x128xbf16, #tpu.memory_space<vmem>>, vector<1x128x128xbf16>
    %94 = vector.shape_cast %93 : vector<1x128x128xbf16> to vector<128x128xbf16>
    %cst_61 = arith.constant dense<0.000000e+00> : vector<128x128xf32>
    %95 = tpu.matmul %92, %94, %cst_61 {dimension_numbers = #tpu.dot_dimension_numbers<[1], [0], [0], [1], [0, 0, 1, 1], [], []>} : vector<128x128xbf16>, vector<128x128xbf16>, vector<128x128xf32> -> vector<128x128xf32>
    %c2_62 = arith.constant 2 : index
    %c0_63 = arith.constant 0 : index
    %c0_64 = arith.constant 0 : index
    %96 = vector.load %arg3[%c2_62, %c0_63, %c0_64] : memref<3x1x128xf32, #tpu.memory_space<vmem>>, vector<1x1x128xf32>
    %97 = vector.shape_cast %96 : vector<1x1x128xf32> to vector<1x128xf32>
    %98 = vector.broadcast %97 : vector<1x128xf32> to vector<128x128xf32>
    %99 = arith.addf %95, %98 : vector<128x128xf32>
    %cst_65 = arith.constant dense<0.000000e+00> : vector<128xf32>
    %100 = vector.multi_reduction <add>, %99, %cst_65 [1] : vector<128x128xf32> to vector<128xf32>
    %101 = vector.shape_cast %100 : vector<128xf32> to vector<128x1xf32>
    %cst_66 = arith.constant 1.280000e+02 : f32
    %102 = vector.broadcast %cst_66 : f32 to vector<128x1xf32>
    %103 = arith.divf %101, %102 : vector<128x1xf32>
    %104 = vector.broadcast %103 : vector<128x1xf32> to vector<128x128xf32>
    %105 = arith.subf %99, %104 : vector<128x128xf32>
    %106 = arith.mulf %105, %105 : vector<128x128xf32>
    %cst_67 = arith.constant dense<0.000000e+00> : vector<128xf32>
    %107 = vector.multi_reduction <add>, %106, %cst_67 [1] : vector<128x128xf32> to vector<128xf32>
    %108 = vector.shape_cast %107 : vector<128xf32> to vector<128x1xf32>
    %cst_68 = arith.constant 1.280000e+02 : f32
    %109 = vector.broadcast %cst_68 : f32 to vector<128x1xf32>
    %110 = arith.divf %108, %109 : vector<128x1xf32>
    %111 = vector.broadcast %103 : vector<128x1xf32> to vector<128x128xf32>
    %112 = arith.subf %99, %111 : vector<128x128xf32>
    %cst_69 = arith.constant 9.99999974E-6 : f32
    %113 = vector.broadcast %cst_69 : f32 to vector<128x1xf32>
    %114 = arith.addf %110, %113 : vector<128x1xf32>
    %115 = math.rsqrt %114 : vector<128x1xf32>
    %116 = vector.broadcast %115 : vector<128x1xf32> to vector<128x128xf32>
    %117 = arith.mulf %112, %116 : vector<128x128xf32>
    %c2_70 = arith.constant 2 : index
    %c0_71 = arith.constant 0 : index
    %c0_72 = arith.constant 0 : index
    %118 = vector.load %arg4[%c2_70, %c0_71, %c0_72] : memref<3x1x128xf32, #tpu.memory_space<vmem>>, vector<1x1x128xf32>
    %119 = vector.shape_cast %118 : vector<1x1x128xf32> to vector<1x128xf32>
    %120 = vector.broadcast %119 : vector<1x128xf32> to vector<128x128xf32>
    %121 = arith.mulf %117, %120 : vector<128x128xf32>
    %c2_73 = arith.constant 2 : index
    %c0_74 = arith.constant 0 : index
    %c0_75 = arith.constant 0 : index
    %122 = vector.load %arg5[%c2_73, %c0_74, %c0_75] : memref<3x1x128xf32, #tpu.memory_space<vmem>>, vector<1x1x128xf32>
    %123 = vector.shape_cast %122 : vector<1x1x128xf32> to vector<1x128xf32>
    %124 = vector.broadcast %123 : vector<1x128xf32> to vector<128x128xf32>
    %125 = arith.addf %121, %124 : vector<128x128xf32>
    %cst_76 = arith.constant 0.000000e+00 : f32
    %126 = vector.broadcast %cst_76 : f32 to vector<128x128xf32>
    %127 = arith.maximumf %125, %126 : vector<128x128xf32>
    %c2_77 = arith.constant 2 : index
    %c0_78 = arith.constant 0 : index
    %c0_79 = arith.constant 0 : index
    %128 = vector.load %arg15[%c2_77, %c0_78, %c0_79] : memref<3x128x128xf32, #tpu.memory_space<vmem>>, vector<1x128x128xf32>
    %129 = vector.shape_cast %128 : vector<1x128x128xf32> to vector<128x128xf32>
    %130 = vector.shape_cast %127 : vector<128x128xf32> to vector<1x128x128xf32>
    tpu.vector_store %arg15[%c2_77, %c0_78, %c0_79], %130 {strides = array<i32>} : memref<3x128x128xf32, #tpu.memory_space<vmem>>, vector<1x128x128xf32>,
    %131 = arith.truncf %127 : vector<128x128xf32> to vector<128x128xbf16>
    %c2_80 = arith.constant 2 : index
    %c0_81 = arith.constant 0 : index
    %c0_82 = arith.constant 0 : index
    %132 = vector.load %arg10[%c2_80, %c0_81, %c0_82] : memref<3x128x128xbf16, #tpu.memory_space<vmem>>, vector<1x128x128xbf16>
    %133 = vector.shape_cast %132 : vector<1x128x128xbf16> to vector<128x128xbf16>
    %cst_83 = arith.constant dense<0.000000e+00> : vector<128x128xf32>
    %134 = tpu.matmul %131, %133, %cst_83 {dimension_numbers = #tpu.dot_dimension_numbers<[1], [0], [0], [1], [0, 0, 1, 1], [], []>} : vector<128x128xbf16>, vector<128x128xbf16>, vector<128x128xf32> -> vector<128x128xf32>
    %135 = arith.addf %90, %134 : vector<128x128xf32>
    %c0_84 = arith.constant 0 : index
    %c0_85 = arith.constant 0 : index
    %c0_86 = arith.constant 0 : index
    %136 = vector.load %arg15[%c0_84, %c0_85, %c0_86] : memref<3x128x128xf32, #tpu.memory_space<vmem>>, vector<3x128x128xf32>
    %137 = vector.shape_cast %136 : vector<3x128x128xf32> to vector<384x128xf32>
    %138 = arith.truncf %137 : vector<384x128xf32> to vector<384x128xbf16>
    %c0_87 = arith.constant 0 : index
    %c0_88 = arith.constant 0 : index
    %139 = vector.load %arg6[%c0_87, %c0_88] : memref<128x64xbf16, #tpu.memory_space<vmem>>, vector<128x64xbf16>
    %cst_89 = arith.constant dense<0.000000e+00> : vector<384x64xf32>
    %140 = tpu.matmul %138, %139, %cst_89 {dimension_numbers = #tpu.dot_dimension_numbers<[1], [0], [0], [1], [0, 0, 1, 1], [], []>} : vector<384x128xbf16>, vector<128x64xbf16>, vector<384x64xf32> -> vector<384x64xf32>
    %c0_90 = arith.constant 0 : index
    %c0_91 = arith.constant 0 : index
    %141 = vector.load %arg7[%c0_90, %c0_91] : memref<1x64xf32, #tpu.memory_space<vmem>>, vector<1x64xf32>
    %142 = vector.broadcast %141 : vector<1x64xf32> to vector<384x64xf32>
    %143 = arith.addf %140, %142 : vector<384x64xf32>
    %cst_92 = arith.constant 0.000000e+00 : f32
    %144 = vector.broadcast %cst_92 : f32 to vector<384x64xf32>
    %145 = arith.maximumf %143, %144 : vector<384x64xf32>
    %c0_93 = arith.constant 0 : index
    %c0_94 = arith.constant 0 : index
    %146 = vector.load %arg8[%c0_93, %c0_94] : memref<1x64xf32, #tpu.memory_space<vmem>>, vector<1x64xf32>
    %147 = vector.broadcast %146 : vector<1x64xf32> to vector<384x64xf32>
    %148 = arith.mulf %145, %147 : vector<384x64xf32>
    %cst_95 = arith.constant dense<0.000000e+00> : vector<384xf32>
    %149 = vector.multi_reduction <add>, %148, %cst_95 [1] : vector<384x64xf32> to vector<384xf32>
    %150 = vector.shape_cast %149 : vector<384xf32> to vector<384x1xf32>
    %c0_96 = arith.constant 0 : index
    %c0_97 = arith.constant 0 : index
    %151 = memref.load %arg9[%c0_96, %c0_97] : memref<1x1xf32, #tpu.memory_space<smem>>
    %152 = vector.broadcast %151 : f32 to vector<384x1xf32>
    %153 = arith.addf %150, %152 : vector<384x1xf32>
    %154 = vector.extract_strided_slice %153 {offsets = [0, 0], sizes = [128, 1], strides = [1, 1]} : vector<384x1xf32> to vector<128x1xf32>
    %155 = vector.extract_strided_slice %153 {offsets = [128, 0], sizes = [128, 1], strides = [1, 1]} : vector<384x1xf32> to vector<128x1xf32>
    %156 = vector.extract_strided_slice %153 {offsets = [256, 0], sizes = [128, 1], strides = [1, 1]} : vector<384x1xf32> to vector<128x1xf32>
    %157 = tpu.concatenate %154, %155, %156 in 1 : vector<128x1xf32>, vector<128x1xf32>, vector<128x1xf32> -> vector<128x3xf32>
    %cst_98 = arith.constant dense<0xFF800000> : vector<128xf32>
    %158 = vector.multi_reduction <maximumf>, %157, %cst_98 [1] : vector<128x3xf32> to vector<128xf32>
    %159 = vector.shape_cast %158 : vector<128xf32> to vector<128x1xf32>
    %160 = vector.broadcast %159 : vector<128x1xf32> to vector<128x3xf32>
    %161 = arith.subf %157, %160 : vector<128x3xf32>
    %162 = math.exp %161 : vector<128x3xf32>
    %cst_99 = arith.constant dense<0.000000e+00> : vector<128xf32>
    %163 = vector.multi_reduction <add>, %162, %cst_99 [1] : vector<128x3xf32> to vector<128xf32>
    %164 = vector.shape_cast %163 : vector<128xf32> to vector<128x1xf32>
    %165 = vector.broadcast %164 : vector<128x1xf32> to vector<128x3xf32>
    %166 = arith.divf %162, %165 : vector<128x3xf32>
    %c0_100 = arith.constant 0 : index
    %c0_101 = arith.constant 0 : index
    %167 = vector.load %arg11[%c0_100, %c0_101] : memref<1x128xf32, #tpu.memory_space<vmem>>, vector<1x128xf32>
    %168 = vector.broadcast %167 : vector<1x128xf32> to vector<128x128xf32>
    %169 = arith.addf %135, %168 : vector<128x128xf32>
    %cst_102 = arith.constant 0.000000e+00 : f32
    %170 = vector.broadcast %cst_102 : f32 to vector<128x128xf32>
    %171 = arith.maximumf %169, %170 : vector<128x128xf32>
    %172 = arith.truncf %171 : vector<128x128xf32> to vector<128x128xbf16>
    %c0_103 = arith.constant 0 : index
    %c0_104 = arith.constant 0 : index
    %173 = vector.load %arg12[%c0_103, %c0_104] : memref<128x3xbf16, #tpu.memory_space<vmem>>, vector<128x3xbf16>
    %cst_105 = arith.constant dense<0.000000e+00> : vector<128x3xf32>
    %174 = tpu.matmul %172, %173, %cst_105 {dimension_numbers = #tpu.dot_dimension_numbers<[1], [0], [0], [1], [0, 0, 1, 1], [], []>} : vector<128x128xbf16>, vector<128x3xbf16>, vector<128x3xf32> -> vector<128x3xf32>
    %c0_106 = arith.constant 0 : index
    %c0_107 = arith.constant 0 : index
    %175 = vector.load %arg13[%c0_106, %c0_107] : memref<1x3xf32, #tpu.memory_space<vmem>>, vector<1x3xf32>
    %176 = vector.broadcast %175 : vector<1x3xf32> to vector<128x3xf32>
    %177 = arith.addf %174, %176 : vector<128x3xf32>
    %cst_108 = arith.constant dense<0xFF800000> : vector<128xf32>
    %178 = vector.multi_reduction <maximumf>, %177, %cst_108 [1] : vector<128x3xf32> to vector<128xf32>
    %179 = vector.shape_cast %178 : vector<128xf32> to vector<128x1xf32>
    %180 = vector.broadcast %179 : vector<128x1xf32> to vector<128x3xf32>
    %181 = arith.subf %177, %180 : vector<128x3xf32>
    %182 = math.exp %181 : vector<128x3xf32>
    %cst_109 = arith.constant dense<0.000000e+00> : vector<128xf32>
    %183 = vector.multi_reduction <add>, %182, %cst_109 [1] : vector<128x3xf32> to vector<128xf32>
    %184 = vector.shape_cast %183 : vector<128xf32> to vector<128x1xf32>
    %185 = vector.broadcast %184 : vector<128x1xf32> to vector<128x3xf32>
    %186 = arith.divf %182, %185 : vector<128x3xf32>
    %187 = arith.mulf %166, %186 : vector<128x3xf32>
    %cst_110 = arith.constant dense<0.000000e+00> : vector<128xf32>
    %188 = vector.multi_reduction <add>, %187, %cst_110 [1] : vector<128x3xf32> to vector<128xf32>
    %189 = vector.shape_cast %188 : vector<128xf32> to vector<128x1xf32>
    %cst_111 = arith.constant 9.99999993E-9 : f32
    %190 = vector.broadcast %cst_111 : f32 to vector<128x1xf32>
    %191 = arith.addf %189, %190 : vector<128x1xf32>
    %192 = vector.broadcast %191 : vector<128x1xf32> to vector<128x3xf32>
    %193 = arith.divf %187, %192 : vector<128x3xf32>
    %c0_112 = arith.constant 0 : index
    %c0_113 = arith.constant 0 : index
    %c0_114 = arith.constant 0 : index
    %194 = vector.load %arg15[%c0_112, %c0_113, %c0_114] : memref<3x128x128xf32, #tpu.memory_space<vmem>>, vector<1x128x128xf32>
    %195 = vector.shape_cast %194 : vector<1x128x128xf32> to vector<128x128xf32>
    %196 = vector.extract_strided_slice %193 {offsets = [0, 0], sizes = [128, 1], strides = [1, 1]} : vector<128x3xf32> to vector<128x1xf32>
    %197 = vector.broadcast %196 : vector<128x1xf32> to vector<128x128xf32>
    %198 = arith.mulf %195, %197 : vector<128x128xf32>
    %c1_115 = arith.constant 1 : index
    %c0_116 = arith.constant 0 : index
    %c0_117 = arith.constant 0 : index
    %199 = vector.load %arg15[%c1_115, %c0_116, %c0_117] : memref<3x128x128xf32, #tpu.memory_space<vmem>>, vector<1x128x128xf32>
    %200 = vector.shape_cast %199 : vector<1x128x128xf32> to vector<128x128xf32>
    %201 = vector.extract_strided_slice %193 {offsets = [0, 1], sizes = [128, 1], strides = [1, 1]} : vector<128x3xf32> to vector<128x1xf32>
    %202 = vector.broadcast %201 : vector<128x1xf32> to vector<128x128xf32>
    %203 = arith.mulf %200, %202 : vector<128x128xf32>
    %204 = arith.addf %198, %203 : vector<128x128xf32>
    %c2_118 = arith.constant 2 : index
    %c0_119 = arith.constant 0 : index
    %c0_120 = arith.constant 0 : index
    %205 = vector.load %arg15[%c2_118, %c0_119, %c0_120] : memref<3x128x128xf32, #tpu.memory_space<vmem>>, vector<1x128x128xf32>
    %206 = vector.shape_cast %205 : vector<1x128x128xf32> to vector<128x128xf32>
    %207 = vector.extract_strided_slice %193 {offsets = [0, 2], sizes = [128, 1], strides = [1, 1]} : vector<128x3xf32> to vector<128x1xf32>
    %208 = vector.broadcast %207 : vector<128x1xf32> to vector<128x128xf32>
    %209 = arith.mulf %206, %208 : vector<128x128xf32>
    %210 = arith.addf %204, %209 : vector<128x128xf32>
    %c0_121 = arith.constant 0 : index
    %c0_122 = arith.constant 0 : index
    %211 = vector.load %arg14[%c0_121, %c0_122] : memref<128x128xf32, #tpu.memory_space<vmem>>, vector<128x128xf32>
    tpu.vector_store %arg14[%c0_121, %c0_122], %210 {strides = array<i32>} : memref<128x128xf32, #tpu.memory_space<vmem>>, vector<128x128xf32>,
    %cst_123 = arith.constant 0.000000e+00 : f32
    %212 = vector.broadcast %cst_123 : f32 to vector<128x119xf32>
    %213 = tpu.concatenate %166, %186, %193, %212 in 1 : vector<128x3xf32>, vector<128x3xf32>, vector<128x3xf32>, vector<128x119xf32> -> vector<128x128xf32>
    %c0_124 = arith.constant 0 : index
    %c0_125 = arith.constant 0 : index
    %214 = vector.load %arg16[%c0_124, %c0_125] : memref<128x128xf32, #tpu.memory_space<vmem>>, vector<128x128xf32>
    tpu.vector_store %arg16[%c0_124, %c0_125], %213 {strides = array<i32>} : memref<128x128xf32, #tpu.memory_space<vmem>>, vector<128x128xf32>,
    return
  }
  func.func @transform_0(%arg0: i32) -> (i32, i32, i32) {
    %c0_i32 = arith.constant 0 : i32
    %c0_i32_0 = arith.constant 0 : i32
    %c0_i32_1 = arith.constant 0 : i32
    return %c0_i32, %arg0, %c0_i32_0 : i32, i32, i32
  }
  func.func @transform_1(%arg0: i32) -> (i32, i32, i32) {
    %c0_i32 = arith.constant 0 : i32
    %c0_i32_0 = arith.constant 0 : i32
    %c0_i32_1 = arith.constant 0 : i32
    %c0_i32_2 = arith.constant 0 : i32
    return %c0_i32, %c0_i32_0, %c0_i32_1 : i32, i32, i32
  }
  func.func @transform_2(%arg0: i32) -> (i32, i32, i32) {
    %c0_i32 = arith.constant 0 : i32
    %c0_i32_0 = arith.constant 0 : i32
    %c0_i32_1 = arith.constant 0 : i32
    %c0_i32_2 = arith.constant 0 : i32
    return %c0_i32, %c0_i32_0, %c0_i32_1 : i32, i32, i32
  }
  func.func @transform_3(%arg0: i32) -> (i32, i32, i32) {
    %c0_i32 = arith.constant 0 : i32
    %c0_i32_0 = arith.constant 0 : i32
    %c0_i32_1 = arith.constant 0 : i32
    %c0_i32_2 = arith.constant 0 : i32
    return %c0_i32, %c0_i32_0, %c0_i32_1 : i32, i32, i32
  }
  func.func @transform_4(%arg0: i32) -> (i32, i32, i32) {
    %c0_i32 = arith.constant 0 : i32
    %c0_i32_0 = arith.constant 0 : i32
    %c0_i32_1 = arith.constant 0 : i32
    %c0_i32_2 = arith.constant 0 : i32
    return %c0_i32, %c0_i32_0, %c0_i32_1 : i32, i32, i32
  }
  func.func @transform_5(%arg0: i32) -> (i32, i32) {
    %c0_i32 = arith.constant 0 : i32
    %c0_i32_0 = arith.constant 0 : i32
    %c0_i32_1 = arith.constant 0 : i32
    return %c0_i32, %c0_i32_0 : i32, i32
  }
  func.func @transform_6(%arg0: i32) -> (i32, i32) {
    %c0_i32 = arith.constant 0 : i32
    %c0_i32_0 = arith.constant 0 : i32
    %c0_i32_1 = arith.constant 0 : i32
    return %c0_i32, %c0_i32_0 : i32, i32
  }
  func.func @transform_7(%arg0: i32) -> (i32, i32) {
    %c0_i32 = arith.constant 0 : i32
    %c0_i32_0 = arith.constant 0 : i32
    %c0_i32_1 = arith.constant 0 : i32
    return %c0_i32, %c0_i32_0 : i32, i32
  }
  func.func @transform_8(%arg0: i32) -> (i32, i32) {
    %c0_i32 = arith.constant 0 : i32
    %c0_i32_0 = arith.constant 0 : i32
    %c0_i32_1 = arith.constant 0 : i32
    return %c0_i32, %c0_i32_0 : i32, i32
  }
  func.func @transform_9(%arg0: i32) -> (i32, i32, i32) {
    %c0_i32 = arith.constant 0 : i32
    %c0_i32_0 = arith.constant 0 : i32
    %c0_i32_1 = arith.constant 0 : i32
    %c0_i32_2 = arith.constant 0 : i32
    return %c0_i32, %c0_i32_0, %c0_i32_1 : i32, i32, i32
  }
  func.func @transform_10(%arg0: i32) -> (i32, i32) {
    %c0_i32 = arith.constant 0 : i32
    %c0_i32_0 = arith.constant 0 : i32
    %c0_i32_1 = arith.constant 0 : i32
    return %c0_i32, %c0_i32_0 : i32, i32
  }
  func.func @transform_11(%arg0: i32) -> (i32, i32) {
    %c0_i32 = arith.constant 0 : i32
    %c0_i32_0 = arith.constant 0 : i32
    %c0_i32_1 = arith.constant 0 : i32
    return %c0_i32, %c0_i32_0 : i32, i32
  }
  func.func @transform_12(%arg0: i32) -> (i32, i32) {
    %c0_i32 = arith.constant 0 : i32
    %c0_i32_0 = arith.constant 0 : i32
    %c0_i32_1 = arith.constant 0 : i32
    return %c0_i32, %c0_i32_0 : i32, i32
  }
  func.func @transform_13(%arg0: i32) -> (i32, i32) {
    %c0_i32 = arith.constant 0 : i32
    %c0_i32_0 = arith.constant 0 : i32
    return %arg0, %c0_i32 : i32, i32
  }
  func.func @transform_14(%arg0: i32) -> (i32, i32, i32) {
    %c0_i32 = arith.constant 0 : i32
    %c0_i32_0 = arith.constant 0 : i32
    %c0_i32_1 = arith.constant 0 : i32
    return %c0_i32, %arg0, %c0_i32_0 : i32, i32, i32
  }
  func.func @transform_15(%arg0: i32) -> (i32, i32) {
    %c0_i32 = arith.constant 0 : i32
    %c0_i32_0 = arith.constant 0 : i32
    return %arg0, %c0_i32 : i32, i32
  }
}

</mosaic_0001>

<llo_original>
// kernel: tpu_custom_call.1
$region0: #{tpu_custom_call.1}
  #allocation0 [shape = 'u32[]', space=smem, size = 0x4, offset = 0x4, fixed_abs, tag = 'smem constant byte address 0x4 - core index']
  #allocation1 [shape = 'u32[144,128]{1,0:T(1,128)}', space=vmem, size = 0x12000, scoped, tag = 'internal scratch']
  #allocation2 [shape = 'f32[1,1]{1,0:T(1,128)S(6)}', space=smem, size = 0x200, scoped, tag = 'scoped memory for tpu_custom_call.1']
  #allocation13 [shape = 's32[]', space=sflag, size = 0x4, offset = 0, fixed_abs, tag = 'sflag constant byte address 0x0 - dummy sync flag']
  #allocation15 [shape = 's32[]', space=sflag, size = 0x4, offset = 0, fixed_abs, tag = 'sflag constant byte address 0x0 - dummy sync flag']
  %s0 = inlined_call_operand.hbm [shape: bf16[3,256,128], index: 0, kind: input, shape index: {}]
  %s1 = inlined_call_operand.hbm [shape: bf16[3,128,128], index: 1, kind: input, shape index: {}]
  %s2 = inlined_call_operand.vmem [shape: f32[3,1,128], index: 2, kind: input, shape index: {}]
  %s3 = inlined_call_operand.vmem [shape: f32[3,1,128], index: 3, kind: input, shape index: {}]
  %s4 = inlined_call_operand.vmem [shape: f32[3,1,128], index: 4, kind: input, shape index: {}]
  %s5 = inlined_call_operand.vmem [shape: bf16[128,64], index: 5, kind: input, shape index: {}]
  %s6 = inlined_call_operand.vmem [shape: f32[1,64], index: 6, kind: input, shape index: {}]
  %s7 = inlined_call_operand.vmem [shape: f32[1,64], index: 7, kind: input, shape index: {}]
  %s8 = inlined_call_operand.<no memory space> [shape: f32[1,1], index: 8, kind: input, shape index: {}]
  %s9 = inlined_call_operand.hbm [shape: bf16[3,128,128], index: 9, kind: input, shape index: {}]
  %s10 = inlined_call_operand.vmem [shape: f32[1,128], index: 10, kind: input, shape index: {}]
  %s11 = inlined_call_operand.vmem [shape: bf16[128,3], index: 11, kind: input, shape index: {}]
  %s12 = inlined_call_operand.vmem [shape: f32[1,3], index: 12, kind: input, shape index: {}]
  %s13 = inlined_call_operand.hbm [shape: f32[256,128], index: 13, kind: output, shape index: {0}]
  %s14 = inlined_call_operand.hbm [shape: f32[3,256,128], index: 14, kind: output, shape index: {1}]
  %s15 = inlined_call_operand.hbm [shape: f32[256,128], index: 15, kind: output, shape index: {2}]
  %16 = xla_tuple %s13, %s14, %s15
  %s17 = sld [smem:[#allocation0]]
  $region113: #{tpu_custom_call.1} parent=0
    _
  %s19 = ssub.s32 1, %s17
  %s20 = scalar_select 0, %s19, %s17
  %21 = sst [smem:[#allocation2]] %s8
  $region1: #{tpu_custom_call.1} parent=0
    #allocation3 [shape = 'u8[196608]{0}', space=vmem, size = 0x30000, scoped, tag = 'input window, operand 0']
    #allocation4 [shape = 's32[2]{0}', space=sflag, size = 0x8, scoped, tag = 'scoped memory for tpu_custom_call.1']
    #allocation5 [shape = 's32[2]{0}', space=sflag, size = 0x8, scoped, tag = 'scoped memory for tpu_custom_call.1']
    #allocation6 [shape = 'u8[98304]{0}', space=vmem, size = 0x18000, scoped, tag = 'input window, operand 1, single buffered']
    #allocation7 [shape = 's32[1]{0}', space=sflag, size = 0x4, scoped, tag = 'scoped memory for tpu_custom_call.1']
    #allocation8 [shape = 'u8[98304]{0}', space=vmem, size = 0x18000, scoped, tag = 'input window, operand 9, single buffered']
    #allocation9 [shape = 'u8[131072]{0}', space=vmem, size = 0x20000, scoped, tag = 'output window, operand 0']
    #allocation10 [shape = 'u8[393216]{0}', space=vmem, size = 0x60000, scoped, tag = 'output window, operand 1']
    #allocation11 [shape = 's32[2]{0}', space=sflag, size = 0x8, scoped, tag = 'scoped memory for tpu_custom_call.1']
    #allocation12 [shape = 'u8[131072]{0}', space=vmem, size = 0x20000, scoped, tag = 'output window, operand 2']
    %22 = vsyncpa [#allocation4], 0
    %s23 = scalar_lea.sflag [#allocation4], 1
    %24 = vsyncpa %s23, 0
    %25 = vsyncpa [#allocation7], 0
    %26 = vsyncpa [#allocation5], 0
    %s27 = scalar_lea.sflag [#allocation5], 1
    %28 = vsyncpa %s27, 0
    %29 = vsyncpa [#allocation11], 0
    %s30 = scalar_lea.sflag [#allocation11], 1
    %31 = vsyncpa %s30, 0
    loop: start=0, step=1, limit=4
    $region2: #{tpu_custom_call.1} parent=1 // loop_pre_header
      _
    $region3: #{tpu_custom_call.1} parent=1 // loop_header
      %s33 = sphi 0, %s37
      %p34 = scmp.ge.s32.totalorder %s33, 4
      %s43 = sphi 0, %s45
      %s46 = sphi 0, %s43
      %s47 = sphi 0, %s46
      %s63 = sphi 0, %s47
      %s67 = sphi 0, %s67
      %s69 = sphi 0, %s67
      %s70 = sphi 0, %s69
      %s84 = sphi 0, %s70
      %s88 = sphi 0, %s88
      %s90 = sphi 0, %s88
      %s91 = sphi 0, %s90
      %s105 = sphi 0, %s91
      %s109 = sphi 0, %s109
      %s111 = sphi 0, %s109
      %s112 = sphi 0, %s111
      %s126 = sphi 0, %s112
      %s130 = sphi 0, %s130
      %s132 = sphi 0, %s130
      %s133 = sphi 0, %s132
      %s147 = sphi 0, %s133
      %s151 = sphi 0, %s151
      %s153 = sphi 0, %s151
      %s154 = sphi 0, %s153
      %s168 = sphi 0, %s154
      %s172 = sphi 0, %s172
      %s174 = sphi 0, %s172
      %s175 = sphi 0, %s174
      %s189 = sphi 0, %s175
      %s193 = sphi 0, %s193
      %s195 = sphi 0, %s193
      %s196 = sphi 0, %s195
      %s210 = sphi 0, %s196
      %s214 = sphi 0, %s214
      %s216 = sphi 0, %s214
      %s217 = sphi 0, %s216
      %s231 = sphi 0, %s217
      %s235 = sphi 0, %s235
      %s237 = sphi 0, %s235
      %s238 = sphi 0, %s237
      %s252 = sphi 0, %s238
      %s256 = sphi 0, %s256
      %s258 = sphi 0, %s256
      %s259 = sphi 0, %s258
      %s273 = sphi 0, %s259
      %s277 = sphi 0, %s277
      %s279 = sphi 0, %s277
      %s280 = sphi 0, %s279
      %s294 = sphi 0, %s280
      %s298 = sphi 0, %s298
      %s300 = sphi 0, %s298
      %s301 = sphi 0, %s300
      %s315 = sphi 0, %s301
      %s321 = sphi 0, %s323
      %s324 = sphi 0, %s321
      %s325 = sphi 0, %s324
      %s341 = sphi 0, %s325
      %s347 = sphi 0, %s349
      %s350 = sphi 0, %s347
      %s351 = sphi 0, %s350
      %s367 = sphi 0, %s351
      %s373 = sphi 0, %s375
      %s376 = sphi 0, %s373
      %s377 = sphi 0, %s376
      %s393 = sphi 0, %s377
    $region4: #{tpu_custom_call.1} parent=1 // loop_header_branch
      %36 = sbr.rel (%p34) target = $region8
    $region5: #{tpu_custom_call.1} parent=1 // loop_body
      %s38 = ssub.s32 %s33, 1
      %s39 = ssub.s32 %s33, 2
      %s40 = sadd.s32 %s33, 1
      %s41 = ssub.s32 %s33, %s40
      %p42 = scmp.eq.s32.totalorder %s41, 0
      %s44 = sadd.s32 %s43, 1
      %s45 = scalar_select %p42, %s43, %s44
      %p48 = pneg %p42
      %p49 = scmp.eq.s32.totalorder %s33, 1
      %p50 = por %p48, %p49
      %p51 = scmp.ne.s32.totalorder %s43, %s46
      %p52 = scmp.eq.s32.totalorder %s33, 0
      %p53 = por %p51, %p52
      %p54 = scmp.ne.s32.totalorder %s43, %s46
      %p55 = scmp.eq.s32.totalorder %s38, 1
      %p56 = por %p54, %p55
      %p57 = scmp.ne.s32.totalorder %s46, %s47
      %p58 = scmp.eq.s32.totalorder %s38, 0
      %p59 = por %p57, %p58
      %p60 = scmp.ne.s32.totalorder %s46, %s47
      %p61 = scmp.eq.s32.totalorder %s39, 1
      %p62 = por %p60, %p61
      %p64 = scmp.ne.s32.totalorder %s47, %s63
      %p65 = scmp.eq.s32.totalorder %s39, 0
      %p66 = por %p64, %p65
      %s68 = sadd.s32 %s67, 1
      %p71 = scmp.eq.s32.totalorder %s33, 1
      %p72 = scmp.ne.s32.totalorder %s67, %s69
      %p73 = scmp.eq.s32.totalorder %s33, 0
      %p74 = por %p72, %p73
      %p75 = scmp.ne.s32.totalorder %s67, %s69
      %p76 = scmp.eq.s32.totalorder %s38, 1
      %p77 = por %p75, %p76
      %p78 = scmp.ne.s32.totalorder %s69, %s70
      %p79 = scmp.eq.s32.totalorder %s38, 0
      %p80 = por %p78, %p79
      %p81 = scmp.ne.s32.totalorder %s69, %s70
      %p82 = scmp.eq.s32.totalorder %s39, 1
      %p83 = por %p81, %p82
      %p85 = scmp.ne.s32.totalorder %s70, %s84
      %p86 = scmp.eq.s32.totalorder %s39, 0
      %p87 = por %p85, %p86
      %s89 = sadd.s32 %s88, 1
      %p92 = scmp.eq.s32.totalorder %s33, 1
      %p93 = scmp.ne.s32.totalorder %s88, %s90
      %p94 = scmp.eq.s32.totalorder %s33, 0
      %p95 = por %p93, %p94
      %p96 = scmp.ne.s32.totalorder %s88, %s90
      %p97 = scmp.eq.s32.totalorder %s38, 1
      %p98 = por %p96, %p97
      %p99 = scmp.ne.s32.totalorder %s90, %s91
      %p100 = scmp.eq.s32.totalorder %s38, 0
      %p101 = por %p99, %p100
      %p102 = scmp.ne.s32.totalorder %s90, %s91
      %p103 = scmp.eq.s32.totalorder %s39, 1
      %p104 = por %p102, %p103
      %p106 = scmp.ne.s32.totalorder %s91, %s105
      %p107 = scmp.eq.s32.totalorder %s39, 0
      %p108 = por %p106, %p107
      %s110 = sadd.s32 %s109, 1
      %p113 = scmp.eq.s32.totalorder %s33, 1
      %p114 = scmp.ne.s32.totalorder %s109, %s111
      %p115 = scmp.eq.s32.totalorder %s33, 0
      %p116 = por %p114, %p115
      %p117 = scmp.ne.s32.totalorder %s109, %s111
      %p118 = scmp.eq.s32.totalorder %s38, 1
      %p119 = por %p117, %p118
      %p120 = scmp.ne.s32.totalorder %s111, %s112
      %p121 = scmp.eq.s32.totalorder %s38, 0
      %p122 = por %p120, %p121
      %p123 = scmp.ne.s32.totalorder %s111, %s112
      %p124 = scmp.eq.s32.totalorder %s39, 1
      %p125 = por %p123, %p124
      %p127 = scmp.ne.s32.totalorder %s112, %s126
      %p128 = scmp.eq.s32.totalorder %s39, 0
      %p129 = por %p127, %p128
      %s131 = sadd.s32 %s130, 1
      %p134 = scmp.eq.s32.totalorder %s33, 1
      %p135 = scmp.ne.s32.totalorder %s130, %s132
      %p136 = scmp.eq.s32.totalorder %s33, 0
      %p137 = por %p135, %p136
      %p138 = scmp.ne.s32.totalorder %s130, %s132
      %p139 = scmp.eq.s32.totalorder %s38, 1
      %p140 = por %p138, %p139
      %p141 = scmp.ne.s32.totalorder %s132, %s133
      %p142 = scmp.eq.s32.totalorder %s38, 0
      %p143 = por %p141, %p142
      %p144 = scmp.ne.s32.totalorder %s132, %s133
      %p145 = scmp.eq.s32.totalorder %s39, 1
      %p146 = por %p144, %p145
      %p148 = scmp.ne.s32.totalorder %s133, %s147
      %p149 = scmp.eq.s32.totalorder %s39, 0
      %p150 = por %p148, %p149
      %s152 = sadd.s32 %s151, 1
      %p155 = scmp.eq.s32.totalorder %s33, 1
      %p156 = scmp.ne.s32.totalorder %s151, %s153
      %p157 = scmp.eq.s32.totalorder %s33, 0
      %p158 = por %p156, %p157
      %p159 = scmp.ne.s32.totalorder %s151, %s153
      %p160 = scmp.eq.s32.totalorder %s38, 1
      %p161 = por %p159, %p160
      %p162 = scmp.ne.s32.totalorder %s153, %s154
      %p163 = scmp.eq.s32.totalorder %s38, 0
      %p164 = por %p162, %p163
      %p165 = scmp.ne.s32.totalorder %s153, %s154
      %p166 = scmp.eq.s32.totalorder %s39, 1
      %p167 = por %p165, %p166
      %p169 = scmp.ne.s32.totalorder %s154, %s168
      %p170 = scmp.eq.s32.totalorder %s39, 0
      %p171 = por %p169, %p170
      %s173 = sadd.s32 %s172, 1
      %p176 = scmp.eq.s32.totalorder %s33, 1
      %p177 = scmp.ne.s32.totalorder %s172, %s174
      %p178 = scmp.eq.s32.totalorder %s33, 0
      %p179 = por %p177, %p178
      %p180 = scmp.ne.s32.totalorder %s172, %s174
      %p181 = scmp.eq.s32.totalorder %s38, 1
      %p182 = por %p180, %p181
      %p183 = scmp.ne.s32.totalorder %s174, %s175
      %p184 = scmp.eq.s32.totalorder %s38, 0
      %p185 = por %p183, %p184
      %p186 = scmp.ne.s32.totalorder %s174, %s175
      %p187 = scmp.eq.s32.totalorder %s39, 1
      %p188 = por %p186, %p187
      %p190 = scmp.ne.s32.totalorder %s175, %s189
      %p191 = scmp.eq.s32.totalorder %s39, 0
      %p192 = por %p190, %p191
      %s194 = sadd.s32 %s193, 1
      %p197 = scmp.eq.s32.totalorder %s33, 1
      %p198 = scmp.ne.s32.totalorder %s193, %s195
      %p199 = scmp.eq.s32.totalorder %s33, 0
      %p200 = por %p198, %p199
      %p201 = scmp.ne.s32.totalorder %s193, %s195
      %p202 = scmp.eq.s32.totalorder %s38, 1
      %p203 = por %p201, %p202
      %p204 = scmp.ne.s32.totalorder %s195, %s196
      %p205 = scmp.eq.s32.totalorder %s38, 0
      %p206 = por %p204, %p205
      %p207 = scmp.ne.s32.totalorder %s195, %s196
      %p208 = scmp.eq.s32.totalorder %s39, 1
      %p209 = por %p207, %p208
      %p211 = scmp.ne.s32.totalorder %s196, %s210
      %p212 = scmp.eq.s32.totalorder %s39, 0
      %p213 = por %p211, %p212
      %s215 = sadd.s32 %s214, 1
      %p218 = scmp.eq.s32.totalorder %s33, 1
      %p219 = scmp.ne.s32.totalorder %s214, %s216
      %p220 = scmp.eq.s32.totalorder %s33, 0
      %p221 = por %p219, %p220
      %p222 = scmp.ne.s32.totalorder %s214, %s216
      %p223 = scmp.eq.s32.totalorder %s38, 1
      %p224 = por %p222, %p223
      %p225 = scmp.ne.s32.totalorder %s216, %s217
      %p226 = scmp.eq.s32.totalorder %s38, 0
      %p227 = por %p225, %p226
      %p228 = scmp.ne.s32.totalorder %s216, %s217
      %p229 = scmp.eq.s32.totalorder %s39, 1
      %p230 = por %p228, %p229
      %p232 = scmp.ne.s32.totalorder %s217, %s231
      %p233 = scmp.eq.s32.totalorder %s39, 0
      %p234 = por %p232, %p233
      %s236 = sadd.s32 %s235, 1
      %p239 = scmp.eq.s32.totalorder %s33, 1
      %p240 = scmp.ne.s32.totalorder %s235, %s237
      %p241 = scmp.eq.s32.totalorder %s33, 0
      %p242 = por %p240, %p241
      %p243 = scmp.ne.s32.totalorder %s235, %s237
      %p244 = scmp.eq.s32.totalorder %s38, 1
      %p245 = por %p243, %p244
      %p246 = scmp.ne.s32.totalorder %s237, %s238
      %p247 = scmp.eq.s32.totalorder %s38, 0
      %p248 = por %p246, %p247
      %p249 = scmp.ne.s32.totalorder %s237, %s238
      %p250 = scmp.eq.s32.totalorder %s39, 1
      %p251 = por %p249, %p250
      %p253 = scmp.ne.s32.totalorder %s238, %s252
      %p254 = scmp.eq.s32.totalorder %s39, 0
      %p255 = por %p253, %p254
      %s257 = sadd.s32 %s256, 1
      %p260 = scmp.eq.s32.totalorder %s33, 1
      %p261 = scmp.ne.s32.totalorder %s256, %s258
      %p262 = scmp.eq.s32.totalorder %s33, 0
      %p263 = por %p261, %p262
      %p264 = scmp.ne.s32.totalorder %s256, %s258
      %p265 = scmp.eq.s32.totalorder %s38, 1
      %p266 = por %p264, %p265
      %p267 = scmp.ne.s32.totalorder %s258, %s259
      %p268 = scmp.eq.s32.totalorder %s38, 0
      %p269 = por %p267, %p268
      %p270 = scmp.ne.s32.totalorder %s258, %s259
      %p271 = scmp.eq.s32.totalorder %s39, 1
      %p272 = por %p270, %p271
      %p274 = scmp.ne.s32.totalorder %s259, %s273
      %p275 = scmp.eq.s32.totalorder %s39, 0
      %p276 = por %p274, %p275
      %s278 = sadd.s32 %s277, 1
      %p281 = scmp.eq.s32.totalorder %s33, 1
      %p282 = scmp.ne.s32.totalorder %s277, %s279
      %p283 = scmp.eq.s32.totalorder %s33, 0
      %p284 = por %p282, %p283
      %p285 = scmp.ne.s32.totalorder %s277, %s279
      %p286 = scmp.eq.s32.totalorder %s38, 1
      %p287 = por %p285, %p286
      %p288 = scmp.ne.s32.totalorder %s279, %s280
      %p289 = scmp.eq.s32.totalorder %s38, 0
      %p290 = por %p288, %p289
      %p291 = scmp.ne.s32.totalorder %s279, %s280
      %p292 = scmp.eq.s32.totalorder %s39, 1
      %p293 = por %p291, %p292
      %p295 = scmp.ne.s32.totalorder %s280, %s294
      %p296 = scmp.eq.s32.totalorder %s39, 0
      %p297 = por %p295, %p296
      %s299 = sadd.s32 %s298, 1
      %p302 = scmp.eq.s32.totalorder %s33, 1
      %p303 = scmp.ne.s32.totalorder %s298, %s300
      %p304 = scmp.eq.s32.totalorder %s33, 0
      %p305 = por %p303, %p304
      %p306 = scmp.ne.s32.totalorder %s298, %s300
      %p307 = scmp.eq.s32.totalorder %s38, 1
      %p308 = por %p306, %p307
      %p309 = scmp.ne.s32.totalorder %s300, %s301
      %p310 = scmp.eq.s32.totalorder %s38, 0
      %p311 = por %p309, %p310
      %p312 = scmp.ne.s32.totalorder %s300, %s301
      %p313 = scmp.eq.s32.totalorder %s39, 1
      %p314 = por %p312, %p313
      %p316 = scmp.ne.s32.totalorder %s301, %s315
      %p317 = scmp.eq.s32.totalorder %s39, 0
      %p318 = por %p316, %p317
      %s319 = ssub.s32 %s33, %s40
      %p320 = scmp.eq.s32.totalorder %s319, 0
      %s322 = sadd.s32 %s321, 1
      %s323 = scalar_select %p320, %s321, %s322
      %p326 = pneg %p320
      %p327 = scmp.eq.s32.totalorder %s33, 1
      %p328 = por %p326, %p327
      %p329 = scmp.ne.s32.totalorder %s321, %s324
      %p330 = scmp.eq.s32.totalorder %s33, 0
      %p331 = por %p329, %p330
      %p332 = scmp.ne.s32.totalorder %s321, %s324
      %p333 = scmp.eq.s32.totalorder %s38, 1
      %p334 = por %p332, %p333
      %p335 = scmp.ne.s32.totalorder %s324, %s325
      %p336 = scmp.eq.s32.totalorder %s38, 0
      %p337 = por %p335, %p336
      %p338 = scmp.ne.s32.totalorder %s324, %s325
      %p339 = scmp.eq.s32.totalorder %s39, 1
      %p340 = por %p338, %p339
      %p342 = scmp.ne.s32.totalorder %s325, %s341
      %p343 = scmp.eq.s32.totalorder %s39, 0
      %p344 = por %p342, %p343
      %s345 = ssub.s32 %s33, %s40
      %p346 = scmp.eq.s32.totalorder %s345, 0
      %s348 = sadd.s32 %s347, 1
      %s349 = scalar_select %p346, %s347, %s348
      %p352 = pneg %p346
      %p353 = scmp.eq.s32.totalorder %s33, 1
      %p354 = por %p352, %p353
      %p355 = scmp.ne.s32.totalorder %s347, %s350
      %p356 = scmp.eq.s32.totalorder %s33, 0
      %p357 = por %p355, %p356
      %p358 = scmp.ne.s32.totalorder %s347, %s350
      %p359 = scmp.eq.s32.totalorder %s38, 1
      %p360 = por %p358, %p359
      %p361 = scmp.ne.s32.totalorder %s350, %s351
      %p362 = scmp.eq.s32.totalorder %s38, 0
      %p363 = por %p361, %p362
      %p364 = scmp.ne.s32.totalorder %s350, %s351
      %p365 = scmp.eq.s32.totalorder %s39, 1
      %p366 = por %p364, %p365
      %p368 = scmp.ne.s32.totalorder %s351, %s367
      %p369 = scmp.eq.s32.totalorder %s39, 0
      %p370 = por %p368, %p369
      %s371 = ssub.s32 %s33, %s40
      %p372 = scmp.eq.s32.totalorder %s371, 0
      %s374 = sadd.s32 %s373, 1
      %s375 = scalar_select %p372, %s373, %s374
      %p378 = pneg %p372
      %p379 = scmp.eq.s32.totalorder %s33, 1
      %p380 = por %p378, %p379
      %p381 = scmp.ne.s32.totalorder %s373, %s376
      %p382 = scmp.eq.s32.totalorder %s33, 0
      %p383 = por %p381, %p382
      %p384 = scmp.ne.s32.totalorder %s373, %s376
      %p385 = scmp.eq.s32.totalorder %s38, 1
      %p386 = por %p384, %p385
      %p387 = scmp.ne.s32.totalorder %s376, %s377
      %p388 = scmp.eq.s32.totalorder %s38, 0
      %p389 = por %p387, %p388
      %p390 = scmp.ne.s32.totalorder %s376, %s377
      %p391 = scmp.eq.s32.totalorder %s39, 1
      %p392 = por %p390, %p391
      %p394 = scmp.ne.s32.totalorder %s377, %s393
      %p395 = scmp.eq.s32.totalorder %s39, 0
      %p396 = por %p394, %p395
      %p397 = scmp.le.s32.totalorder 1, %s33
      %p398 = scmp.lt.s32.totalorder %s33, 3
      %p399 = pnand %p397, %p398
      %p400 = pneg %p399
      // Predicated region
      $region9: #{tpu_custom_call.1} parent=5 // pred_check
        _
      $region10: #{tpu_custom_call.1} parent=5 // pred_check_branch
        %402 = sbr.rel (%p399) target = $region12
      $region11: #{tpu_custom_call.1} parent=5 // pred_region
        %s403 = ssub.s32 %s33, 1
        // Predicated region
        $region13: #{tpu_custom_call.1} parent=11 // pred_check
          %p404 = pneg %p80
        $region14: #{tpu_custom_call.1} parent=11 // pred_check_branch
          %406 = sbr.rel (%p404) target = $region16
        $region15: #{tpu_custom_call.1} parent=11 // pred_region
          %s408 = ssub.s32 3072, 3072
          %409 = vsyncadd [#allocation7], %s408
          %s410 = sshll.u32 [#allocation6], 4
          %s411 = int_to_ptr.vmem [resolvable:$true] %s410
          %416 = dma.hbm_to_vmem [thread:$0]  %s1, 3072, %s411, [#allocation7], 64, 64, 4
        $region16: #{tpu_custom_call.1} parent=11 // pred_fallthru
          _
        // Predicated region
        $region17: #{tpu_custom_call.1} parent=11 // pred_check
          %p417 = pneg %p101
        $region18: #{tpu_custom_call.1} parent=11 // pred_check_branch
          %419 = sbr.rel (%p417) target = $region20
        $region19: #{tpu_custom_call.1} parent=11 // pred_region
          _
        $region20: #{tpu_custom_call.1} parent=11 // pred_fallthru
          _
        // Predicated region
        $region21: #{tpu_custom_call.1} parent=11 // pred_check
          %p420 = pneg %p122
        $region22: #{tpu_custom_call.1} parent=11 // pred_check_branch
          %422 = sbr.rel (%p420) target = $region24
        $region23: #{tpu_custom_call.1} parent=11 // pred_region
          _
        $region24: #{tpu_custom_call.1} parent=11 // pred_fallthru
          _
        // Predicated region
        $region25: #{tpu_custom_call.1} parent=11 // pred_check
          %p423 = pneg %p143
        $region26: #{tpu_custom_call.1} parent=11 // pred_check_branch
          %425 = sbr.rel (%p423) target = $region28
        $region27: #{tpu_custom_call.1} parent=11 // pred_region
          _
        $region28: #{tpu_custom_call.1} parent=11 // pred_fallthru
          _
        // Predicated region
        $region29: #{tpu_custom_call.1} parent=11 // pred_check
          %p426 = pneg %p164
        $region30: #{tpu_custom_call.1} parent=11 // pred_check_branch
          %428 = sbr.rel (%p426) target = $region32
        $region31: #{tpu_custom_call.1} parent=11 // pred_region
          _
        $region32: #{tpu_custom_call.1} parent=11 // pred_fallthru
          _
        // Predicated region
        $region33: #{tpu_custom_call.1} parent=11 // pred_check
          %p429 = pneg %p185
        $region34: #{tpu_custom_call.1} parent=11 // pred_check_branch
          %431 = sbr.rel (%p429) target = $region36
        $region35: #{tpu_custom_call.1} parent=11 // pred_region
          _
        $region36: #{tpu_custom_call.1} parent=11 // pred_fallthru
          _
        // Predicated region
        $region37: #{tpu_custom_call.1} parent=11 // pred_check
          %p432 = pneg %p206
        $region38: #{tpu_custom_call.1} parent=11 // pred_check_branch
          %434 = sbr.rel (%p432) target = $region40
        $region39: #{tpu_custom_call.1} parent=11 // pred_region
          _
        $region40: #{tpu_custom_call.1} parent=11 // pred_fallthru
          _
        // Predicated region
        $region41: #{tpu_custom_call.1} parent=11 // pred_check
          %p435 = pneg %p227
        $region42: #{tpu_custom_call.1} parent=11 // pred_check_branch
          %437 = sbr.rel (%p435) target = $region44
        $region43: #{tpu_custom_call.1} parent=11 // pred_region
          _
        $region44: #{tpu_custom_call.1} parent=11 // pred_fallthru
          _
        // Predicated region
        $region45: #{tpu_custom_call.1} parent=11 // pred_check
          %p438 = pneg %p248
        $region46: #{tpu_custom_call.1} parent=11 // pred_check_branch
          %440 = sbr.rel (%p438) target = $region48
        $region47: #{tpu_custom_call.1} parent=11 // pred_region
          %s442 = ssub.s32 3072, 3072
          %443 = vsyncadd [#allocation7], %s442
          %s444 = sshll.u32 [#allocation8], 4
          %s445 = int_to_ptr.vmem [resolvable:$true] %s444
          %450 = dma.hbm_to_vmem [thread:$0]  %s9, 3072, %s445, [#allocation7], 64, 64, 4
        $region48: #{tpu_custom_call.1} parent=11 // pred_fallthru
          _
        // Predicated region
        $region49: #{tpu_custom_call.1} parent=11 // pred_check
          %p451 = pneg %p269
        $region50: #{tpu_custom_call.1} parent=11 // pred_check_branch
          %453 = sbr.rel (%p451) target = $region52
        $region51: #{tpu_custom_call.1} parent=11 // pred_region
          _
        $region52: #{tpu_custom_call.1} parent=11 // pred_fallthru
          _
        // Predicated region
        $region53: #{tpu_custom_call.1} parent=11 // pred_check
          %p454 = pneg %p290
        $region54: #{tpu_custom_call.1} parent=11 // pred_check_branch
          %456 = sbr.rel (%p454) target = $region56
        $region55: #{tpu_custom_call.1} parent=11 // pred_region
          _
        $region56: #{tpu_custom_call.1} parent=11 // pred_fallthru
          _
        // Predicated region
        $region57: #{tpu_custom_call.1} parent=11 // pred_check
          %p457 = pneg %p311
        $region58: #{tpu_custom_call.1} parent=11 // pred_check_branch
          %459 = sbr.rel (%p457) target = $region60
        $region59: #{tpu_custom_call.1} parent=11 // pred_region
          _
        $region60: #{tpu_custom_call.1} parent=11 // pred_fallthru
          _
      $region12: #{tpu_custom_call.1} parent=5 // pred_fallthru
        _
      %p460 = scmp.lt.s32.totalorder %s33, 2
      // Predicated region
      $region61: #{tpu_custom_call.1} parent=5 // pred_check
        %p461 = pneg %p460
      $region62: #{tpu_custom_call.1} parent=5 // pred_check_branch
        %463 = sbr.rel (%p461) target = $region64
      $region63: #{tpu_custom_call.1} parent=5 // pred_region
        // Predicated region
        $region65: #{tpu_custom_call.1} parent=63 // pred_check
          %p464 = pneg %p53
        $region66: #{tpu_custom_call.1} parent=63 // pred_check_branch
          %466 = sbr.rel (%p464) target = $region68
        $region67: #{tpu_custom_call.1} parent=63 // pred_region
          #allocation14 [shape = 'u32[6]{0}', space=smem, size = 0x18, scoped, tag = 'DMA stride descriptor']
          %s467 = sand.u32 %s43, 1
          %s468 = scalar_lea.sflag [#allocation4], %s467
          %s469 = sand.u32 %s43, 1
          %s470 = smul.addr %s469, 192
          %s471 = scalar_lea.vmem [#allocation3], %s470
          %s472 = smul.u32 16, %s33
          %s474 = ssub.s32 3072, 3072
          %475 = vsyncadd %s468, %s474
          %s476 = smul.addr %s472, 64
          %s477 = scalar_lea.hbm %s0, %s476
          %s479 = sshll.u32 1, 14
          %s480 = sxor.u32 4294967295, %s479
          %s482 = sld [smem:[#allocation0]]
          %s483 = sadd.s32 2, %s482
          %s485 = sshll.u32 7, 26
          %s486 = sxor.u32 4294967295, %s485
          %s487 = sand.u32 0, %s486
          %s488 = sshll.u32 %s483, 26
          %s489 = sor.u32 %s487, %s488
          %s490 = sshll.u32 %s471, 4
          %s491 = int_to_ptr.vmem [resolvable:$true] %s490
          %497 = sst [smem:[#allocation14]] 2048
          %s498 = scalar_lea.smem [#allocation14], 1
          %499 = sst [smem:[%s498]] 1024
          %s500 = scalar_lea.smem [#allocation14], 2
          %501 = sst [smem:[%s500]] 16
          %s502 = scalar_lea.smem [#allocation14], 3
          %503 = sst [smem:[%s502]] 64
          %s504 = scalar_lea.smem [#allocation14], 4
          %505 = sst [smem:[%s504]] 64
          %s506 = scalar_lea.smem [#allocation14], 5
          %507 = sst [smem:[%s506]] 4
          %509 = dma.general %s477, 3072, %s491, %s468, 131072, [#allocation14], %s489, 0
        $region68: #{tpu_custom_call.1} parent=63 // pred_fallthru
          _
      $region64: #{tpu_custom_call.1} parent=5 // pred_fallthru
        _
      %p510 = scmp.le.s32.totalorder 1, %s33
      %p511 = scmp.lt.s32.totalorder %s33, 3
      %p512 = pnand %p510, %p511
      %p513 = pneg %p512
      // Predicated region
      $region69: #{tpu_custom_call.1} parent=5 // pred_check
        _
      $region70: #{tpu_custom_call.1} parent=5 // pred_check_branch
        %515 = sbr.rel (%p512) target = $region72
      $region71: #{tpu_custom_call.1} parent=5 // pred_region
        %s516 = ssub.s32 %s33, 1
        %s517 = sand.u32 %s46, 1
        %s518 = scalar_lea.sflag [#allocation4], %s517
        %s519 = sand.u32 %s46, 1
        %s520 = smul.addr %s519, 192
        %s521 = scalar_lea.vmem [#allocation3], %s520
        // Predicated region
        $region73: #{tpu_custom_call.1} parent=71 // pred_check
          %p522 = pneg %p59
        $region74: #{tpu_custom_call.1} parent=71 // pred_check_branch
          %524 = sbr.rel (%p522) target = $region76
        $region75: #{tpu_custom_call.1} parent=71 // pred_region
          %525 = dma.done %s518, 3072
        $region76: #{tpu_custom_call.1} parent=71 // pred_fallthru
          _
        // Predicated region
        $region77: #{tpu_custom_call.1} parent=71 // pred_check
          %p526 = pneg %p80
        $region78: #{tpu_custom_call.1} parent=71 // pred_check_branch
          %528 = sbr.rel (%p526) target = $region80
        $region79: #{tpu_custom_call.1} parent=71 // pred_region
          %529 = dma.done [#allocation7], 3072
        $region80: #{tpu_custom_call.1} parent=71 // pred_fallthru
          _
        // Predicated region
        $region81: #{tpu_custom_call.1} parent=71 // pred_check
          %p530 = pneg %p248
        $region82: #{tpu_custom_call.1} parent=71 // pred_check_branch
          %532 = sbr.rel (%p530) target = $region84
        $region83: #{tpu_custom_call.1} parent=71 // pred_region
          %533 = dma.done [#allocation7], 3072
        $region84: #{tpu_custom_call.1} parent=71 // pred_fallthru
          _
        %s534 = sand.u32 %s46, 1
        %s535 = scalar_lea.sflag [#allocation4], %s534
        %s536 = sand.u32 %s46, 1
        %s537 = smul.addr %s536, 192
        %s538 = scalar_lea.vmem [#allocation3], %s537
        %p539 = pneg %p59
        %p540 = pneg %p56
        %p541 = pneg %p80
        %p542 = pneg %p77
        %p543 = pneg %p101
        %p544 = pneg %p98
        %p545 = pneg %p122
        %p546 = pneg %p119
        %p547 = pneg %p143
        %p548 = pneg %p140
        %p549 = pneg %p164
        %p550 = pneg %p161
        %p551 = pneg %p185
        %p552 = pneg %p182
        %p553 = pneg %p206
        %p554 = pneg %p203
        %p555 = pneg %p227
        %p556 = pneg %p224
        %p557 = pneg %p248
        %p558 = pneg %p245
        %p559 = pneg %p269
        %p560 = pneg %p266
        %p561 = pneg %p290
        %p562 = pneg %p287
        %p563 = pneg %p311
        %p564 = pneg %p308
        %p565 = pneg %p337
        %p566 = pneg %p334
        %s567 = sand.u32 %s324, 1
        %s568 = scalar_lea.sflag [#allocation5], %s567
        %s569 = sand.u32 %s324, 1
        %s570 = smul.addr %s569, 128
        %s571 = scalar_lea.vmem [#allocation9], %s570
        %p572 = pneg %p363
        %p573 = pneg %p360
        %s574 = sand.u32 %s38, 1
        %s575 = scalar_lea.sflag [#allocation11], %s574
        %s576 = sand.u32 %s350, 1
        %s577 = smul.addr %s576, 384
        %s578 = scalar_lea.vmem [#allocation10], %s577
        %p579 = pneg %p389
        %p580 = pneg %p386
        %s581 = sand.u32 %s38, 1
        %s582 = scalar_lea.sflag [#allocation11], %s581
        %s583 = sand.u32 %s376, 1
        %s584 = smul.addr %s583, 128
        %s585 = scalar_lea.vmem [#allocation12], %s584
        %s586 = smul.u32 16, %s38
        %s587 = smul.u32 16, %s38
        %s588 = smul.u32 16, %s38
        %s589 = smul.u32 16, %s38
        %v591 = vld [vmem:[%s521] sm:$0xf]
        %v592 = vld [vmem:[%s521 + $0x4] sm:$0xf]
        %v593 = vld [vmem:[%s521 + $0x8] sm:$0xf]
        %v594 = vld [vmem:[%s521 + $0xc] sm:$0xf]
        %v595 = vld [vmem:[%s521 + $0x10] sm:$0xf]
        %v596 = vld [vmem:[%s521 + $0x14] sm:$0xf]
        %v597 = vld [vmem:[%s521 + $0x18] sm:$0xf]
        %v598 = vld [vmem:[%s521 + $0x1c] sm:$0xf]
        %v599 = vld [vmem:[%s521 + $0x20] sm:$0xf]
        %v600 = vld [vmem:[%s521 + $0x24] sm:$0xf]
        %v601 = vld [vmem:[%s521 + $0x28] sm:$0xf]
        %v602 = vld [vmem:[%s521 + $0x2c] sm:$0xf]
        %v603 = vld [vmem:[%s521 + $0x30] sm:$0xf]
        %v604 = vld [vmem:[%s521 + $0x34] sm:$0xf]
        %v605 = vld [vmem:[%s521 + $0x38] sm:$0xf]
        %v606 = vld [vmem:[%s521 + $0x3c] sm:$0xf]
        %v607 = vld [vmem:[#allocation6] sm:$0xf]
        %v608 = vld [vmem:[#allocation6 + $0x4] sm:$0xf]
        %v609 = vld [vmem:[#allocation6 + $0x8] sm:$0xf]
        %v610 = vld [vmem:[#allocation6 + $0xc] sm:$0xf]
        %v611 = vld [vmem:[#allocation6 + $0x10] sm:$0xf]
        %v612 = vld [vmem:[#allocation6 + $0x14] sm:$0xf]
        %v613 = vld [vmem:[#allocation6 + $0x18] sm:$0xf]
        %v614 = vld [vmem:[#allocation6 + $0x1c] sm:$0xf]
        %v615 = vld [vmem:[#allocation6 + $0x20] sm:$0xf]
        %v616 = vld [vmem:[#allocation6 + $0x24] sm:$0xf]
        %v617 = vld [vmem:[#allocation6 + $0x28] sm:$0xf]
        %v618 = vld [vmem:[#allocation6 + $0x2c] sm:$0xf]
        %v619 = vld [vmem:[#allocation6 + $0x30] sm:$0xf]
        %v620 = vld [vmem:[#allocation6 + $0x34] sm:$0xf]
        %v621 = vld [vmem:[#allocation6 + $0x38] sm:$0xf]
        %v622 = vld [vmem:[#allocation6 + $0x3c] sm:$0xf]
        %v623 = vld [vmem:[%s2] sm:$0x1]
        %v625 = vlaneseq
        %v626 = vshrl.u32 %v625, 7
        %v627 = vsub.s32 0, %v626
        %v628 = vrot.slane %v623, %v627
        %v646 = vunpack.c.l.b16 %v591
        %v647 = vunpack.c.l.b16 %v592
        %v648 = vunpack.c.l.b16 %v593
        %v649 = vunpack.c.l.b16 %v594
        %v650 = vunpack.c.l.b16 %v595
        %v651 = vunpack.c.l.b16 %v596
        %v652 = vunpack.c.l.b16 %v597
        %v653 = vunpack.c.l.b16 %v598
        %v654 = vunpack.c.l.b16 %v599
        %v655 = vunpack.c.l.b16 %v600
        %v656 = vunpack.c.l.b16 %v601
        %v657 = vunpack.c.l.b16 %v602
        %v658 = vunpack.c.l.b16 %v603
        %v659 = vunpack.c.l.b16 %v604
        %v660 = vunpack.c.l.b16 %v605
        %v661 = vunpack.c.l.b16 %v606
        %v662 = vpack.c.b16 %v647, %v646
        %v663 = vpack.c.b16 %v649, %v648
        %v664 = vpack.c.b16 %v651, %v650
        %v665 = vpack.c.b16 %v653, %v652
        %v666 = vpack.c.b16 %v655, %v654
        %v667 = vpack.c.b16 %v657, %v656
        %v668 = vpack.c.b16 %v659, %v658
        %v669 = vpack.c.b16 %v661, %v660
        %v694 = vunpack.c.l.b16 %v607
        %v695 = vunpack.c.l.b16 %v608
        %v696 = vunpack.c.l.b16 %v609
        %v697 = vunpack.c.l.b16 %v610
        %v698 = vunpack.c.l.b16 %v611
        %v699 = vunpack.c.l.b16 %v612
        %v700 = vunpack.c.l.b16 %v613
        %v701 = vunpack.c.l.b16 %v614
        %v702 = vunpack.c.l.b16 %v615
        %v703 = vunpack.c.l.b16 %v616
        %v704 = vunpack.c.l.b16 %v617
        %v705 = vunpack.c.l.b16 %v618
        %v706 = vunpack.c.l.b16 %v619
        %v707 = vunpack.c.l.b16 %v620
        %v708 = vunpack.c.l.b16 %v621
        %v709 = vunpack.c.l.b16 %v622
        %v710 = vpack.c.b16 %v695, %v694
        %v711 = vpack.c.b16 %v697, %v696
        %v712 = vpack.c.b16 %v699, %v698
        %v713 = vpack.c.b16 %v701, %v700
        %v714 = vpack.c.b16 %v703, %v702
        %v715 = vpack.c.b16 %v705, %v704
        %v716 = vpack.c.b16 %v707, %v706
        %v717 = vpack.c.b16 %v709, %v708
        %726 = vmatprep.subr.bf16.mxu0 0
        %727 = vmatpush1.bf16.msra.mxu0 %v717
        %728 = vmatprep.subr.bf16.mxu0 0
        %729 = vmatpush1.bf16.msra.mxu0 %v716
        %730 = vmatprep.subr.bf16.mxu0 0
        %731 = vmatpush1.bf16.msra.mxu0 %v715
        %732 = vmatprep.subr.bf16.mxu0 0
        %733 = vmatpush1.bf16.msra.mxu0 %v714
        %734 = vmatprep.subr.bf16.mxu0 0
        %735 = vmatpush1.bf16.msra.mxu0 %v713
        %736 = vmatprep.subr.bf16.mxu0 0
        %737 = vmatpush1.bf16.msra.mxu0 %v712
        %738 = vmatprep.subr.bf16.mxu0 0
        %739 = vmatpush1.bf16.msra.mxu0 %v711
        %740 = vmatprep.subr.bf16.mxu0 0
        %741 = vmatpush1.bf16.msra.mxu0 %v710
        %742 = vmatprep.subr.bf16.mxu0 0
        %743 = vmatpush2.bf16.msra.mxu0 0
        %744 = vmatprep.subr.bf16.mxu0 0
        %745 = vmatpush2.bf16.msra.mxu0 0
        %746 = vmatprep.subr.bf16.mxu0 0
        %747 = vmatpush2.bf16.msra.mxu0 0
        %748 = vmatprep.subr.bf16.mxu0 0
        %749 = vmatpush2.bf16.msra.mxu0 0
        %750 = vmatprep.subr.bf16.mxu0 0
        %751 = vmatpush2.bf16.msra.mxu0 0
        %752 = vmatprep.subr.bf16.mxu0 0
        %753 = vmatpush2.bf16.msra.mxu0 0
        %754 = vmatprep.subr.bf16.mxu0 0
        %755 = vmatpush2.bf16.msra.mxu0 0
        %756 = vmatprep.subr.bf16.mxu0 0
        %757 = vmatpush2.bf16.msra.mxu0 0
        %758 = vmatprep.mubr.bf16.mxu0 0
        %759 = vmatmul.mubr.bf16.gmra.mxu0 %v662
        %v760 = vpop.f32.mrf.mxu0
        %v761 = vadd.f32 %v628, %v760
        %v762 = vpop.f32.mrf.mxu0
        %v763 = vpop.f32.mrf.mxu0
        %v764 = vadd.f32 %v628, %v763
        %v765 = vpop.f32.mrf.mxu0
        %766 = vmatprep.mubr.bf16.mxu0 0
        %767 = vmatmul.mubr.bf16.gmra.mxu0 %v663
        %v768 = vpop.f32.mrf.mxu0
        %v769 = vadd.f32 %v628, %v768
        %v770 = vpop.f32.mrf.mxu0
        %v771 = vpop.f32.mrf.mxu0
        %v772 = vadd.f32 %v628, %v771
        %v773 = vpop.f32.mrf.mxu0
        %774 = vmatprep.mubr.bf16.mxu0 0
        %775 = vmatmul.mubr.bf16.gmra.mxu0 %v664
        %v776 = vpop.f32.mrf.mxu0
        %v777 = vadd.f32 %v628, %v776
        %v778 = vpop.f32.mrf.mxu0
        %v779 = vpop.f32.mrf.mxu0
        %v780 = vadd.f32 %v628, %v779
        %v781 = vpop.f32.mrf.mxu0
        %782 = vmatprep.mubr.bf16.mxu0 0
        %783 = vmatmul.mubr.bf16.gmra.mxu0 %v665
        %v784 = vpop.f32.mrf.mxu0
        %v785 = vadd.f32 %v628, %v784
        %v786 = vpop.f32.mrf.mxu0
        %v787 = vpop.f32.mrf.mxu0
        %v788 = vadd.f32 %v628, %v787
        %v789 = vpop.f32.mrf.mxu0
        %790 = vmatprep.mubr.bf16.mxu0 0
        %791 = vmatmul.mubr.bf16.gmra.mxu0 %v666
        %v792 = vpop.f32.mrf.mxu0
        %v793 = vadd.f32 %v628, %v792
        %v794 = vpop.f32.mrf.mxu0
        %v795 = vpop.f32.mrf.mxu0
        %v796 = vadd.f32 %v628, %v795
        %v797 = vpop.f32.mrf.mxu0
        %798 = vmatprep.mubr.bf16.mxu0 0
        %799 = vmatmul.mubr.bf16.gmra.mxu0 %v667
        %v800 = vpop.f32.mrf.mxu0
        %v801 = vadd.f32 %v628, %v800
        %v802 = vpop.f32.mrf.mxu0
        %v803 = vpop.f32.mrf.mxu0
        %v804 = vadd.f32 %v628, %v803
        %v805 = vpop.f32.mrf.mxu0
        %806 = vmatprep.mubr.bf16.mxu0 0
        %807 = vmatmul.mubr.bf16.gmra.mxu0 %v668
        %v808 = vpop.f32.mrf.mxu0
        %v809 = vadd.f32 %v628, %v808
        %v810 = vpop.f32.mrf.mxu0
        %v811 = vpop.f32.mrf.mxu0
        %v812 = vadd.f32 %v628, %v811
        %v813 = vpop.f32.mrf.mxu0
        %814 = vmatprep.mubr.bf16.mxu0 0
        %815 = vmatmul.mubr.bf16.gmra.mxu0 %v669
        %v816 = vpop.f32.mrf.mxu0
        %v817 = vadd.f32 %v628, %v816
        %v818 = vpop.f32.mrf.mxu0
        %v819 = vpop.f32.mrf.mxu0
        %v820 = vadd.f32 %v628, %v819
        %v821 = vpop.f32.mrf.mxu0
        %822 = vdwg.mxu0
        %823 = vadd.xlane.f32.xlu0 %v761
        %v824 = vpop.xlane.xlu0 %823
        %825 = vadd.xlane.f32.xlu0 %v764
        %v826 = vpop.xlane.xlu0 %825
        %827 = vadd.xlane.f32.xlu0 %v769
        %v828 = vpop.xlane.xlu0 %827
        %829 = vadd.xlane.f32.xlu0 %v772
        %v830 = vpop.xlane.xlu0 %829
        %831 = vadd.xlane.f32.xlu0 %v777
        %v832 = vpop.xlane.xlu0 %831
        %833 = vadd.xlane.f32.xlu0 %v780
        %v834 = vpop.xlane.xlu0 %833
        %835 = vadd.xlane.f32.xlu0 %v785
        %v836 = vpop.xlane.xlu0 %835
        %837 = vadd.xlane.f32.xlu0 %v788
        %v838 = vpop.xlane.xlu0 %837
        %839 = vadd.xlane.f32.xlu0 %v793
        %v840 = vpop.xlane.xlu0 %839
        %841 = vadd.xlane.f32.xlu0 %v796
        %v842 = vpop.xlane.xlu0 %841
        %843 = vadd.xlane.f32.xlu0 %v801
        %v844 = vpop.xlane.xlu0 %843
        %845 = vadd.xlane.f32.xlu0 %v804
        %v846 = vpop.xlane.xlu0 %845
        %847 = vadd.xlane.f32.xlu0 %v809
        %v848 = vpop.xlane.xlu0 %847
        %849 = vadd.xlane.f32.xlu0 %v812
        %v850 = vpop.xlane.xlu0 %849
        %851 = vadd.xlane.f32.xlu0 %v817
        %v852 = vpop.xlane.xlu0 %851
        %853 = vadd.xlane.f32.xlu0 %v820
        %v854 = vpop.xlane.xlu0 %853
        %v855 = vrcp.pop 128.0
        %v856 = vmul.f32 %v824, %v855
        %v857 = vmul.f32 %v826, %v855
        %v858 = vmul.f32 %v828, %v855
        %v859 = vmul.f32 %v830, %v855
        %v860 = vmul.f32 %v832, %v855
        %v861 = vmul.f32 %v834, %v855
        %v862 = vmul.f32 %v836, %v855
        %v863 = vmul.f32 %v838, %v855
        %v864 = vmul.f32 %v840, %v855
        %v865 = vmul.f32 %v842, %v855
        %v866 = vmul.f32 %v844, %v855
        %v867 = vmul.f32 %v846, %v855
        %v868 = vmul.f32 %v848, %v855
        %v869 = vmul.f32 %v850, %v855
        %v870 = vmul.f32 %v852, %v855
        %v871 = vmul.f32 %v854, %v855
        %v872 = vsub.f32 %v761, %v856
        %v873 = vsub.f32 %v764, %v857
        %v874 = vsub.f32 %v769, %v858
        %v875 = vsub.f32 %v772, %v859
        %v876 = vsub.f32 %v777, %v860
        %v877 = vsub.f32 %v780, %v861
        %v878 = vsub.f32 %v785, %v862
        %v879 = vsub.f32 %v788, %v863
        %v880 = vsub.f32 %v793, %v864
        %v881 = vsub.f32 %v796, %v865
        %v882 = vsub.f32 %v801, %v866
        %v883 = vsub.f32 %v804, %v867
        %v884 = vsub.f32 %v809, %v868
        %v885 = vsub.f32 %v812, %v869
        %v886 = vsub.f32 %v817, %v870
        %v887 = vsub.f32 %v820, %v871
        %v888 = vmul.f32 %v872, %v872
        %v889 = vmul.f32 %v873, %v873
        %v890 = vmul.f32 %v874, %v874
        %v891 = vmul.f32 %v875, %v875
        %v892 = vmul.f32 %v876, %v876
        %v893 = vmul.f32 %v877, %v877
        %v894 = vmul.f32 %v878, %v878
        %v895 = vmul.f32 %v879, %v879
        %v896 = vmul.f32 %v880, %v880
        %v897 = vmul.f32 %v881, %v881
        %v898 = vmul.f32 %v882, %v882
        %v899 = vmul.f32 %v883, %v883
        %v900 = vmul.f32 %v884, %v884
        %v901 = vmul.f32 %v885, %v885
        %v902 = vmul.f32 %v886, %v886
        %v903 = vmul.f32 %v887, %v887
        %904 = vadd.xlane.f32.xlu0 %v888
        %v905 = vpop.xlane.xlu0 %904
        %906 = vadd.xlane.f32.xlu0 %v889
        %v907 = vpop.xlane.xlu0 %906
        %908 = vadd.xlane.f32.xlu0 %v890
        %v909 = vpop.xlane.xlu0 %908
        %910 = vadd.xlane.f32.xlu0 %v891
        %v911 = vpop.xlane.xlu0 %910
        %912 = vadd.xlane.f32.xlu0 %v892
        %v913 = vpop.xlane.xlu0 %912
        %914 = vadd.xlane.f32.xlu0 %v893
        %v915 = vpop.xlane.xlu0 %914
        %916 = vadd.xlane.f32.xlu0 %v894
        %v917 = vpop.xlane.xlu0 %916
        %918 = vadd.xlane.f32.xlu0 %v895
        %v919 = vpop.xlane.xlu0 %918
        %920 = vadd.xlane.f32.xlu0 %v896
        %v921 = vpop.xlane.xlu0 %920
        %922 = vadd.xlane.f32.xlu0 %v897
        %v923 = vpop.xlane.xlu0 %922
        %924 = vadd.xlane.f32.xlu0 %v898
        %v925 = vpop.xlane.xlu0 %924
        %926 = vadd.xlane.f32.xlu0 %v899
        %v927 = vpop.xlane.xlu0 %926
        %928 = vadd.xlane.f32.xlu0 %v900
        %v929 = vpop.xlane.xlu0 %928
        %930 = vadd.xlane.f32.xlu0 %v901
        %v931 = vpop.xlane.xlu0 %930
        %932 = vadd.xlane.f32.xlu0 %v902
        %v933 = vpop.xlane.xlu0 %932
        %934 = vadd.xlane.f32.xlu0 %v903
        %v935 = vpop.xlane.xlu0 %934
        %v936 = vmul.f32 %v905, %v855
        %v937 = vmul.f32 %v907, %v855
        %v938 = vmul.f32 %v909, %v855
        %v939 = vmul.f32 %v911, %v855
        %v940 = vmul.f32 %v913, %v855
        %v941 = vmul.f32 %v915, %v855
        %v942 = vmul.f32 %v917, %v855
        %v943 = vmul.f32 %v919, %v855
        %v944 = vmul.f32 %v921, %v855
        %v945 = vmul.f32 %v923, %v855
        %v946 = vmul.f32 %v925, %v855
        %v947 = vmul.f32 %v927, %v855
        %v948 = vmul.f32 %v929, %v855
        %v949 = vmul.f32 %v931, %v855
        %v950 = vmul.f32 %v933, %v855
        %v951 = vmul.f32 %v935, %v855
        %v952 = vadd.f32 %v936, 1e-05
        %v953 = vadd.f32 %v937, 1e-05
        %v954 = vadd.f32 %v938, 1e-05
        %v955 = vadd.f32 %v939, 1e-05
        %v956 = vadd.f32 %v940, 1e-05
        %v957 = vadd.f32 %v941, 1e-05
        %v958 = vadd.f32 %v942, 1e-05
        %v959 = vadd.f32 %v943, 1e-05
        %v960 = vadd.f32 %v944, 1e-05
        %v961 = vadd.f32 %v945, 1e-05
        %v962 = vadd.f32 %v946, 1e-05
        %v963 = vadd.f32 %v947, 1e-05
        %v964 = vadd.f32 %v948, 1e-05
        %v965 = vadd.f32 %v949, 1e-05
        %v966 = vadd.f32 %v950, 1e-05
        %v967 = vadd.f32 %v951, 1e-05
        %v968 = vrsqrt.pop %v952
        %v969 = vrsqrt.pop %v953
        %v970 = vrsqrt.pop %v954
        %v971 = vrsqrt.pop %v955
        %v972 = vrsqrt.pop %v956
        %v973 = vrsqrt.pop %v957
        %v974 = vrsqrt.pop %v958
        %v975 = vrsqrt.pop %v959
        %v976 = vrsqrt.pop %v960
        %v977 = vrsqrt.pop %v961
        %v978 = vrsqrt.pop %v962
        %v979 = vrsqrt.pop %v963
        %v980 = vrsqrt.pop %v964
        %v981 = vrsqrt.pop %v965
        %v982 = vrsqrt.pop %v966
        %v983 = vrsqrt.pop %v967
        %v984 = vmul.f32 %v872, %v968
        %v985 = vmul.f32 %v873, %v969
        %v986 = vmul.f32 %v874, %v970
        %v987 = vmul.f32 %v875, %v971
        %v988 = vmul.f32 %v876, %v972
        %v989 = vmul.f32 %v877, %v973
        %v990 = vmul.f32 %v878, %v974
        %v991 = vmul.f32 %v879, %v975
        %v992 = vmul.f32 %v880, %v976
        %v993 = vmul.f32 %v881, %v977
        %v994 = vmul.f32 %v882, %v978
        %v995 = vmul.f32 %v883, %v979
        %v996 = vmul.f32 %v884, %v980
        %v997 = vmul.f32 %v885, %v981
        %v998 = vmul.f32 %v886, %v982
        %v999 = vmul.f32 %v887, %v983
        %v1000 = vld [vmem:[%s3] sm:$0x1]
        %v1002 = vlaneseq
        %v1003 = vshrl.u32 %v1002, 7
        %v1004 = vsub.s32 0, %v1003
        %v1005 = vrot.slane %v1000, %v1004
        %v1007 = vmul.f32 %v984, %v1005
        %v1008 = vmul.f32 %v985, %v1005
        %v1009 = vmul.f32 %v986, %v1005
        %v1010 = vmul.f32 %v987, %v1005
        %v1011 = vmul.f32 %v988, %v1005
        %v1012 = vmul.f32 %v989, %v1005
        %v1013 = vmul.f32 %v990, %v1005
        %v1014 = vmul.f32 %v991, %v1005
        %v1015 = vmul.f32 %v992, %v1005
        %v1016 = vmul.f32 %v993, %v1005
        %v1017 = vmul.f32 %v994, %v1005
        %v1018 = vmul.f32 %v995, %v1005
        %v1019 = vmul.f32 %v996, %v1005
        %v1020 = vmul.f32 %v997, %v1005
        %v1021 = vmul.f32 %v998, %v1005
        %v1022 = vmul.f32 %v999, %v1005
        %v1023 = vld [vmem:[%s4] sm:$0x1]
        %v1025 = vlaneseq
        %v1026 = vshrl.u32 %v1025, 7
        %v1027 = vsub.s32 0, %v1026
        %v1028 = vrot.slane %v1023, %v1027
        %v1030 = vadd.f32 %v1007, %v1028
        %v1031 = vadd.f32 %v1008, %v1028
        %v1032 = vadd.f32 %v1009, %v1028
        %v1033 = vadd.f32 %v1010, %v1028
        %v1034 = vadd.f32 %v1011, %v1028
        %v1035 = vadd.f32 %v1012, %v1028
        %v1036 = vadd.f32 %v1013, %v1028
        %v1037 = vadd.f32 %v1014, %v1028
        %v1038 = vadd.f32 %v1015, %v1028
        %v1039 = vadd.f32 %v1016, %v1028
        %v1040 = vadd.f32 %v1017, %v1028
        %v1041 = vadd.f32 %v1018, %v1028
        %v1042 = vadd.f32 %v1019, %v1028
        %v1043 = vadd.f32 %v1020, %v1028
        %v1044 = vadd.f32 %v1021, %v1028
        %v1045 = vadd.f32 %v1022, %v1028
        %v1046 = vmax.f32 %v1030, 0.0
        %v1047 = vmax.f32 %v1031, 0.0
        %v1048 = vmax.f32 %v1032, 0.0
        %v1049 = vmax.f32 %v1033, 0.0
        %v1050 = vmax.f32 %v1034, 0.0
        %v1051 = vmax.f32 %v1035, 0.0
        %v1052 = vmax.f32 %v1036, 0.0
        %v1053 = vmax.f32 %v1037, 0.0
        %v1054 = vmax.f32 %v1038, 0.0
        %v1055 = vmax.f32 %v1039, 0.0
        %v1056 = vmax.f32 %v1040, 0.0
        %v1057 = vmax.f32 %v1041, 0.0
        %v1058 = vmax.f32 %v1042, 0.0
        %v1059 = vmax.f32 %v1043, 0.0
        %v1060 = vmax.f32 %v1044, 0.0
        %v1061 = vmax.f32 %v1045, 0.0
        %1062 = vst [vmem:[%s578] sm:$0xff] %v1046
        %1063 = vst [vmem:[%s578 + $0x8] sm:$0xff] %v1047
        %1064 = vst [vmem:[%s578 + $0x10] sm:$0xff] %v1048
        %1065 = vst [vmem:[%s578 + $0x18] sm:$0xff] %v1049
        %1066 = vst [vmem:[%s578 + $0x20] sm:$0xff] %v1050
        %1067 = vst [vmem:[%s578 + $0x28] sm:$0xff] %v1051
        %1068 = vst [vmem:[%s578 + $0x30] sm:$0xff] %v1052
        %1069 = vst [vmem:[%s578 + $0x38] sm:$0xff] %v1053
        %1070 = vst [vmem:[%s578 + $0x40] sm:$0xff] %v1054
        %1071 = vst [vmem:[%s578 + $0x48] sm:$0xff] %v1055
        %1072 = vst [vmem:[%s578 + $0x50] sm:$0xff] %v1056
        %1073 = vst [vmem:[%s578 + $0x58] sm:$0xff] %v1057
        %1074 = vst [vmem:[%s578 + $0x60] sm:$0xff] %v1058
        %1075 = vst [vmem:[%s578 + $0x68] sm:$0xff] %v1059
        %1076 = vst [vmem:[%s578 + $0x70] sm:$0xff] %v1060
        %1077 = vst [vmem:[%s578 + $0x78] sm:$0xff] %v1061
        %v1078 = vpack.c.bf16 %v1047, %v1046
        %v1079 = vpack.c.bf16 %v1049, %v1048
        %v1080 = vpack.c.bf16 %v1051, %v1050
        %v1081 = vpack.c.bf16 %v1053, %v1052
        %v1082 = vpack.c.bf16 %v1055, %v1054
        %v1083 = vpack.c.bf16 %v1057, %v1056
        %v1084 = vpack.c.bf16 %v1059, %v1058
        %v1085 = vpack.c.bf16 %v1061, %v1060
        %v1086 = vld [vmem:[#allocation8] sm:$0xf]
        %v1087 = vld [vmem:[#allocation8 + $0x4] sm:$0xf]
        %v1088 = vld [vmem:[#allocation8 + $0x8] sm:$0xf]
        %v1089 = vld [vmem:[#allocation8 + $0xc] sm:$0xf]
        %v1090 = vld [vmem:[#allocation8 + $0x10] sm:$0xf]
        %v1091 = vld [vmem:[#allocation8 + $0x14] sm:$0xf]
        %v1092 = vld [vmem:[#allocation8 + $0x18] sm:$0xf]
        %v1093 = vld [vmem:[#allocation8 + $0x1c] sm:$0xf]
        %v1094 = vld [vmem:[#allocation8 + $0x20] sm:$0xf]
        %v1095 = vld [vmem:[#allocation8 + $0x24] sm:$0xf]
        %v1096 = vld [vmem:[#allocation8 + $0x28] sm:$0xf]
        %v1097 = vld [vmem:[#allocation8 + $0x2c] sm:$0xf]
        %v1098 = vld [vmem:[#allocation8 + $0x30] sm:$0xf]
        %v1099 = vld [vmem:[#allocation8 + $0x34] sm:$0xf]
        %v1100 = vld [vmem:[#allocation8 + $0x38] sm:$0xf]
        %v1101 = vld [vmem:[#allocation8 + $0x3c] sm:$0xf]
        %s1102 = scalar_lea.vmem %s521, 64 [#allocation3]
        %v1103 = vld [vmem:[%s1102] sm:$0xf]
        %v1104 = vld [vmem:[%s1102 + $0x4] sm:$0xf]
        %v1105 = vld [vmem:[%s1102 + $0x8] sm:$0xf]
        %v1106 = vld [vmem:[%s1102 + $0xc] sm:$0xf]
        %v1107 = vld [vmem:[%s1102 + $0x10] sm:$0xf]
        %v1108 = vld [vmem:[%s1102 + $0x14] sm:$0xf]
        %v1109 = vld [vmem:[%s1102 + $0x18] sm:$0xf]
        %v1110 = vld [vmem:[%s1102 + $0x1c] sm:$0xf]
        %v1111 = vld [vmem:[%s1102 + $0x20] sm:$0xf]
        %v1112 = vld [vmem:[%s1102 + $0x24] sm:$0xf]
        %v1113 = vld [vmem:[%s1102 + $0x28] sm:$0xf]
        %v1114 = vld [vmem:[%s1102 + $0x2c] sm:$0xf]
        %v1115 = vld [vmem:[%s1102 + $0x30] sm:$0xf]
        %v1116 = vld [vmem:[%s1102 + $0x34] sm:$0xf]
        %v1117 = vld [vmem:[%s1102 + $0x38] sm:$0xf]
        %v1118 = vld [vmem:[%s1102 + $0x3c] sm:$0xf]
        %s1119 = scalar_lea.vmem [#allocation6], 64
        %v1120 = vld [vmem:[%s1119] sm:$0xf]
        %v1121 = vld [vmem:[%s1119 + $0x4] sm:$0xf]
        %v1122 = vld [vmem:[%s1119 + $0x8] sm:$0xf]
        %v1123 = vld [vmem:[%s1119 + $0xc] sm:$0xf]
        %v1124 = vld [vmem:[%s1119 + $0x10] sm:$0xf]
        %v1125 = vld [vmem:[%s1119 + $0x14] sm:$0xf]
        %v1126 = vld [vmem:[%s1119 + $0x18] sm:$0xf]
        %v1127 = vld [vmem:[%s1119 + $0x1c] sm:$0xf]
        %v1128 = vld [vmem:[%s1119 + $0x20] sm:$0xf]
        %v1129 = vld [vmem:[%s1119 + $0x24] sm:$0xf]
        %v1130 = vld [vmem:[%s1119 + $0x28] sm:$0xf]
        %v1131 = vld [vmem:[%s1119 + $0x2c] sm:$0xf]
        %v1132 = vld [vmem:[%s1119 + $0x30] sm:$0xf]
        %v1133 = vld [vmem:[%s1119 + $0x34] sm:$0xf]
        %v1134 = vld [vmem:[%s1119 + $0x38] sm:$0xf]
        %v1135 = vld [vmem:[%s1119 + $0x3c] sm:$0xf]
        %s1136 = scalar_lea.vmem %s2, 1
        %v1137 = vld [vmem:[%s1136] sm:$0x1]
        %v1139 = vlaneseq
        %v1140 = vshrl.u32 %v1139, 7
        %v1141 = vsub.s32 0, %v1140
        %v1142 = vrot.slane %v1137, %v1141
        %v1160 = vunpack.c.l.b16 %v1103
        %v1161 = vunpack.c.l.b16 %v1104
        %v1162 = vunpack.c.l.b16 %v1105
        %v1163 = vunpack.c.l.b16 %v1106
        %v1164 = vunpack.c.l.b16 %v1107
        %v1165 = vunpack.c.l.b16 %v1108
        %v1166 = vunpack.c.l.b16 %v1109
        %v1167 = vunpack.c.l.b16 %v1110
        %v1168 = vunpack.c.l.b16 %v1111
        %v1169 = vunpack.c.l.b16 %v1112
        %v1170 = vunpack.c.l.b16 %v1113
        %v1171 = vunpack.c.l.b16 %v1114
        %v1172 = vunpack.c.l.b16 %v1115
        %v1173 = vunpack.c.l.b16 %v1116
        %v1174 = vunpack.c.l.b16 %v1117
        %v1175 = vunpack.c.l.b16 %v1118
        %v1176 = vpack.c.b16 %v1161, %v1160
        %v1177 = vpack.c.b16 %v1163, %v1162
        %v1178 = vpack.c.b16 %v1165, %v1164
        %v1179 = vpack.c.b16 %v1167, %v1166
        %v1180 = vpack.c.b16 %v1169, %v1168
        %v1181 = vpack.c.b16 %v1171, %v1170
        %v1182 = vpack.c.b16 %v1173, %v1172
        %v1183 = vpack.c.b16 %v1175, %v1174
        %v1208 = vunpack.c.l.b16 %v1120
        %v1209 = vunpack.c.l.b16 %v1121
        %v1210 = vunpack.c.l.b16 %v1122
        %v1211 = vunpack.c.l.b16 %v1123
        %v1212 = vunpack.c.l.b16 %v1124
        %v1213 = vunpack.c.l.b16 %v1125
        %v1214 = vunpack.c.l.b16 %v1126
        %v1215 = vunpack.c.l.b16 %v1127
        %v1216 = vunpack.c.l.b16 %v1128
        %v1217 = vunpack.c.l.b16 %v1129
        %v1218 = vunpack.c.l.b16 %v1130
        %v1219 = vunpack.c.l.b16 %v1131
        %v1220 = vunpack.c.l.b16 %v1132
        %v1221 = vunpack.c.l.b16 %v1133
        %v1222 = vunpack.c.l.b16 %v1134
        %v1223 = vunpack.c.l.b16 %v1135
        %v1224 = vpack.c.b16 %v1209, %v1208
        %v1225 = vpack.c.b16 %v1211, %v1210
        %v1226 = vpack.c.b16 %v1213, %v1212
        %v1227 = vpack.c.b16 %v1215, %v1214
        %v1228 = vpack.c.b16 %v1217, %v1216
        %v1229 = vpack.c.b16 %v1219, %v1218
        %v1230 = vpack.c.b16 %v1221, %v1220
        %v1231 = vpack.c.b16 %v1223, %v1222
        %1240 = vmatprep.subr.bf16.mxu0 0
        %1241 = vmatpush1.bf16.msra.mxu0 %v1231
        %1242 = vmatprep.subr.bf16.mxu0 0
        %1243 = vmatpush1.bf16.msra.mxu0 %v1230
        %1244 = vmatprep.subr.bf16.mxu0 0
        %1245 = vmatpush1.bf16.msra.mxu0 %v1229
        %1246 = vmatprep.subr.bf16.mxu0 0
        %1247 = vmatpush1.bf16.msra.mxu0 %v1228
        %1248 = vmatprep.subr.bf16.mxu0 0
        %1249 = vmatpush1.bf16.msra.mxu0 %v1227
        %1250 = vmatprep.subr.bf16.mxu0 0
        %1251 = vmatpush1.bf16.msra.mxu0 %v1226
        %1252 = vmatprep.subr.bf16.mxu0 0
        %1253 = vmatpush1.bf16.msra.mxu0 %v1225
        %1254 = vmatprep.subr.bf16.mxu0 0
        %1255 = vmatpush1.bf16.msra.mxu0 %v1224
        %1256 = vmatprep.subr.bf16.mxu0 0
        %1257 = vmatpush2.bf16.msra.mxu0 0
        %1258 = vmatprep.subr.bf16.mxu0 0
        %1259 = vmatpush2.bf16.msra.mxu0 0
        %1260 = vmatprep.subr.bf16.mxu0 0
        %1261 = vmatpush2.bf16.msra.mxu0 0
        %1262 = vmatprep.subr.bf16.mxu0 0
        %1263 = vmatpush2.bf16.msra.mxu0 0
        %1264 = vmatprep.subr.bf16.mxu0 0
        %1265 = vmatpush2.bf16.msra.mxu0 0
        %1266 = vmatprep.subr.bf16.mxu0 0
        %1267 = vmatpush2.bf16.msra.mxu0 0
        %1268 = vmatprep.subr.bf16.mxu0 0
        %1269 = vmatpush2.bf16.msra.mxu0 0
        %1270 = vmatprep.subr.bf16.mxu0 0
        %1271 = vmatpush2.bf16.msra.mxu0 0
        %1272 = vmatprep.mubr.bf16.mxu0 0
        %1273 = vmatmul.mubr.bf16.gmra.mxu0 %v1176
        %v1274 = vpop.f32.mrf.mxu0
        %v1275 = vadd.f32 %v1142, %v1274
        %v1276 = vpop.f32.mrf.mxu0
        %v1277 = vpop.f32.mrf.mxu0
        %v1278 = vadd.f32 %v1142, %v1277
        %v1279 = vpop.f32.mrf.mxu0
        %1280 = vmatprep.mubr.bf16.mxu0 0
        %1281 = vmatmul.mubr.bf16.gmra.mxu0 %v1177
        %v1282 = vpop.f32.mrf.mxu0
        %v1283 = vadd.f32 %v1142, %v1282
        %v1284 = vpop.f32.mrf.mxu0
        %v1285 = vpop.f32.mrf.mxu0
        %v1286 = vadd.f32 %v1142, %v1285
        %v1287 = vpop.f32.mrf.mxu0
        %1288 = vmatprep.mubr.bf16.mxu0 0
        %1289 = vmatmul.mubr.bf16.gmra.mxu0 %v1178
        %v1290 = vpop.f32.mrf.mxu0
        %v1291 = vadd.f32 %v1142, %v1290
        %v1292 = vpop.f32.mrf.mxu0
        %v1293 = vpop.f32.mrf.mxu0
        %v1294 = vadd.f32 %v1142, %v1293
        %v1295 = vpop.f32.mrf.mxu0
        %1296 = vmatprep.mubr.bf16.mxu0 0
        %1297 = vmatmul.mubr.bf16.gmra.mxu0 %v1179
        %v1298 = vpop.f32.mrf.mxu0
        %v1299 = vadd.f32 %v1142, %v1298
        %v1300 = vpop.f32.mrf.mxu0
        %v1301 = vpop.f32.mrf.mxu0
        %v1302 = vadd.f32 %v1142, %v1301
        %v1303 = vpop.f32.mrf.mxu0
        %1304 = vmatprep.mubr.bf16.mxu0 0
        %1305 = vmatmul.mubr.bf16.gmra.mxu0 %v1180
        %v1306 = vpop.f32.mrf.mxu0
        %v1307 = vadd.f32 %v1142, %v1306
        %v1308 = vpop.f32.mrf.mxu0
        %v1309 = vpop.f32.mrf.mxu0
        %v1310 = vadd.f32 %v1142, %v1309
        %v1311 = vpop.f32.mrf.mxu0
        %1312 = vmatprep.mubr.bf16.mxu0 0
        %1313 = vmatmul.mubr.bf16.gmra.mxu0 %v1181
        %v1314 = vpop.f32.mrf.mxu0
        %v1315 = vadd.f32 %v1142, %v1314
        %v1316 = vpop.f32.mrf.mxu0
        %v1317 = vpop.f32.mrf.mxu0
        %v1318 = vadd.f32 %v1142, %v1317
        %v1319 = vpop.f32.mrf.mxu0
        %1320 = vmatprep.mubr.bf16.mxu0 0
        %1321 = vmatmul.mubr.bf16.gmra.mxu0 %v1182
        %v1322 = vpop.f32.mrf.mxu0
        %v1323 = vadd.f32 %v1142, %v1322
        %v1324 = vpop.f32.mrf.mxu0
        %v1325 = vpop.f32.mrf.mxu0
        %v1326 = vadd.f32 %v1142, %v1325
        %v1327 = vpop.f32.mrf.mxu0
        %1328 = vmatprep.mubr.bf16.mxu0 0
        %1329 = vmatmul.mubr.bf16.gmra.mxu0 %v1183
        %v1330 = vpop.f32.mrf.mxu0
        %v1331 = vadd.f32 %v1142, %v1330
        %v1332 = vpop.f32.mrf.mxu0
        %v1333 = vpop.f32.mrf.mxu0
        %v1334 = vadd.f32 %v1142, %v1333
        %v1335 = vpop.f32.mrf.mxu0
        %1336 = vdwg.mxu0
        %1337 = vadd.xlane.f32.xlu0 %v1275
        %v1338 = vpop.xlane.xlu0 %1337
        %1339 = vadd.xlane.f32.xlu0 %v1278
        %v1340 = vpop.xlane.xlu0 %1339
        %1341 = vadd.xlane.f32.xlu0 %v1283
        %v1342 = vpop.xlane.xlu0 %1341
        %1343 = vadd.xlane.f32.xlu0 %v1286
        %v1344 = vpop.xlane.xlu0 %1343
        %1345 = vadd.xlane.f32.xlu0 %v1291
        %v1346 = vpop.xlane.xlu0 %1345
        %1347 = vadd.xlane.f32.xlu0 %v1294
        %v1348 = vpop.xlane.xlu0 %1347
        %1349 = vadd.xlane.f32.xlu0 %v1299
        %v1350 = vpop.xlane.xlu0 %1349
        %1351 = vadd.xlane.f32.xlu0 %v1302
        %v1352 = vpop.xlane.xlu0 %1351
        %1353 = vadd.xlane.f32.xlu0 %v1307
        %v1354 = vpop.xlane.xlu0 %1353
        %1355 = vadd.xlane.f32.xlu0 %v1310
        %v1356 = vpop.xlane.xlu0 %1355
        %1357 = vadd.xlane.f32.xlu0 %v1315
        %v1358 = vpop.xlane.xlu0 %1357
        %1359 = vadd.xlane.f32.xlu0 %v1318
        %v1360 = vpop.xlane.xlu0 %1359
        %1361 = vadd.xlane.f32.xlu0 %v1323
        %v1362 = vpop.xlane.xlu0 %1361
        %1363 = vadd.xlane.f32.xlu0 %v1326
        %v1364 = vpop.xlane.xlu0 %1363
        %1365 = vadd.xlane.f32.xlu0 %v1331
        %v1366 = vpop.xlane.xlu0 %1365
        %1367 = vadd.xlane.f32.xlu0 %v1334
        %v1368 = vpop.xlane.xlu0 %1367
        %v1369 = vmul.f32 %v1338, %v855
        %v1370 = vmul.f32 %v1340, %v855
        %v1371 = vmul.f32 %v1342, %v855
        %v1372 = vmul.f32 %v1344, %v855
        %v1373 = vmul.f32 %v1346, %v855
        %v1374 = vmul.f32 %v1348, %v855
        %v1375 = vmul.f32 %v1350, %v855
        %v1376 = vmul.f32 %v1352, %v855
        %v1377 = vmul.f32 %v1354, %v855
        %v1378 = vmul.f32 %v1356, %v855
        %v1379 = vmul.f32 %v1358, %v855
        %v1380 = vmul.f32 %v1360, %v855
        %v1381 = vmul.f32 %v1362, %v855
        %v1382 = vmul.f32 %v1364, %v855
        %v1383 = vmul.f32 %v1366, %v855
        %v1384 = vmul.f32 %v1368, %v855
        %v1385 = vsub.f32 %v1275, %v1369
        %v1386 = vsub.f32 %v1278, %v1370
        %v1387 = vsub.f32 %v1283, %v1371
        %v1388 = vsub.f32 %v1286, %v1372
        %v1389 = vsub.f32 %v1291, %v1373
        %v1390 = vsub.f32 %v1294, %v1374
        %v1391 = vsub.f32 %v1299, %v1375
        %v1392 = vsub.f32 %v1302, %v1376
        %v1393 = vsub.f32 %v1307, %v1377
        %v1394 = vsub.f32 %v1310, %v1378
        %v1395 = vsub.f32 %v1315, %v1379
        %v1396 = vsub.f32 %v1318, %v1380
        %v1397 = vsub.f32 %v1323, %v1381
        %v1398 = vsub.f32 %v1326, %v1382
        %v1399 = vsub.f32 %v1331, %v1383
        %v1400 = vsub.f32 %v1334, %v1384
        %v1401 = vmul.f32 %v1385, %v1385
        %v1402 = vmul.f32 %v1386, %v1386
        %v1403 = vmul.f32 %v1387, %v1387
        %v1404 = vmul.f32 %v1388, %v1388
        %v1405 = vmul.f32 %v1389, %v1389
        %v1406 = vmul.f32 %v1390, %v1390
        %v1407 = vmul.f32 %v1391, %v1391
        %v1408 = vmul.f32 %v1392, %v1392
        %v1409 = vmul.f32 %v1393, %v1393
        %v1410 = vmul.f32 %v1394, %v1394
        %v1411 = vmul.f32 %v1395, %v1395
        %v1412 = vmul.f32 %v1396, %v1396
        %v1413 = vmul.f32 %v1397, %v1397
        %v1414 = vmul.f32 %v1398, %v1398
        %v1415 = vmul.f32 %v1399, %v1399
        %v1416 = vmul.f32 %v1400, %v1400
        %1417 = vadd.xlane.f32.xlu0 %v1401
        %v1418 = vpop.xlane.xlu0 %1417
        %1419 = vadd.xlane.f32.xlu0 %v1402
        %v1420 = vpop.xlane.xlu0 %1419
        %1421 = vadd.xlane.f32.xlu0 %v1403
        %v1422 = vpop.xlane.xlu0 %1421
        %1423 = vadd.xlane.f32.xlu0 %v1404
        %v1424 = vpop.xlane.xlu0 %1423
        %1425 = vadd.xlane.f32.xlu0 %v1405
        %v1426 = vpop.xlane.xlu0 %1425
        %1427 = vadd.xlane.f32.xlu0 %v1406
        %v1428 = vpop.xlane.xlu0 %1427
        %1429 = vadd.xlane.f32.xlu0 %v1407
        %v1430 = vpop.xlane.xlu0 %1429
        %1431 = vadd.xlane.f32.xlu0 %v1408
        %v1432 = vpop.xlane.xlu0 %1431
        %1433 = vadd.xlane.f32.xlu0 %v1409
        %v1434 = vpop.xlane.xlu0 %1433
        %1435 = vadd.xlane.f32.xlu0 %v1410
        %v1436 = vpop.xlane.xlu0 %1435
        %1437 = vadd.xlane.f32.xlu0 %v1411
        %v1438 = vpop.xlane.xlu0 %1437
        %1439 = vadd.xlane.f32.xlu0 %v1412
        %v1440 = vpop.xlane.xlu0 %1439
        %1441 = vadd.xlane.f32.xlu0 %v1413
        %v1442 = vpop.xlane.xlu0 %1441
        %1443 = vadd.xlane.f32.xlu0 %v1414
        %v1444 = vpop.xlane.xlu0 %1443
        %1445 = vadd.xlane.f32.xlu0 %v1415
        %v1446 = vpop.xlane.xlu0 %1445
        %1447 = vadd.xlane.f32.xlu0 %v1416
        %v1448 = vpop.xlane.xlu0 %1447
        %v1449 = vmul.f32 %v1418, %v855
        %v1450 = vmul.f32 %v1420, %v855
        %v1451 = vmul.f32 %v1422, %v855
        %v1452 = vmul.f32 %v1424, %v855
        %v1453 = vmul.f32 %v1426, %v855
        %v1454 = vmul.f32 %v1428, %v855
        %v1455 = vmul.f32 %v1430, %v855
        %v1456 = vmul.f32 %v1432, %v855
        %v1457 = vmul.f32 %v1434, %v855
        %v1458 = vmul.f32 %v1436, %v855
        %v1459 = vmul.f32 %v1438, %v855
        %v1460 = vmul.f32 %v1440, %v855
        %v1461 = vmul.f32 %v1442, %v855
        %v1462 = vmul.f32 %v1444, %v855
        %v1463 = vmul.f32 %v1446, %v855
        %v1464 = vmul.f32 %v1448, %v855
        %v1465 = vadd.f32 %v1449, 1e-05
        %v1466 = vadd.f32 %v1450, 1e-05
        %v1467 = vadd.f32 %v1451, 1e-05
        %v1468 = vadd.f32 %v1452, 1e-05
        %v1469 = vadd.f32 %v1453, 1e-05
        %v1470 = vadd.f32 %v1454, 1e-05
        %v1471 = vadd.f32 %v1455, 1e-05
        %v1472 = vadd.f32 %v1456, 1e-05
        %v1473 = vadd.f32 %v1457, 1e-05
        %v1474 = vadd.f32 %v1458, 1e-05
        %v1475 = vadd.f32 %v1459, 1e-05
        %v1476 = vadd.f32 %v1460, 1e-05
        %v1477 = vadd.f32 %v1461, 1e-05
        %v1478 = vadd.f32 %v1462, 1e-05
        %v1479 = vadd.f32 %v1463, 1e-05
        %v1480 = vadd.f32 %v1464, 1e-05
        %v1481 = vrsqrt.pop %v1465
        %v1482 = vrsqrt.pop %v1466
        %v1483 = vrsqrt.pop %v1467
        %v1484 = vrsqrt.pop %v1468
        %v1485 = vrsqrt.pop %v1469
        %v1486 = vrsqrt.pop %v1470
        %v1487 = vrsqrt.pop %v1471
        %v1488 = vrsqrt.pop %v1472
        %v1489 = vrsqrt.pop %v1473
        %v1490 = vrsqrt.pop %v1474
        %v1491 = vrsqrt.pop %v1475
        %v1492 = vrsqrt.pop %v1476
        %v1493 = vrsqrt.pop %v1477
        %v1494 = vrsqrt.pop %v1478
        %v1495 = vrsqrt.pop %v1479
        %v1496 = vrsqrt.pop %v1480
        %v1497 = vmul.f32 %v1385, %v1481
        %v1498 = vmul.f32 %v1386, %v1482
        %v1499 = vmul.f32 %v1387, %v1483
        %v1500 = vmul.f32 %v1388, %v1484
        %v1501 = vmul.f32 %v1389, %v1485
        %v1502 = vmul.f32 %v1390, %v1486
        %v1503 = vmul.f32 %v1391, %v1487
        %v1504 = vmul.f32 %v1392, %v1488
        %v1505 = vmul.f32 %v1393, %v1489
        %v1506 = vmul.f32 %v1394, %v1490
        %v1507 = vmul.f32 %v1395, %v1491
        %v1508 = vmul.f32 %v1396, %v1492
        %v1509 = vmul.f32 %v1397, %v1493
        %v1510 = vmul.f32 %v1398, %v1494
        %v1511 = vmul.f32 %v1399, %v1495
        %v1512 = vmul.f32 %v1400, %v1496
        %s1513 = scalar_lea.vmem %s3, 1
        %v1514 = vld [vmem:[%s1513] sm:$0x1]
        %v1516 = vlaneseq
        %v1517 = vshrl.u32 %v1516, 7
        %v1518 = vsub.s32 0, %v1517
        %v1519 = vrot.slane %v1514, %v1518
        %v1521 = vmul.f32 %v1497, %v1519
        %v1522 = vmul.f32 %v1498, %v1519
        %v1523 = vmul.f32 %v1499, %v1519
        %v1524 = vmul.f32 %v1500, %v1519
        %v1525 = vmul.f32 %v1501, %v1519
        %v1526 = vmul.f32 %v1502, %v1519
        %v1527 = vmul.f32 %v1503, %v1519
        %v1528 = vmul.f32 %v1504, %v1519
        %v1529 = vmul.f32 %v1505, %v1519
        %v1530 = vmul.f32 %v1506, %v1519
        %v1531 = vmul.f32 %v1507, %v1519
        %v1532 = vmul.f32 %v1508, %v1519
        %v1533 = vmul.f32 %v1509, %v1519
        %v1534 = vmul.f32 %v1510, %v1519
        %v1535 = vmul.f32 %v1511, %v1519
        %v1536 = vmul.f32 %v1512, %v1519
        %s1537 = scalar_lea.vmem %s4, 1
        %v1538 = vld [vmem:[%s1537] sm:$0x1]
        %v1540 = vlaneseq
        %v1541 = vshrl.u32 %v1540, 7
        %v1542 = vsub.s32 0, %v1541
        %v1543 = vrot.slane %v1538, %v1542
        %v1545 = vadd.f32 %v1521, %v1543
        %v1546 = vadd.f32 %v1522, %v1543
        %v1547 = vadd.f32 %v1523, %v1543
        %v1548 = vadd.f32 %v1524, %v1543
        %v1549 = vadd.f32 %v1525, %v1543
        %v1550 = vadd.f32 %v1526, %v1543
        %v1551 = vadd.f32 %v1527, %v1543
        %v1552 = vadd.f32 %v1528, %v1543
        %v1553 = vadd.f32 %v1529, %v1543
        %v1554 = vadd.f32 %v1530, %v1543
        %v1555 = vadd.f32 %v1531, %v1543
        %v1556 = vadd.f32 %v1532, %v1543
        %v1557 = vadd.f32 %v1533, %v1543
        %v1558 = vadd.f32 %v1534, %v1543
        %v1559 = vadd.f32 %v1535, %v1543
        %v1560 = vadd.f32 %v1536, %v1543
        %v1561 = vmax.f32 %v1545, 0.0
        %v1562 = vmax.f32 %v1546, 0.0
        %v1563 = vmax.f32 %v1547, 0.0
        %v1564 = vmax.f32 %v1548, 0.0
        %v1565 = vmax.f32 %v1549, 0.0
        %v1566 = vmax.f32 %v1550, 0.0
        %v1567 = vmax.f32 %v1551, 0.0
        %v1568 = vmax.f32 %v1552, 0.0
        %v1569 = vmax.f32 %v1553, 0.0
        %v1570 = vmax.f32 %v1554, 0.0
        %v1571 = vmax.f32 %v1555, 0.0
        %v1572 = vmax.f32 %v1556, 0.0
        %v1573 = vmax.f32 %v1557, 0.0
        %v1574 = vmax.f32 %v1558, 0.0
        %v1575 = vmax.f32 %v1559, 0.0
        %v1576 = vmax.f32 %v1560, 0.0
        %s1577 = scalar_lea.vmem %s578, 128 [#allocation10]
        %1578 = vst [vmem:[%s1577] sm:$0xff] %v1561
        %1579 = vst [vmem:[%s1577 + $0x8] sm:$0xff] %v1562
        %1580 = vst [vmem:[%s1577 + $0x10] sm:$0xff] %v1563
        %1581 = vst [vmem:[%s1577 + $0x18] sm:$0xff] %v1564
        %1582 = vst [vmem:[%s1577 + $0x20] sm:$0xff] %v1565
        %1583 = vst [vmem:[%s1577 + $0x28] sm:$0xff] %v1566
        %1584 = vst [vmem:[%s1577 + $0x30] sm:$0xff] %v1567
        %1585 = vst [vmem:[%s1577 + $0x38] sm:$0xff] %v1568
        %1586 = vst [vmem:[%s1577 + $0x40] sm:$0xff] %v1569
        %1587 = vst [vmem:[%s1577 + $0x48] sm:$0xff] %v1570
        %1588 = vst [vmem:[%s1577 + $0x50] sm:$0xff] %v1571
        %1589 = vst [vmem:[%s1577 + $0x58] sm:$0xff] %v1572
        %1590 = vst [vmem:[%s1577 + $0x60] sm:$0xff] %v1573
        %1591 = vst [vmem:[%s1577 + $0x68] sm:$0xff] %v1574
        %1592 = vst [vmem:[%s1577 + $0x70] sm:$0xff] %v1575
        %1593 = vst [vmem:[%s1577 + $0x78] sm:$0xff] %v1576
        %v1594 = vpack.c.bf16 %v1562, %v1561
        %v1595 = vpack.c.bf16 %v1564, %v1563
        %v1596 = vpack.c.bf16 %v1566, %v1565
        %v1597 = vpack.c.bf16 %v1568, %v1567
        %v1598 = vpack.c.bf16 %v1570, %v1569
        %v1599 = vpack.c.bf16 %v1572, %v1571
        %v1600 = vpack.c.bf16 %v1574, %v1573
        %v1601 = vpack.c.bf16 %v1576, %v1575
        %s1602 = scalar_lea.vmem [#allocation8], 64
        %v1603 = vld [vmem:[%s1602] sm:$0xf]
        %v1604 = vld [vmem:[%s1602 + $0x4] sm:$0xf]
        %v1605 = vld [vmem:[%s1602 + $0x8] sm:$0xf]
        %v1606 = vld [vmem:[%s1602 + $0xc] sm:$0xf]
        %v1607 = vld [vmem:[%s1602 + $0x10] sm:$0xf]
        %v1608 = vld [vmem:[%s1602 + $0x14] sm:$0xf]
        %v1609 = vld [vmem:[%s1602 + $0x18] sm:$0xf]
        %v1610 = vld [vmem:[%s1602 + $0x1c] sm:$0xf]
        %v1611 = vld [vmem:[%s1602 + $0x20] sm:$0xf]
        %v1612 = vld [vmem:[%s1602 + $0x24] sm:$0xf]
        %v1613 = vld [vmem:[%s1602 + $0x28] sm:$0xf]
        %v1614 = vld [vmem:[%s1602 + $0x2c] sm:$0xf]
        %v1615 = vld [vmem:[%s1602 + $0x30] sm:$0xf]
        %v1616 = vld [vmem:[%s1602 + $0x34] sm:$0xf]
        %v1617 = vld [vmem:[%s1602 + $0x38] sm:$0xf]
        %v1618 = vld [vmem:[%s1602 + $0x3c] sm:$0xf]
        %v1635 = vunpack.c.l.b16 %v1603
        %v1636 = vunpack.c.l.b16 %v1604
        %v1637 = vunpack.c.l.b16 %v1605
        %v1638 = vunpack.c.l.b16 %v1606
        %v1639 = vunpack.c.l.b16 %v1607
        %v1640 = vunpack.c.l.b16 %v1608
        %v1641 = vunpack.c.l.b16 %v1609
        %v1642 = vunpack.c.l.b16 %v1610
        %v1643 = vunpack.c.l.b16 %v1611
        %v1644 = vunpack.c.l.b16 %v1612
        %v1645 = vunpack.c.l.b16 %v1613
        %v1646 = vunpack.c.l.b16 %v1614
        %v1647 = vunpack.c.l.b16 %v1615
        %v1648 = vunpack.c.l.b16 %v1616
        %v1649 = vunpack.c.l.b16 %v1617
        %v1650 = vunpack.c.l.b16 %v1618
        %v1651 = vpack.c.b16 %v1636, %v1635
        %v1652 = vpack.c.b16 %v1638, %v1637
        %v1653 = vpack.c.b16 %v1640, %v1639
        %v1654 = vpack.c.b16 %v1642, %v1641
        %v1655 = vpack.c.b16 %v1644, %v1643
        %v1656 = vpack.c.b16 %v1646, %v1645
        %v1657 = vpack.c.b16 %v1648, %v1647
        %v1658 = vpack.c.b16 %v1650, %v1649
        %1667 = vmatprep.subr.bf16.mxu0 0
        %1668 = vmatpush1.bf16.msra.mxu0 %v1658
        %1669 = vmatprep.subr.bf16.mxu0 0
        %1670 = vmatpush1.bf16.msra.mxu0 %v1657
        %1671 = vmatprep.subr.bf16.mxu0 0
        %1672 = vmatpush1.bf16.msra.mxu0 %v1656
        %1673 = vmatprep.subr.bf16.mxu0 0
        %1674 = vmatpush1.bf16.msra.mxu0 %v1655
        %1675 = vmatprep.subr.bf16.mxu0 0
        %1676 = vmatpush1.bf16.msra.mxu0 %v1654
        %1677 = vmatprep.subr.bf16.mxu0 0
        %1678 = vmatpush1.bf16.msra.mxu0 %v1653
        %1679 = vmatprep.subr.bf16.mxu0 0
        %1680 = vmatpush1.bf16.msra.mxu0 %v1652
        %1681 = vmatprep.subr.bf16.mxu0 0
        %1682 = vmatpush1.bf16.msra.mxu0 %v1651
        %1683 = vmatprep.subr.bf16.mxu0 0
        %1684 = vmatpush2.bf16.msra.mxu0 0
        %1685 = vmatprep.subr.bf16.mxu0 0
        %1686 = vmatpush2.bf16.msra.mxu0 0
        %1687 = vmatprep.subr.bf16.mxu0 0
        %1688 = vmatpush2.bf16.msra.mxu0 0
        %1689 = vmatprep.subr.bf16.mxu0 0
        %1690 = vmatpush2.bf16.msra.mxu0 0
        %1691 = vmatprep.subr.bf16.mxu0 0
        %1692 = vmatpush2.bf16.msra.mxu0 0
        %1693 = vmatprep.subr.bf16.mxu0 0
        %1694 = vmatpush2.bf16.msra.mxu0 0
        %1695 = vmatprep.subr.bf16.mxu0 0
        %1696 = vmatpush2.bf16.msra.mxu0 0
        %1697 = vmatprep.subr.bf16.mxu0 0
        %1698 = vmatpush2.bf16.msra.mxu0 0
        %1699 = vmatprep.mubr.bf16.mxu0 0
        %1700 = vmatmul.mubr.bf16.gmra.mxu0 %v1594
        %v1701 = vpop.f32.mrf.mxu0
        %v1702 = vadd.f32 0.0, %v1701
        %v1703 = vpop.f32.mrf.mxu0
        %v1704 = vpop.f32.mrf.mxu0
        %v1705 = vadd.f32 0.0, %v1704
        %v1706 = vpop.f32.mrf.mxu0
        %1707 = vmatprep.mubr.bf16.mxu0 0
        %1708 = vmatmul.mubr.bf16.gmra.mxu0 %v1595
        %v1709 = vpop.f32.mrf.mxu0
        %v1710 = vadd.f32 0.0, %v1709
        %v1711 = vpop.f32.mrf.mxu0
        %v1712 = vpop.f32.mrf.mxu0
        %v1713 = vadd.f32 0.0, %v1712
        %v1714 = vpop.f32.mrf.mxu0
        %1715 = vmatprep.mubr.bf16.mxu0 0
        %1716 = vmatmul.mubr.bf16.gmra.mxu0 %v1596
        %v1717 = vpop.f32.mrf.mxu0
        %v1718 = vadd.f32 0.0, %v1717
        %v1719 = vpop.f32.mrf.mxu0
        %v1720 = vpop.f32.mrf.mxu0
        %v1721 = vadd.f32 0.0, %v1720
        %v1722 = vpop.f32.mrf.mxu0
        %1723 = vmatprep.mubr.bf16.mxu0 0
        %1724 = vmatmul.mubr.bf16.gmra.mxu0 %v1597
        %v1725 = vpop.f32.mrf.mxu0
        %v1726 = vadd.f32 0.0, %v1725
        %v1727 = vpop.f32.mrf.mxu0
        %v1728 = vpop.f32.mrf.mxu0
        %v1729 = vadd.f32 0.0, %v1728
        %v1730 = vpop.f32.mrf.mxu0
        %1731 = vmatprep.mubr.bf16.mxu0 0
        %1732 = vmatmul.mubr.bf16.gmra.mxu0 %v1598
        %v1733 = vpop.f32.mrf.mxu0
        %v1734 = vadd.f32 0.0, %v1733
        %v1735 = vpop.f32.mrf.mxu0
        %v1736 = vpop.f32.mrf.mxu0
        %v1737 = vadd.f32 0.0, %v1736
        %v1738 = vpop.f32.mrf.mxu0
        %1739 = vmatprep.mubr.bf16.mxu0 0
        %1740 = vmatmul.mubr.bf16.gmra.mxu0 %v1599
        %v1741 = vpop.f32.mrf.mxu0
        %v1742 = vadd.f32 0.0, %v1741
        %v1743 = vpop.f32.mrf.mxu0
        %v1744 = vpop.f32.mrf.mxu0
        %v1745 = vadd.f32 0.0, %v1744
        %v1746 = vpop.f32.mrf.mxu0
        %1747 = vmatprep.mubr.bf16.mxu0 0
        %1748 = vmatmul.mubr.bf16.gmra.mxu0 %v1600
        %v1749 = vpop.f32.mrf.mxu0
        %v1750 = vadd.f32 0.0, %v1749
        %v1751 = vpop.f32.mrf.mxu0
        %v1752 = vpop.f32.mrf.mxu0
        %v1753 = vadd.f32 0.0, %v1752
        %v1754 = vpop.f32.mrf.mxu0
        %1755 = vmatprep.mubr.bf16.mxu0 0
        %1756 = vmatmul.mubr.bf16.gmra.mxu0 %v1601
        %v1757 = vpop.f32.mrf.mxu0
        %v1758 = vadd.f32 0.0, %v1757
        %v1759 = vpop.f32.mrf.mxu0
        %v1760 = vpop.f32.mrf.mxu0
        %v1761 = vadd.f32 0.0, %v1760
        %v1762 = vpop.f32.mrf.mxu0
        %1763 = vdwg.mxu0
        %v1780 = vunpack.c.l.b16 %v1086
        %v1781 = vunpack.c.l.b16 %v1087
        %v1782 = vunpack.c.l.b16 %v1088
        %v1783 = vunpack.c.l.b16 %v1089
        %v1784 = vunpack.c.l.b16 %v1090
        %v1785 = vunpack.c.l.b16 %v1091
        %v1786 = vunpack.c.l.b16 %v1092
        %v1787 = vunpack.c.l.b16 %v1093
        %v1788 = vunpack.c.l.b16 %v1094
        %v1789 = vunpack.c.l.b16 %v1095
        %v1790 = vunpack.c.l.b16 %v1096
        %v1791 = vunpack.c.l.b16 %v1097
        %v1792 = vunpack.c.l.b16 %v1098
        %v1793 = vunpack.c.l.b16 %v1099
        %v1794 = vunpack.c.l.b16 %v1100
        %v1795 = vunpack.c.l.b16 %v1101
        %v1796 = vpack.c.b16 %v1781, %v1780
        %v1797 = vpack.c.b16 %v1783, %v1782
        %v1798 = vpack.c.b16 %v1785, %v1784
        %v1799 = vpack.c.b16 %v1787, %v1786
        %v1800 = vpack.c.b16 %v1789, %v1788
        %v1801 = vpack.c.b16 %v1791, %v1790
        %v1802 = vpack.c.b16 %v1793, %v1792
        %v1803 = vpack.c.b16 %v1795, %v1794
        %1812 = vmatprep.subr.bf16.mxu0 0
        %1813 = vmatpush1.bf16.msra.mxu0 %v1803
        %1814 = vmatprep.subr.bf16.mxu0 0
        %1815 = vmatpush1.bf16.msra.mxu0 %v1802
        %1816 = vmatprep.subr.bf16.mxu0 0
        %1817 = vmatpush1.bf16.msra.mxu0 %v1801
        %1818 = vmatprep.subr.bf16.mxu0 0
        %1819 = vmatpush1.bf16.msra.mxu0 %v1800
        %1820 = vmatprep.subr.bf16.mxu0 0
        %1821 = vmatpush1.bf16.msra.mxu0 %v1799
        %1822 = vmatprep.subr.bf16.mxu0 0
        %1823 = vmatpush1.bf16.msra.mxu0 %v1798
        %1824 = vmatprep.subr.bf16.mxu0 0
        %1825 = vmatpush1.bf16.msra.mxu0 %v1797
        %1826 = vmatprep.subr.bf16.mxu0 0
        %1827 = vmatpush1.bf16.msra.mxu0 %v1796
        %1828 = vmatprep.subr.bf16.mxu0 0
        %1829 = vmatpush2.bf16.msra.mxu0 0
        %1830 = vmatprep.subr.bf16.mxu0 0
        %1831 = vmatpush2.bf16.msra.mxu0 0
        %1832 = vmatprep.subr.bf16.mxu0 0
        %1833 = vmatpush2.bf16.msra.mxu0 0
        %1834 = vmatprep.subr.bf16.mxu0 0
        %1835 = vmatpush2.bf16.msra.mxu0 0
        %1836 = vmatprep.subr.bf16.mxu0 0
        %1837 = vmatpush2.bf16.msra.mxu0 0
        %1838 = vmatprep.subr.bf16.mxu0 0
        %1839 = vmatpush2.bf16.msra.mxu0 0
        %1840 = vmatprep.subr.bf16.mxu0 0
        %1841 = vmatpush2.bf16.msra.mxu0 0
        %1842 = vmatprep.subr.bf16.mxu0 0
        %1843 = vmatpush2.bf16.msra.mxu0 0
        %1844 = vmatprep.mubr.bf16.mxu0 0
        %1845 = vmatmul.mubr.bf16.gmra.mxu0 %v1078
        %v1846 = vpop.f32.mrf.mxu0
        %v1847 = vadd.f32 %v1702, %v1846
        %v1848 = vpop.f32.mrf.mxu0
        %v1849 = vpop.f32.mrf.mxu0
        %v1850 = vadd.f32 %v1705, %v1849
        %v1851 = vpop.f32.mrf.mxu0
        %1852 = vmatprep.mubr.bf16.mxu0 0
        %1853 = vmatmul.mubr.bf16.gmra.mxu0 %v1079
        %v1854 = vpop.f32.mrf.mxu0
        %v1855 = vadd.f32 %v1710, %v1854
        %v1856 = vpop.f32.mrf.mxu0
        %v1857 = vpop.f32.mrf.mxu0
        %v1858 = vadd.f32 %v1713, %v1857
        %v1859 = vpop.f32.mrf.mxu0
        %1860 = vmatprep.mubr.bf16.mxu0 0
        %1861 = vmatmul.mubr.bf16.gmra.mxu0 %v1080
        %v1862 = vpop.f32.mrf.mxu0
        %v1863 = vadd.f32 %v1718, %v1862
        %v1864 = vpop.f32.mrf.mxu0
        %v1865 = vpop.f32.mrf.mxu0
        %v1866 = vadd.f32 %v1721, %v1865
        %v1867 = vpop.f32.mrf.mxu0
        %1868 = vmatprep.mubr.bf16.mxu0 0
        %1869 = vmatmul.mubr.bf16.gmra.mxu0 %v1081
        %v1870 = vpop.f32.mrf.mxu0
        %v1871 = vadd.f32 %v1726, %v1870
        %v1872 = vpop.f32.mrf.mxu0
        %v1873 = vpop.f32.mrf.mxu0
        %v1874 = vadd.f32 %v1729, %v1873
        %v1875 = vpop.f32.mrf.mxu0
        %1876 = vmatprep.mubr.bf16.mxu0 0
        %1877 = vmatmul.mubr.bf16.gmra.mxu0 %v1082
        %v1878 = vpop.f32.mrf.mxu0
        %v1879 = vadd.f32 %v1734, %v1878
        %v1880 = vpop.f32.mrf.mxu0
        %v1881 = vpop.f32.mrf.mxu0
        %v1882 = vadd.f32 %v1737, %v1881
        %v1883 = vpop.f32.mrf.mxu0
        %1884 = vmatprep.mubr.bf16.mxu0 0
        %1885 = vmatmul.mubr.bf16.gmra.mxu0 %v1083
        %v1886 = vpop.f32.mrf.mxu0
        %v1887 = vadd.f32 %v1742, %v1886
        %v1888 = vpop.f32.mrf.mxu0
        %v1889 = vpop.f32.mrf.mxu0
        %v1890 = vadd.f32 %v1745, %v1889
        %v1891 = vpop.f32.mrf.mxu0
        %1892 = vmatprep.mubr.bf16.mxu0 0
        %1893 = vmatmul.mubr.bf16.gmra.mxu0 %v1084
        %v1894 = vpop.f32.mrf.mxu0
        %v1895 = vadd.f32 %v1750, %v1894
        %v1896 = vpop.f32.mrf.mxu0
        %v1897 = vpop.f32.mrf.mxu0
        %v1898 = vadd.f32 %v1753, %v1897
        %v1899 = vpop.f32.mrf.mxu0
        %1900 = vmatprep.mubr.bf16.mxu0 0
        %1901 = vmatmul.mubr.bf16.gmra.mxu0 %v1085
        %v1902 = vpop.f32.mrf.mxu0
        %v1903 = vadd.f32 %v1758, %v1902
        %v1904 = vpop.f32.mrf.mxu0
        %v1905 = vpop.f32.mrf.mxu0
        %v1906 = vadd.f32 %v1761, %v1905
        %v1907 = vpop.f32.mrf.mxu0
        %1908 = vdwg.mxu0
        %s1909 = scalar_lea.vmem %s521, 128 [#allocation3]
        %v1910 = vld [vmem:[%s1909] sm:$0xf]
        %v1911 = vld [vmem:[%s1909 + $0x4] sm:$0xf]
        %v1912 = vld [vmem:[%s1909 + $0x8] sm:$0xf]
        %v1913 = vld [vmem:[%s1909 + $0xc] sm:$0xf]
        %v1914 = vld [vmem:[%s1909 + $0x10] sm:$0xf]
        %v1915 = vld [vmem:[%s1909 + $0x14] sm:$0xf]
        %v1916 = vld [vmem:[%s1909 + $0x18] sm:$0xf]
        %v1917 = vld [vmem:[%s1909 + $0x1c] sm:$0xf]
        %v1918 = vld [vmem:[%s1909 + $0x20] sm:$0xf]
        %v1919 = vld [vmem:[%s1909 + $0x24] sm:$0xf]
        %v1920 = vld [vmem:[%s1909 + $0x28] sm:$0xf]
        %v1921 = vld [vmem:[%s1909 + $0x2c] sm:$0xf]
        %v1922 = vld [vmem:[%s1909 + $0x30] sm:$0xf]
        %v1923 = vld [vmem:[%s1909 + $0x34] sm:$0xf]
        %v1924 = vld [vmem:[%s1909 + $0x38] sm:$0xf]
        %v1925 = vld [vmem:[%s1909 + $0x3c] sm:$0xf]
        %s1926 = scalar_lea.vmem [#allocation6], 128
        %v1927 = vld [vmem:[%s1926] sm:$0xf]
        %v1928 = vld [vmem:[%s1926 + $0x4] sm:$0xf]
        %v1929 = vld [vmem:[%s1926 + $0x8] sm:$0xf]
        %v1930 = vld [vmem:[%s1926 + $0xc] sm:$0xf]
        %v1931 = vld [vmem:[%s1926 + $0x10] sm:$0xf]
        %v1932 = vld [vmem:[%s1926 + $0x14] sm:$0xf]
        %v1933 = vld [vmem:[%s1926 + $0x18] sm:$0xf]
        %v1934 = vld [vmem:[%s1926 + $0x1c] sm:$0xf]
        %v1935 = vld [vmem:[%s1926 + $0x20] sm:$0xf]
        %v1936 = vld [vmem:[%s1926 + $0x24] sm:$0xf]
        %v1937 = vld [vmem:[%s1926 + $0x28] sm:$0xf]
        %v1938 = vld [vmem:[%s1926 + $0x2c] sm:$0xf]
        %v1939 = vld [vmem:[%s1926 + $0x30] sm:$0xf]
        %v1940 = vld [vmem:[%s1926 + $0x34] sm:$0xf]
        %v1941 = vld [vmem:[%s1926 + $0x38] sm:$0xf]
        %v1942 = vld [vmem:[%s1926 + $0x3c] sm:$0xf]
        %s1943 = scalar_lea.vmem %s2, 2
        %v1944 = vld [vmem:[%s1943] sm:$0x1]
        %v1946 = vlaneseq
        %v1947 = vshrl.u32 %v1946, 7
        %v1948 = vsub.s32 0, %v1947
        %v1949 = vrot.slane %v1944, %v1948
        %v1967 = vunpack.c.l.b16 %v1910
        %v1968 = vunpack.c.l.b16 %v1911
        %v1969 = vunpack.c.l.b16 %v1912
        %v1970 = vunpack.c.l.b16 %v1913
        %v1971 = vunpack.c.l.b16 %v1914
        %v1972 = vunpack.c.l.b16 %v1915
        %v1973 = vunpack.c.l.b16 %v1916
        %v1974 = vunpack.c.l.b16 %v1917
        %v1975 = vunpack.c.l.b16 %v1918
        %v1976 = vunpack.c.l.b16 %v1919
        %v1977 = vunpack.c.l.b16 %v1920
        %v1978 = vunpack.c.l.b16 %v1921
        %v1979 = vunpack.c.l.b16 %v1922
        %v1980 = vunpack.c.l.b16 %v1923
        %v1981 = vunpack.c.l.b16 %v1924
        %v1982 = vunpack.c.l.b16 %v1925
        %v1983 = vpack.c.b16 %v1968, %v1967
        %v1984 = vpack.c.b16 %v1970, %v1969
        %v1985 = vpack.c.b16 %v1972, %v1971
        %v1986 = vpack.c.b16 %v1974, %v1973
        %v1987 = vpack.c.b16 %v1976, %v1975
        %v1988 = vpack.c.b16 %v1978, %v1977
        %v1989 = vpack.c.b16 %v1980, %v1979
        %v1990 = vpack.c.b16 %v1982, %v1981
        %v2015 = vunpack.c.l.b16 %v1927
        %v2016 = vunpack.c.l.b16 %v1928
        %v2017 = vunpack.c.l.b16 %v1929
        %v2018 = vunpack.c.l.b16 %v1930
        %v2019 = vunpack.c.l.b16 %v1931
        %v2020 = vunpack.c.l.b16 %v1932
        %v2021 = vunpack.c.l.b16 %v1933
        %v2022 = vunpack.c.l.b16 %v1934
        %v2023 = vunpack.c.l.b16 %v1935
        %v2024 = vunpack.c.l.b16 %v1936
        %v2025 = vunpack.c.l.b16 %v1937
        %v2026 = vunpack.c.l.b16 %v1938
        %v2027 = vunpack.c.l.b16 %v1939
        %v2028 = vunpack.c.l.b16 %v1940
        %v2029 = vunpack.c.l.b16 %v1941
        %v2030 = vunpack.c.l.b16 %v1942
        %v2031 = vpack.c.b16 %v2016, %v2015
        %v2032 = vpack.c.b16 %v2018, %v2017
        %v2033 = vpack.c.b16 %v2020, %v2019
        %v2034 = vpack.c.b16 %v2022, %v2021
        %v2035 = vpack.c.b16 %v2024, %v2023
        %v2036 = vpack.c.b16 %v2026, %v2025
        %v2037 = vpack.c.b16 %v2028, %v2027
        %v2038 = vpack.c.b16 %v2030, %v2029
        %2047 = vmatprep.subr.bf16.mxu0 0
        %2048 = vmatpush1.bf16.msra.mxu0 %v2038
        %2049 = vmatprep.subr.bf16.mxu0 0
        %2050 = vmatpush1.bf16.msra.mxu0 %v2037
        %2051 = vmatprep.subr.bf16.mxu0 0
        %2052 = vmatpush1.bf16.msra.mxu0 %v2036
        %2053 = vmatprep.subr.bf16.mxu0 0
        %2054 = vmatpush1.bf16.msra.mxu0 %v2035
        %2055 = vmatprep.subr.bf16.mxu0 0
        %2056 = vmatpush1.bf16.msra.mxu0 %v2034
        %2057 = vmatprep.subr.bf16.mxu0 0
        %2058 = vmatpush1.bf16.msra.mxu0 %v2033
        %2059 = vmatprep.subr.bf16.mxu0 0
        %2060 = vmatpush1.bf16.msra.mxu0 %v2032
        %2061 = vmatprep.subr.bf16.mxu0 0
        %2062 = vmatpush1.bf16.msra.mxu0 %v2031
        %2063 = vmatprep.subr.bf16.mxu0 0
        %2064 = vmatpush2.bf16.msra.mxu0 0
        %2065 = vmatprep.subr.bf16.mxu0 0
        %2066 = vmatpush2.bf16.msra.mxu0 0
        %2067 = vmatprep.subr.bf16.mxu0 0
        %2068 = vmatpush2.bf16.msra.mxu0 0
        %2069 = vmatprep.subr.bf16.mxu0 0
        %2070 = vmatpush2.bf16.msra.mxu0 0
        %2071 = vmatprep.subr.bf16.mxu0 0
        %2072 = vmatpush2.bf16.msra.mxu0 0
        %2073 = vmatprep.subr.bf16.mxu0 0
        %2074 = vmatpush2.bf16.msra.mxu0 0
        %2075 = vmatprep.subr.bf16.mxu0 0
        %2076 = vmatpush2.bf16.msra.mxu0 0
        %2077 = vmatprep.subr.bf16.mxu0 0
        %2078 = vmatpush2.bf16.msra.mxu0 0
        %2079 = vmatprep.mubr.bf16.mxu0 0
        %2080 = vmatmul.mubr.bf16.gmra.mxu0 %v1983
        %v2081 = vpop.f32.mrf.mxu0
        %v2082 = vadd.f32 %v1949, %v2081
        %v2083 = vpop.f32.mrf.mxu0
        %v2084 = vpop.f32.mrf.mxu0
        %v2085 = vadd.f32 %v1949, %v2084
        %v2086 = vpop.f32.mrf.mxu0
        %2087 = vmatprep.mubr.bf16.mxu0 0
        %2088 = vmatmul.mubr.bf16.gmra.mxu0 %v1984
        %v2089 = vpop.f32.mrf.mxu0
        %v2090 = vadd.f32 %v1949, %v2089
        %v2091 = vpop.f32.mrf.mxu0
        %v2092 = vpop.f32.mrf.mxu0
        %v2093 = vadd.f32 %v1949, %v2092
        %v2094 = vpop.f32.mrf.mxu0
        %2095 = vmatprep.mubr.bf16.mxu0 0
        %2096 = vmatmul.mubr.bf16.gmra.mxu0 %v1985
        %v2097 = vpop.f32.mrf.mxu0
        %v2098 = vadd.f32 %v1949, %v2097
        %v2099 = vpop.f32.mrf.mxu0
        %v2100 = vpop.f32.mrf.mxu0
        %v2101 = vadd.f32 %v1949, %v2100
        %v2102 = vpop.f32.mrf.mxu0
        %2103 = vmatprep.mubr.bf16.mxu0 0
        %2104 = vmatmul.mubr.bf16.gmra.mxu0 %v1986
        %v2105 = vpop.f32.mrf.mxu0
        %v2106 = vadd.f32 %v1949, %v2105
        %v2107 = vpop.f32.mrf.mxu0
        %v2108 = vpop.f32.mrf.mxu0
        %v2109 = vadd.f32 %v1949, %v2108
        %v2110 = vpop.f32.mrf.mxu0
        %2111 = vmatprep.mubr.bf16.mxu0 0
        %2112 = vmatmul.mubr.bf16.gmra.mxu0 %v1987
        %v2113 = vpop.f32.mrf.mxu0
        %v2114 = vadd.f32 %v1949, %v2113
        %v2115 = vpop.f32.mrf.mxu0
        %v2116 = vpop.f32.mrf.mxu0
        %v2117 = vadd.f32 %v1949, %v2116
        %v2118 = vpop.f32.mrf.mxu0
        %2119 = vmatprep.mubr.bf16.mxu0 0
        %2120 = vmatmul.mubr.bf16.gmra.mxu0 %v1988
        %v2121 = vpop.f32.mrf.mxu0
        %v2122 = vadd.f32 %v1949, %v2121
        %v2123 = vpop.f32.mrf.mxu0
        %v2124 = vpop.f32.mrf.mxu0
        %v2125 = vadd.f32 %v1949, %v2124
        %v2126 = vpop.f32.mrf.mxu0
        %2127 = vmatprep.mubr.bf16.mxu0 0
        %2128 = vmatmul.mubr.bf16.gmra.mxu0 %v1989
        %v2129 = vpop.f32.mrf.mxu0
        %v2130 = vadd.f32 %v1949, %v2129
        %v2131 = vpop.f32.mrf.mxu0
        %v2132 = vpop.f32.mrf.mxu0
        %v2133 = vadd.f32 %v1949, %v2132
        %v2134 = vpop.f32.mrf.mxu0
        %2135 = vmatprep.mubr.bf16.mxu0 0
        %2136 = vmatmul.mubr.bf16.gmra.mxu0 %v1990
        %v2137 = vpop.f32.mrf.mxu0
        %v2138 = vadd.f32 %v1949, %v2137
        %v2139 = vpop.f32.mrf.mxu0
        %v2140 = vpop.f32.mrf.mxu0
        %v2141 = vadd.f32 %v1949, %v2140
        %v2142 = vpop.f32.mrf.mxu0
        %2143 = vdwg.mxu0
        %2144 = vadd.xlane.f32.xlu0 %v2082
        %v2145 = vpop.xlane.xlu0 %2144
        %2146 = vadd.xlane.f32.xlu0 %v2085
        %v2147 = vpop.xlane.xlu0 %2146
        %2148 = vadd.xlane.f32.xlu0 %v2090
        %v2149 = vpop.xlane.xlu0 %2148
        %2150 = vadd.xlane.f32.xlu0 %v2093
        %v2151 = vpop.xlane.xlu0 %2150
        %2152 = vadd.xlane.f32.xlu0 %v2098
        %v2153 = vpop.xlane.xlu0 %2152
        %2154 = vadd.xlane.f32.xlu0 %v2101
        %v2155 = vpop.xlane.xlu0 %2154
        %2156 = vadd.xlane.f32.xlu0 %v2106
        %v2157 = vpop.xlane.xlu0 %2156
        %2158 = vadd.xlane.f32.xlu0 %v2109
        %v2159 = vpop.xlane.xlu0 %2158
        %2160 = vadd.xlane.f32.xlu0 %v2114
        %v2161 = vpop.xlane.xlu0 %2160
        %2162 = vadd.xlane.f32.xlu0 %v2117
        %v2163 = vpop.xlane.xlu0 %2162
        %2164 = vadd.xlane.f32.xlu0 %v2122
        %v2165 = vpop.xlane.xlu0 %2164
        %2166 = vadd.xlane.f32.xlu0 %v2125
        %v2167 = vpop.xlane.xlu0 %2166
        %2168 = vadd.xlane.f32.xlu0 %v2130
        %v2169 = vpop.xlane.xlu0 %2168
        %2170 = vadd.xlane.f32.xlu0 %v2133
        %v2171 = vpop.xlane.xlu0 %2170
        %2172 = vadd.xlane.f32.xlu0 %v2138
        %v2173 = vpop.xlane.xlu0 %2172
        %2174 = vadd.xlane.f32.xlu0 %v2141
        %v2175 = vpop.xlane.xlu0 %2174
        %v2176 = vmul.f32 %v2145, %v855
        %v2177 = vmul.f32 %v2147, %v855
        %v2178 = vmul.f32 %v2149, %v855
        %v2179 = vmul.f32 %v2151, %v855
        %v2180 = vmul.f32 %v2153, %v855
        %v2181 = vmul.f32 %v2155, %v855
        %v2182 = vmul.f32 %v2157, %v855
        %v2183 = vmul.f32 %v2159, %v855
        %v2184 = vmul.f32 %v2161, %v855
        %v2185 = vmul.f32 %v2163, %v855
        %v2186 = vmul.f32 %v2165, %v855
        %v2187 = vmul.f32 %v2167, %v855
        %v2188 = vmul.f32 %v2169, %v855
        %v2189 = vmul.f32 %v2171, %v855
        %v2190 = vmul.f32 %v2173, %v855
        %v2191 = vmul.f32 %v2175, %v855
        %v2192 = vsub.f32 %v2082, %v2176
        %v2193 = vsub.f32 %v2085, %v2177
        %v2194 = vsub.f32 %v2090, %v2178
        %v2195 = vsub.f32 %v2093, %v2179
        %v2196 = vsub.f32 %v2098, %v2180
        %v2197 = vsub.f32 %v2101, %v2181
        %v2198 = vsub.f32 %v2106, %v2182
        %v2199 = vsub.f32 %v2109, %v2183
        %v2200 = vsub.f32 %v2114, %v2184
        %v2201 = vsub.f32 %v2117, %v2185
        %v2202 = vsub.f32 %v2122, %v2186
        %v2203 = vsub.f32 %v2125, %v2187
        %v2204 = vsub.f32 %v2130, %v2188
        %v2205 = vsub.f32 %v2133, %v2189
        %v2206 = vsub.f32 %v2138, %v2190
        %v2207 = vsub.f32 %v2141, %v2191
        %v2208 = vmul.f32 %v2192, %v2192
        %v2209 = vmul.f32 %v2193, %v2193
        %v2210 = vmul.f32 %v2194, %v2194
        %v2211 = vmul.f32 %v2195, %v2195
        %v2212 = vmul.f32 %v2196, %v2196
        %v2213 = vmul.f32 %v2197, %v2197
        %v2214 = vmul.f32 %v2198, %v2198
        %v2215 = vmul.f32 %v2199, %v2199
        %v2216 = vmul.f32 %v2200, %v2200
        %v2217 = vmul.f32 %v2201, %v2201
        %v2218 = vmul.f32 %v2202, %v2202
        %v2219 = vmul.f32 %v2203, %v2203
        %v2220 = vmul.f32 %v2204, %v2204
        %v2221 = vmul.f32 %v2205, %v2205
        %v2222 = vmul.f32 %v2206, %v2206
        %v2223 = vmul.f32 %v2207, %v2207
        %2224 = vadd.xlane.f32.xlu0 %v2208
        %v2225 = vpop.xlane.xlu0 %2224
        %2226 = vadd.xlane.f32.xlu0 %v2209
        %v2227 = vpop.xlane.xlu0 %2226
        %2228 = vadd.xlane.f32.xlu0 %v2210
        %v2229 = vpop.xlane.xlu0 %2228
        %2230 = vadd.xlane.f32.xlu0 %v2211
        %v2231 = vpop.xlane.xlu0 %2230
        %2232 = vadd.xlane.f32.xlu0 %v2212
        %v2233 = vpop.xlane.xlu0 %2232
        %2234 = vadd.xlane.f32.xlu0 %v2213
        %v2235 = vpop.xlane.xlu0 %2234
        %2236 = vadd.xlane.f32.xlu0 %v2214
        %v2237 = vpop.xlane.xlu0 %2236
        %2238 = vadd.xlane.f32.xlu0 %v2215
        %v2239 = vpop.xlane.xlu0 %2238
        %2240 = vadd.xlane.f32.xlu0 %v2216
        %v2241 = vpop.xlane.xlu0 %2240
        %2242 = vadd.xlane.f32.xlu0 %v2217
        %v2243 = vpop.xlane.xlu0 %2242
        %2244 = vadd.xlane.f32.xlu0 %v2218
        %v2245 = vpop.xlane.xlu0 %2244
        %2246 = vadd.xlane.f32.xlu0 %v2219
        %v2247 = vpop.xlane.xlu0 %2246
        %2248 = vadd.xlane.f32.xlu0 %v2220
        %v2249 = vpop.xlane.xlu0 %2248
        %2250 = vadd.xlane.f32.xlu0 %v2221
        %v2251 = vpop.xlane.xlu0 %2250
        %2252 = vadd.xlane.f32.xlu0 %v2222
        %v2253 = vpop.xlane.xlu0 %2252
        %2254 = vadd.xlane.f32.xlu0 %v2223
        %v2255 = vpop.xlane.xlu0 %2254
        %v2256 = vmul.f32 %v2225, %v855
        %v2257 = vmul.f32 %v2227, %v855
        %v2258 = vmul.f32 %v2229, %v855
        %v2259 = vmul.f32 %v2231, %v855
        %v2260 = vmul.f32 %v2233, %v855
        %v2261 = vmul.f32 %v2235, %v855
        %v2262 = vmul.f32 %v2237, %v855
        %v2263 = vmul.f32 %v2239, %v855
        %v2264 = vmul.f32 %v2241, %v855
        %v2265 = vmul.f32 %v2243, %v855
        %v2266 = vmul.f32 %v2245, %v855
        %v2267 = vmul.f32 %v2247, %v855
        %v2268 = vmul.f32 %v2249, %v855
        %v2269 = vmul.f32 %v2251, %v855
        %v2270 = vmul.f32 %v2253, %v855
        %v2271 = vmul.f32 %v2255, %v855
        %v2272 = vadd.f32 %v2256, 1e-05
        %v2273 = vadd.f32 %v2257, 1e-05
        %v2274 = vadd.f32 %v2258, 1e-05
        %v2275 = vadd.f32 %v2259, 1e-05
        %v2276 = vadd.f32 %v2260, 1e-05
        %v2277 = vadd.f32 %v2261, 1e-05
        %v2278 = vadd.f32 %v2262, 1e-05
        %v2279 = vadd.f32 %v2263, 1e-05
        %v2280 = vadd.f32 %v2264, 1e-05
        %v2281 = vadd.f32 %v2265, 1e-05
        %v2282 = vadd.f32 %v2266, 1e-05
        %v2283 = vadd.f32 %v2267, 1e-05
        %v2284 = vadd.f32 %v2268, 1e-05
        %v2285 = vadd.f32 %v2269, 1e-05
        %v2286 = vadd.f32 %v2270, 1e-05
        %v2287 = vadd.f32 %v2271, 1e-05
        %v2288 = vrsqrt.pop %v2272
        %v2289 = vrsqrt.pop %v2273
        %v2290 = vrsqrt.pop %v2274
        %v2291 = vrsqrt.pop %v2275
        %v2292 = vrsqrt.pop %v2276
        %v2293 = vrsqrt.pop %v2277
        %v2294 = vrsqrt.pop %v2278
        %v2295 = vrsqrt.pop %v2279
        %v2296 = vrsqrt.pop %v2280
        %v2297 = vrsqrt.pop %v2281
        %v2298 = vrsqrt.pop %v2282
        %v2299 = vrsqrt.pop %v2283
        %v2300 = vrsqrt.pop %v2284
        %v2301 = vrsqrt.pop %v2285
        %v2302 = vrsqrt.pop %v2286
        %v2303 = vrsqrt.pop %v2287
        %v2304 = vmul.f32 %v2192, %v2288
        %v2305 = vmul.f32 %v2193, %v2289
        %v2306 = vmul.f32 %v2194, %v2290
        %v2307 = vmul.f32 %v2195, %v2291
        %v2308 = vmul.f32 %v2196, %v2292
        %v2309 = vmul.f32 %v2197, %v2293
        %v2310 = vmul.f32 %v2198, %v2294
        %v2311 = vmul.f32 %v2199, %v2295
        %v2312 = vmul.f32 %v2200, %v2296
        %v2313 = vmul.f32 %v2201, %v2297
        %v2314 = vmul.f32 %v2202, %v2298
        %v2315 = vmul.f32 %v2203, %v2299
        %v2316 = vmul.f32 %v2204, %v2300
        %v2317 = vmul.f32 %v2205, %v2301
        %v2318 = vmul.f32 %v2206, %v2302
        %v2319 = vmul.f32 %v2207, %v2303
        %s2320 = scalar_lea.vmem %s3, 2
        %v2321 = vld [vmem:[%s2320] sm:$0x1]
        %v2323 = vlaneseq
        %v2324 = vshrl.u32 %v2323, 7
        %v2325 = vsub.s32 0, %v2324
        %v2326 = vrot.slane %v2321, %v2325
        %v2328 = vmul.f32 %v2304, %v2326
        %v2329 = vmul.f32 %v2305, %v2326
        %v2330 = vmul.f32 %v2306, %v2326
        %v2331 = vmul.f32 %v2307, %v2326
        %v2332 = vmul.f32 %v2308, %v2326
        %v2333 = vmul.f32 %v2309, %v2326
        %v2334 = vmul.f32 %v2310, %v2326
        %v2335 = vmul.f32 %v2311, %v2326
        %v2336 = vmul.f32 %v2312, %v2326
        %v2337 = vmul.f32 %v2313, %v2326
        %v2338 = vmul.f32 %v2314, %v2326
        %v2339 = vmul.f32 %v2315, %v2326
        %v2340 = vmul.f32 %v2316, %v2326
        %v2341 = vmul.f32 %v2317, %v2326
        %v2342 = vmul.f32 %v2318, %v2326
        %v2343 = vmul.f32 %v2319, %v2326
        %s2344 = scalar_lea.vmem %s4, 2
        %v2345 = vld [vmem:[%s2344] sm:$0x1]
        %v2347 = vlaneseq
        %v2348 = vshrl.u32 %v2347, 7
        %v2349 = vsub.s32 0, %v2348
        %v2350 = vrot.slane %v2345, %v2349
        %v2352 = vadd.f32 %v2328, %v2350
        %v2353 = vadd.f32 %v2329, %v2350
        %v2354 = vadd.f32 %v2330, %v2350
        %v2355 = vadd.f32 %v2331, %v2350
        %v2356 = vadd.f32 %v2332, %v2350
        %v2357 = vadd.f32 %v2333, %v2350
        %v2358 = vadd.f32 %v2334, %v2350
        %v2359 = vadd.f32 %v2335, %v2350
        %v2360 = vadd.f32 %v2336, %v2350
        %v2361 = vadd.f32 %v2337, %v2350
        %v2362 = vadd.f32 %v2338, %v2350
        %v2363 = vadd.f32 %v2339, %v2350
        %v2364 = vadd.f32 %v2340, %v2350
        %v2365 = vadd.f32 %v2341, %v2350
        %v2366 = vadd.f32 %v2342, %v2350
        %v2367 = vadd.f32 %v2343, %v2350
        %v2368 = vmax.f32 %v2352, 0.0
        %v2369 = vmax.f32 %v2353, 0.0
        %v2370 = vmax.f32 %v2354, 0.0
        %v2371 = vmax.f32 %v2355, 0.0
        %v2372 = vmax.f32 %v2356, 0.0
        %v2373 = vmax.f32 %v2357, 0.0
        %v2374 = vmax.f32 %v2358, 0.0
        %v2375 = vmax.f32 %v2359, 0.0
        %v2376 = vmax.f32 %v2360, 0.0
        %v2377 = vmax.f32 %v2361, 0.0
        %v2378 = vmax.f32 %v2362, 0.0
        %v2379 = vmax.f32 %v2363, 0.0
        %v2380 = vmax.f32 %v2364, 0.0
        %v2381 = vmax.f32 %v2365, 0.0
        %v2382 = vmax.f32 %v2366, 0.0
        %v2383 = vmax.f32 %v2367, 0.0
        %s2384 = scalar_lea.vmem %s578, 256 [#allocation10]
        %2385 = vst [vmem:[%s2384] sm:$0xff] %v2368
        %2386 = vst [vmem:[%s2384 + $0x8] sm:$0xff] %v2369
        %2387 = vst [vmem:[%s2384 + $0x10] sm:$0xff] %v2370
        %2388 = vst [vmem:[%s2384 + $0x18] sm:$0xff] %v2371
        %2389 = vst [vmem:[%s2384 + $0x20] sm:$0xff] %v2372
        %2390 = vst [vmem:[%s2384 + $0x28] sm:$0xff] %v2373
        %2391 = vst [vmem:[%s2384 + $0x30] sm:$0xff] %v2374
        %2392 = vst [vmem:[%s2384 + $0x38] sm:$0xff] %v2375
        %2393 = vst [vmem:[%s2384 + $0x40] sm:$0xff] %v2376
        %2394 = vst [vmem:[%s2384 + $0x48] sm:$0xff] %v2377
        %2395 = vst [vmem:[%s2384 + $0x50] sm:$0xff] %v2378
        %2396 = vst [vmem:[%s2384 + $0x58] sm:$0xff] %v2379
        %2397 = vst [vmem:[%s2384 + $0x60] sm:$0xff] %v2380
        %2398 = vst [vmem:[%s2384 + $0x68] sm:$0xff] %v2381
        %2399 = vst [vmem:[%s2384 + $0x70] sm:$0xff] %v2382
        %2400 = vst [vmem:[%s2384 + $0x78] sm:$0xff] %v2383
        %v2401 = vpack.c.bf16 %v2369, %v2368
        %v2402 = vpack.c.bf16 %v2371, %v2370
        %v2403 = vpack.c.bf16 %v2373, %v2372
        %v2404 = vpack.c.bf16 %v2375, %v2374
        %v2405 = vpack.c.bf16 %v2377, %v2376
        %v2406 = vpack.c.bf16 %v2379, %v2378
        %v2407 = vpack.c.bf16 %v2381, %v2380
        %v2408 = vpack.c.bf16 %v2383, %v2382
        %s2409 = scalar_lea.vmem [#allocation8], 128
        %v2410 = vld [vmem:[%s2409] sm:$0xf]
        %v2411 = vld [vmem:[%s2409 + $0x4] sm:$0xf]
        %v2412 = vld [vmem:[%s2409 + $0x8] sm:$0xf]
        %v2413 = vld [vmem:[%s2409 + $0xc] sm:$0xf]
        %v2414 = vld [vmem:[%s2409 + $0x10] sm:$0xf]
        %v2415 = vld [vmem:[%s2409 + $0x14] sm:$0xf]
        %v2416 = vld [vmem:[%s2409 + $0x18] sm:$0xf]
        %v2417 = vld [vmem:[%s2409 + $0x1c] sm:$0xf]
        %v2418 = vld [vmem:[%s2409 + $0x20] sm:$0xf]
        %v2419 = vld [vmem:[%s2409 + $0x24] sm:$0xf]
        %v2420 = vld [vmem:[%s2409 + $0x28] sm:$0xf]
        %v2421 = vld [vmem:[%s2409 + $0x2c] sm:$0xf]
        %v2422 = vld [vmem:[%s2409 + $0x30] sm:$0xf]
        %v2423 = vld [vmem:[%s2409 + $0x34] sm:$0xf]
        %v2424 = vld [vmem:[%s2409 + $0x38] sm:$0xf]
        %v2425 = vld [vmem:[%s2409 + $0x3c] sm:$0xf]
        %v2442 = vunpack.c.l.b16 %v2410
        %v2443 = vunpack.c.l.b16 %v2411
        %v2444 = vunpack.c.l.b16 %v2412
        %v2445 = vunpack.c.l.b16 %v2413
        %v2446 = vunpack.c.l.b16 %v2414
        %v2447 = vunpack.c.l.b16 %v2415
        %v2448 = vunpack.c.l.b16 %v2416
        %v2449 = vunpack.c.l.b16 %v2417
        %v2450 = vunpack.c.l.b16 %v2418
        %v2451 = vunpack.c.l.b16 %v2419
        %v2452 = vunpack.c.l.b16 %v2420
        %v2453 = vunpack.c.l.b16 %v2421
        %v2454 = vunpack.c.l.b16 %v2422
        %v2455 = vunpack.c.l.b16 %v2423
        %v2456 = vunpack.c.l.b16 %v2424
        %v2457 = vunpack.c.l.b16 %v2425
        %v2458 = vpack.c.b16 %v2443, %v2442
        %v2459 = vpack.c.b16 %v2445, %v2444
        %v2460 = vpack.c.b16 %v2447, %v2446
        %v2461 = vpack.c.b16 %v2449, %v2448
        %v2462 = vpack.c.b16 %v2451, %v2450
        %v2463 = vpack.c.b16 %v2453, %v2452
        %v2464 = vpack.c.b16 %v2455, %v2454
        %v2465 = vpack.c.b16 %v2457, %v2456
        %2474 = vmatprep.subr.bf16.mxu0 0
        %2475 = vmatpush1.bf16.msra.mxu0 %v2465
        %2476 = vmatprep.subr.bf16.mxu0 0
        %2477 = vmatpush1.bf16.msra.mxu0 %v2464
        %2478 = vmatprep.subr.bf16.mxu0 0
        %2479 = vmatpush1.bf16.msra.mxu0 %v2463
        %2480 = vmatprep.subr.bf16.mxu0 0
        %2481 = vmatpush1.bf16.msra.mxu0 %v2462
        %2482 = vmatprep.subr.bf16.mxu0 0
        %2483 = vmatpush1.bf16.msra.mxu0 %v2461
        %2484 = vmatprep.subr.bf16.mxu0 0
        %2485 = vmatpush1.bf16.msra.mxu0 %v2460
        %2486 = vmatprep.subr.bf16.mxu0 0
        %2487 = vmatpush1.bf16.msra.mxu0 %v2459
        %2488 = vmatprep.subr.bf16.mxu0 0
        %2489 = vmatpush1.bf16.msra.mxu0 %v2458
        %2490 = vmatprep.subr.bf16.mxu0 0
        %2491 = vmatpush2.bf16.msra.mxu0 0
        %2492 = vmatprep.subr.bf16.mxu0 0
        %2493 = vmatpush2.bf16.msra.mxu0 0
        %2494 = vmatprep.subr.bf16.mxu0 0
        %2495 = vmatpush2.bf16.msra.mxu0 0
        %2496 = vmatprep.subr.bf16.mxu0 0
        %2497 = vmatpush2.bf16.msra.mxu0 0
        %2498 = vmatprep.subr.bf16.mxu0 0
        %2499 = vmatpush2.bf16.msra.mxu0 0
        %2500 = vmatprep.subr.bf16.mxu0 0
        %2501 = vmatpush2.bf16.msra.mxu0 0
        %2502 = vmatprep.subr.bf16.mxu0 0
        %2503 = vmatpush2.bf16.msra.mxu0 0
        %2504 = vmatprep.subr.bf16.mxu0 0
        %2505 = vmatpush2.bf16.msra.mxu0 0
        %2506 = vmatprep.mubr.bf16.mxu0 0
        %2507 = vmatmul.mubr.bf16.gmra.mxu0 %v2401
        %v2508 = vpop.f32.mrf.mxu0
        %v2509 = vadd.f32 0.0, %v2508
        %v2510 = vpop.f32.mrf.mxu0
        %v2511 = vpop.f32.mrf.mxu0
        %v2512 = vadd.f32 0.0, %v2511
        %v2513 = vpop.f32.mrf.mxu0
        %2514 = vmatprep.mubr.bf16.mxu0 0
        %2515 = vmatmul.mubr.bf16.gmra.mxu0 %v2402
        %v2516 = vpop.f32.mrf.mxu0
        %v2517 = vadd.f32 0.0, %v2516
        %v2518 = vpop.f32.mrf.mxu0
        %v2519 = vpop.f32.mrf.mxu0
        %v2520 = vadd.f32 0.0, %v2519
        %v2521 = vpop.f32.mrf.mxu0
        %2522 = vmatprep.mubr.bf16.mxu0 0
        %2523 = vmatmul.mubr.bf16.gmra.mxu0 %v2403
        %v2524 = vpop.f32.mrf.mxu0
        %v2525 = vadd.f32 0.0, %v2524
        %v2526 = vpop.f32.mrf.mxu0
        %v2527 = vpop.f32.mrf.mxu0
        %v2528 = vadd.f32 0.0, %v2527
        %v2529 = vpop.f32.mrf.mxu0
        %2530 = vmatprep.mubr.bf16.mxu0 0
        %2531 = vmatmul.mubr.bf16.gmra.mxu0 %v2404
        %v2532 = vpop.f32.mrf.mxu0
        %v2533 = vadd.f32 0.0, %v2532
        %v2534 = vpop.f32.mrf.mxu0
        %v2535 = vpop.f32.mrf.mxu0
        %v2536 = vadd.f32 0.0, %v2535
        %v2537 = vpop.f32.mrf.mxu0
        %2538 = vmatprep.mubr.bf16.mxu0 0
        %2539 = vmatmul.mubr.bf16.gmra.mxu0 %v2405
        %v2540 = vpop.f32.mrf.mxu0
        %v2541 = vadd.f32 0.0, %v2540
        %v2542 = vpop.f32.mrf.mxu0
        %v2543 = vpop.f32.mrf.mxu0
        %v2544 = vadd.f32 0.0, %v2543
        %v2545 = vpop.f32.mrf.mxu0
        %2546 = vmatprep.mubr.bf16.mxu0 0
        %2547 = vmatmul.mubr.bf16.gmra.mxu0 %v2406
        %v2548 = vpop.f32.mrf.mxu0
        %v2549 = vadd.f32 0.0, %v2548
        %v2550 = vpop.f32.mrf.mxu0
        %v2551 = vpop.f32.mrf.mxu0
        %v2552 = vadd.f32 0.0, %v2551
        %v2553 = vpop.f32.mrf.mxu0
        %2554 = vmatprep.mubr.bf16.mxu0 0
        %2555 = vmatmul.mubr.bf16.gmra.mxu0 %v2407
        %v2556 = vpop.f32.mrf.mxu0
        %v2557 = vadd.f32 0.0, %v2556
        %v2558 = vpop.f32.mrf.mxu0
        %v2559 = vpop.f32.mrf.mxu0
        %v2560 = vadd.f32 0.0, %v2559
        %v2561 = vpop.f32.mrf.mxu0
        %2562 = vmatprep.mubr.bf16.mxu0 0
        %2563 = vmatmul.mubr.bf16.gmra.mxu0 %v2408
        %v2564 = vpop.f32.mrf.mxu0
        %v2565 = vadd.f32 0.0, %v2564
        %v2566 = vpop.f32.mrf.mxu0
        %v2567 = vpop.f32.mrf.mxu0
        %v2568 = vadd.f32 0.0, %v2567
        %v2569 = vpop.f32.mrf.mxu0
        %2570 = vdwg.mxu0
        %v2571 = vadd.f32 %v1847, %v2509
        %v2572 = vadd.f32 %v1850, %v2512
        %v2573 = vadd.f32 %v1855, %v2517
        %v2574 = vadd.f32 %v1858, %v2520
        %v2575 = vadd.f32 %v1863, %v2525
        %v2576 = vadd.f32 %v1866, %v2528
        %v2577 = vadd.f32 %v1871, %v2533
        %v2578 = vadd.f32 %v1874, %v2536
        %v2579 = vadd.f32 %v1879, %v2541
        %v2580 = vadd.f32 %v1882, %v2544
        %v2581 = vadd.f32 %v1887, %v2549
        %v2582 = vadd.f32 %v1890, %v2552
        %v2583 = vadd.f32 %v1895, %v2557
        %v2584 = vadd.f32 %v1898, %v2560
        %v2585 = vadd.f32 %v1903, %v2565
        %v2586 = vadd.f32 %v1906, %v2568
        %v2587 = vld [vmem:[%s578] sm:$0xff]
        %v2588 = vld [vmem:[%s578 + $0x8] sm:$0xff]
        %v2589 = vld [vmem:[%s578 + $0x10] sm:$0xff]
        %v2590 = vld [vmem:[%s578 + $0x18] sm:$0xff]
        %v2591 = vld [vmem:[%s578 + $0x20] sm:$0xff]
        %v2592 = vld [vmem:[%s578 + $0x28] sm:$0xff]
        %v2593 = vld [vmem:[%s578 + $0x30] sm:$0xff]
        %v2594 = vld [vmem:[%s578 + $0x38] sm:$0xff]
        %v2595 = vld [vmem:[%s578 + $0x40] sm:$0xff]
        %v2596 = vld [vmem:[%s578 + $0x48] sm:$0xff]
        %v2597 = vld [vmem:[%s578 + $0x50] sm:$0xff]
        %v2598 = vld [vmem:[%s578 + $0x58] sm:$0xff]
        %v2599 = vld [vmem:[%s578 + $0x60] sm:$0xff]
        %v2600 = vld [vmem:[%s578 + $0x68] sm:$0xff]
        %v2601 = vld [vmem:[%s578 + $0x70] sm:$0xff]
        %v2602 = vld [vmem:[%s578 + $0x78] sm:$0xff]
        %v2603 = vld [vmem:[%s578 + $0x80] sm:$0xff]
        %v2604 = vld [vmem:[%s578 + $0x88] sm:$0xff]
        %v2605 = vld [vmem:[%s578 + $0x90] sm:$0xff]
        %v2606 = vld [vmem:[%s578 + $0x98] sm:$0xff]
        %v2607 = vld [vmem:[%s578 + $0xa0] sm:$0xff]
        %v2608 = vld [vmem:[%s578 + $0xa8] sm:$0xff]
        %v2609 = vld [vmem:[%s578 + $0xb0] sm:$0xff]
        %v2610 = vld [vmem:[%s578 + $0xb8] sm:$0xff]
        %v2611 = vld [vmem:[%s578 + $0xc0] sm:$0xff]
        %v2612 = vld [vmem:[%s578 + $0xc8] sm:$0xff]
        %v2613 = vld [vmem:[%s578 + $0xd0] sm:$0xff]
        %v2614 = vld [vmem:[%s578 + $0xd8] sm:$0xff]
        %v2615 = vld [vmem:[%s578 + $0xe0] sm:$0xff]
        %v2616 = vld [vmem:[%s578 + $0xe8] sm:$0xff]
        %v2617 = vld [vmem:[%s578 + $0xf0] sm:$0xff]
        %v2618 = vld [vmem:[%s578 + $0xf8] sm:$0xff]
        %v2619 = vld [vmem:[%s578 + $0x100] sm:$0xff]
        %v2620 = vld [vmem:[%s578 + $0x108] sm:$0xff]
        %v2621 = vld [vmem:[%s578 + $0x110] sm:$0xff]
        %v2622 = vld [vmem:[%s578 + $0x118] sm:$0xff]
        %v2623 = vld [vmem:[%s578 + $0x120] sm:$0xff]
        %v2624 = vld [vmem:[%s578 + $0x128] sm:$0xff]
        %v2625 = vld [vmem:[%s578 + $0x130] sm:$0xff]
        %v2626 = vld [vmem:[%s578 + $0x138] sm:$0xff]
        %v2627 = vld [vmem:[%s578 + $0x140] sm:$0xff]
        %v2628 = vld [vmem:[%s578 + $0x148] sm:$0xff]
        %v2629 = vld [vmem:[%s578 + $0x150] sm:$0xff]
        %v2630 = vld [vmem:[%s578 + $0x158] sm:$0xff]
        %v2631 = vld [vmem:[%s578 + $0x160] sm:$0xff]
        %v2632 = vld [vmem:[%s578 + $0x168] sm:$0xff]
        %v2633 = vld [vmem:[%s578 + $0x170] sm:$0xff]
        %v2634 = vld [vmem:[%s578 + $0x178] sm:$0xff]
        %v2635 = vpack.c.bf16 %v2588, %v2587
        %v2636 = vpack.c.bf16 %v2590, %v2589
        %v2637 = vpack.c.bf16 %v2592, %v2591
        %v2638 = vpack.c.bf16 %v2594, %v2593
        %v2639 = vpack.c.bf16 %v2596, %v2595
        %v2640 = vpack.c.bf16 %v2598, %v2597
        %v2641 = vpack.c.bf16 %v2600, %v2599
        %v2642 = vpack.c.bf16 %v2602, %v2601
        %v2643 = vpack.c.bf16 %v2604, %v2603
        %v2644 = vpack.c.bf16 %v2606, %v2605
        %v2645 = vpack.c.bf16 %v2608, %v2607
        %v2646 = vpack.c.bf16 %v2610, %v2609
        %v2647 = vpack.c.bf16 %v2612, %v2611
        %v2648 = vpack.c.bf16 %v2614, %v2613
        %v2649 = vpack.c.bf16 %v2616, %v2615
        %v2650 = vpack.c.bf16 %v2618, %v2617
        %v2651 = vpack.c.bf16 %v2620, %v2619
        %v2652 = vpack.c.bf16 %v2622, %v2621
        %v2653 = vpack.c.bf16 %v2624, %v2623
        %v2654 = vpack.c.bf16 %v2626, %v2625
        %v2655 = vpack.c.bf16 %v2628, %v2627
        %v2656 = vpack.c.bf16 %v2630, %v2629
        %v2657 = vpack.c.bf16 %v2632, %v2631
        %v2658 = vpack.c.bf16 %v2634, %v2633
        %v2659 = vld [vmem:[%s5] sm:$0xf]
        %v2660 = vld [vmem:[%s5 + $0x4] sm:$0xf]
        %v2661 = vld [vmem:[%s5 + $0x8] sm:$0xf]
        %v2662 = vld [vmem:[%s5 + $0xc] sm:$0xf]
        %v2663 = vld [vmem:[%s5 + $0x10] sm:$0xf]
        %v2664 = vld [vmem:[%s5 + $0x14] sm:$0xf]
        %v2665 = vld [vmem:[%s5 + $0x18] sm:$0xf]
        %v2666 = vld [vmem:[%s5 + $0x1c] sm:$0xf]
        %v2667 = vld [vmem:[%s5 + $0x20] sm:$0xf]
        %v2668 = vld [vmem:[%s5 + $0x24] sm:$0xf]
        %v2669 = vld [vmem:[%s5 + $0x28] sm:$0xf]
        %v2670 = vld [vmem:[%s5 + $0x2c] sm:$0xf]
        %v2671 = vld [vmem:[%s5 + $0x30] sm:$0xf]
        %v2672 = vld [vmem:[%s5 + $0x34] sm:$0xf]
        %v2673 = vld [vmem:[%s5 + $0x38] sm:$0xf]
        %v2674 = vld [vmem:[%s5 + $0x3c] sm:$0xf]
        %v2675 = vld [vmem:[%s6] sm:$0x1]
        %v2677 = vlaneseq
        %v2678 = vshrl.u32 %v2677, 7
        %v2679 = vsub.s32 0, %v2678
        %v2680 = vrot.slane %v2675, %v2679
        %v2698 = vunpack.c.l.b16 %v2659
        %v2699 = vunpack.c.l.b16 %v2660
        %v2700 = vunpack.c.l.b16 %v2661
        %v2701 = vunpack.c.l.b16 %v2662
        %v2702 = vunpack.c.l.b16 %v2663
        %v2703 = vunpack.c.l.b16 %v2664
        %v2704 = vunpack.c.l.b16 %v2665
        %v2705 = vunpack.c.l.b16 %v2666
        %v2706 = vunpack.c.l.b16 %v2667
        %v2707 = vunpack.c.l.b16 %v2668
        %v2708 = vunpack.c.l.b16 %v2669
        %v2709 = vunpack.c.l.b16 %v2670
        %v2710 = vunpack.c.l.b16 %v2671
        %v2711 = vunpack.c.l.b16 %v2672
        %v2712 = vunpack.c.l.b16 %v2673
        %v2713 = vunpack.c.l.b16 %v2674
        %v2714 = vpack.c.b16 %v2699, %v2698
        %v2715 = vpack.c.b16 %v2701, %v2700
        %v2716 = vpack.c.b16 %v2703, %v2702
        %v2717 = vpack.c.b16 %v2705, %v2704
        %v2718 = vpack.c.b16 %v2707, %v2706
        %v2719 = vpack.c.b16 %v2709, %v2708
        %v2720 = vpack.c.b16 %v2711, %v2710
        %v2721 = vpack.c.b16 %v2713, %v2712
        %2730 = vmatprep.subr.bf16.mxu0 0
        %2731 = vmatpush1.bf16.msra.mxu0 %v2721
        %2732 = vmatprep.subr.bf16.mxu0 0
        %2733 = vmatpush1.bf16.msra.mxu0 %v2720
        %2734 = vmatprep.subr.bf16.mxu0 0
        %2735 = vmatpush1.bf16.msra.mxu0 %v2719
        %2736 = vmatprep.subr.bf16.mxu0 0
        %2737 = vmatpush1.bf16.msra.mxu0 %v2718
        %2738 = vmatprep.subr.bf16.mxu0 0
        %2739 = vmatpush1.bf16.msra.mxu0 %v2717
        %2740 = vmatprep.subr.bf16.mxu0 0
        %2741 = vmatpush1.bf16.msra.mxu0 %v2716
        %2742 = vmatprep.subr.bf16.mxu0 0
        %2743 = vmatpush1.bf16.msra.mxu0 %v2715
        %2744 = vmatprep.subr.bf16.mxu0 0
        %2745 = vmatpush1.bf16.msra.mxu0 %v2714
        %2746 = vmatprep.subr.bf16.mxu0 0
        %2747 = vmatpush2.bf16.msra.mxu0 0
        %2748 = vmatprep.subr.bf16.mxu0 0
        %2749 = vmatpush2.bf16.msra.mxu0 0
        %2750 = vmatprep.subr.bf16.mxu0 0
        %2751 = vmatpush2.bf16.msra.mxu0 0
        %2752 = vmatprep.subr.bf16.mxu0 0
        %2753 = vmatpush2.bf16.msra.mxu0 0
        %2754 = vmatprep.subr.bf16.mxu0 0
        %2755 = vmatpush2.bf16.msra.mxu0 0
        %2756 = vmatprep.subr.bf16.mxu0 0
        %2757 = vmatpush2.bf16.msra.mxu0 0
        %2758 = vmatprep.subr.bf16.mxu0 0
        %2759 = vmatpush2.bf16.msra.mxu0 0
        %2760 = vmatprep.subr.bf16.mxu0 0
        %2761 = vmatpush2.bf16.msra.mxu0 0
        %2762 = vmatprep.mubr.bf16.mxu0 0
        %2763 = vmatmul.mubr.bf16.gmra.mxu0 %v2635
        %v2764 = vpop.f32.mrf.mxu0
        %v2765 = vadd.f32 %v2680, %v2764
        %v2766 = vpop.f32.mrf.mxu0
        %v2767 = vpop.f32.mrf.mxu0
        %v2768 = vadd.f32 %v2680, %v2767
        %v2769 = vpop.f32.mrf.mxu0
        %2770 = vmatprep.mubr.bf16.mxu0 0
        %2771 = vmatmul.mubr.bf16.gmra.mxu0 %v2636
        %v2772 = vpop.f32.mrf.mxu0
        %v2773 = vadd.f32 %v2680, %v2772
        %v2774 = vpop.f32.mrf.mxu0
        %v2775 = vpop.f32.mrf.mxu0
        %v2776 = vadd.f32 %v2680, %v2775
        %v2777 = vpop.f32.mrf.mxu0
        %2778 = vmatprep.mubr.bf16.mxu0 0
        %2779 = vmatmul.mubr.bf16.gmra.mxu0 %v2637
        %v2780 = vpop.f32.mrf.mxu0
        %v2781 = vadd.f32 %v2680, %v2780
        %v2782 = vpop.f32.mrf.mxu0
        %v2783 = vpop.f32.mrf.mxu0
        %v2784 = vadd.f32 %v2680, %v2783
        %v2785 = vpop.f32.mrf.mxu0
        %2786 = vmatprep.mubr.bf16.mxu0 0
        %2787 = vmatmul.mubr.bf16.gmra.mxu0 %v2638
        %v2788 = vpop.f32.mrf.mxu0
        %v2789 = vadd.f32 %v2680, %v2788
        %v2790 = vpop.f32.mrf.mxu0
        %v2791 = vpop.f32.mrf.mxu0
        %v2792 = vadd.f32 %v2680, %v2791
        %v2793 = vpop.f32.mrf.mxu0
        %2794 = vmatprep.mubr.bf16.mxu0 0
        %2795 = vmatmul.mubr.bf16.gmra.mxu0 %v2639
        %v2796 = vpop.f32.mrf.mxu0
        %v2797 = vadd.f32 %v2680, %v2796
        %v2798 = vpop.f32.mrf.mxu0
        %v2799 = vpop.f32.mrf.mxu0
        %v2800 = vadd.f32 %v2680, %v2799
        %v2801 = vpop.f32.mrf.mxu0
        %2802 = vmatprep.mubr.bf16.mxu0 0
        %2803 = vmatmul.mubr.bf16.gmra.mxu0 %v2640
        %v2804 = vpop.f32.mrf.mxu0
        %v2805 = vadd.f32 %v2680, %v2804
        %v2806 = vpop.f32.mrf.mxu0
        %v2807 = vpop.f32.mrf.mxu0
        %v2808 = vadd.f32 %v2680, %v2807
        %v2809 = vpop.f32.mrf.mxu0
        %2810 = vmatprep.mubr.bf16.mxu0 0
        %2811 = vmatmul.mubr.bf16.gmra.mxu0 %v2641
        %v2812 = vpop.f32.mrf.mxu0
        %v2813 = vadd.f32 %v2680, %v2812
        %v2814 = vpop.f32.mrf.mxu0
        %v2815 = vpop.f32.mrf.mxu0
        %v2816 = vadd.f32 %v2680, %v2815
        %v2817 = vpop.f32.mrf.mxu0
        %2818 = vmatprep.mubr.bf16.mxu0 0
        %2819 = vmatmul.mubr.bf16.gmra.mxu0 %v2642
        %v2820 = vpop.f32.mrf.mxu0
        %v2821 = vadd.f32 %v2680, %v2820
        %v2822 = vpop.f32.mrf.mxu0
        %v2823 = vpop.f32.mrf.mxu0
        %v2824 = vadd.f32 %v2680, %v2823
        %v2825 = vpop.f32.mrf.mxu0
        %2826 = vmatprep.mubr.bf16.mxu0 0
        %2827 = vmatmul.mubr.bf16.gmra.mxu0 %v2643
        %v2828 = vpop.f32.mrf.mxu0
        %v2829 = vadd.f32 %v2680, %v2828
        %v2830 = vpop.f32.mrf.mxu0
        %v2831 = vpop.f32.mrf.mxu0
        %v2832 = vadd.f32 %v2680, %v2831
        %v2833 = vpop.f32.mrf.mxu0
        %2834 = vmatprep.mubr.bf16.mxu0 0
        %2835 = vmatmul.mubr.bf16.gmra.mxu0 %v2644
        %v2836 = vpop.f32.mrf.mxu0
        %v2837 = vadd.f32 %v2680, %v2836
        %v2838 = vpop.f32.mrf.mxu0
        %v2839 = vpop.f32.mrf.mxu0
        %v2840 = vadd.f32 %v2680, %v2839
        %v2841 = vpop.f32.mrf.mxu0
        %2842 = vmatprep.mubr.bf16.mxu0 0
        %2843 = vmatmul.mubr.bf16.gmra.mxu0 %v2645
        %v2844 = vpop.f32.mrf.mxu0
        %v2845 = vadd.f32 %v2680, %v2844
        %v2846 = vpop.f32.mrf.mxu0
        %v2847 = vpop.f32.mrf.mxu0
        %v2848 = vadd.f32 %v2680, %v2847
        %v2849 = vpop.f32.mrf.mxu0
        %2850 = vmatprep.mubr.bf16.mxu0 0
        %2851 = vmatmul.mubr.bf16.gmra.mxu0 %v2646
        %v2852 = vpop.f32.mrf.mxu0
        %v2853 = vadd.f32 %v2680, %v2852
        %v2854 = vpop.f32.mrf.mxu0
        %v2855 = vpop.f32.mrf.mxu0
        %v2856 = vadd.f32 %v2680, %v2855
        %v2857 = vpop.f32.mrf.mxu0
        %2858 = vmatprep.mubr.bf16.mxu0 0
        %2859 = vmatmul.mubr.bf16.gmra.mxu0 %v2647
        %v2860 = vpop.f32.mrf.mxu0
        %v2861 = vadd.f32 %v2680, %v2860
        %v2862 = vpop.f32.mrf.mxu0
        %v2863 = vpop.f32.mrf.mxu0
        %v2864 = vadd.f32 %v2680, %v2863
        %v2865 = vpop.f32.mrf.mxu0
        %2866 = vmatprep.mubr.bf16.mxu0 0
        %2867 = vmatmul.mubr.bf16.gmra.mxu0 %v2648
        %v2868 = vpop.f32.mrf.mxu0
        %v2869 = vadd.f32 %v2680, %v2868
        %v2870 = vpop.f32.mrf.mxu0
        %v2871 = vpop.f32.mrf.mxu0
        %v2872 = vadd.f32 %v2680, %v2871
        %v2873 = vpop.f32.mrf.mxu0
        %2874 = vmatprep.mubr.bf16.mxu0 0
        %2875 = vmatmul.mubr.bf16.gmra.mxu0 %v2649
        %v2876 = vpop.f32.mrf.mxu0
        %v2877 = vadd.f32 %v2680, %v2876
        %v2878 = vpop.f32.mrf.mxu0
        %v2879 = vpop.f32.mrf.mxu0
        %v2880 = vadd.f32 %v2680, %v2879
        %v2881 = vpop.f32.mrf.mxu0
        %2882 = vmatprep.mubr.bf16.mxu0 0
        %2883 = vmatmul.mubr.bf16.gmra.mxu0 %v2650
        %v2884 = vpop.f32.mrf.mxu0
        %v2885 = vadd.f32 %v2680, %v2884
        %v2886 = vpop.f32.mrf.mxu0
        %v2887 = vpop.f32.mrf.mxu0
        %v2888 = vadd.f32 %v2680, %v2887
        %v2889 = vpop.f32.mrf.mxu0
        %2890 = vmatprep.mubr.bf16.mxu0 0
        %2891 = vmatmul.mubr.bf16.gmra.mxu0 %v2651
        %v2892 = vpop.f32.mrf.mxu0
        %v2893 = vadd.f32 %v2680, %v2892
        %v2894 = vpop.f32.mrf.mxu0
        %v2895 = vpop.f32.mrf.mxu0
        %v2896 = vadd.f32 %v2680, %v2895
        %v2897 = vpop.f32.mrf.mxu0
        %2898 = vmatprep.mubr.bf16.mxu0 0
        %2899 = vmatmul.mubr.bf16.gmra.mxu0 %v2652
        %v2900 = vpop.f32.mrf.mxu0
        %v2901 = vadd.f32 %v2680, %v2900
        %v2902 = vpop.f32.mrf.mxu0
        %v2903 = vpop.f32.mrf.mxu0
        %v2904 = vadd.f32 %v2680, %v2903
        %v2905 = vpop.f32.mrf.mxu0
        %2906 = vmatprep.mubr.bf16.mxu0 0
        %2907 = vmatmul.mubr.bf16.gmra.mxu0 %v2653
        %v2908 = vpop.f32.mrf.mxu0
        %v2909 = vadd.f32 %v2680, %v2908
        %v2910 = vpop.f32.mrf.mxu0
        %v2911 = vpop.f32.mrf.mxu0
        %v2912 = vadd.f32 %v2680, %v2911
        %v2913 = vpop.f32.mrf.mxu0
        %2914 = vmatprep.mubr.bf16.mxu0 0
        %2915 = vmatmul.mubr.bf16.gmra.mxu0 %v2654
        %v2916 = vpop.f32.mrf.mxu0
        %v2917 = vadd.f32 %v2680, %v2916
        %v2918 = vpop.f32.mrf.mxu0
        %v2919 = vpop.f32.mrf.mxu0
        %v2920 = vadd.f32 %v2680, %v2919
        %v2921 = vpop.f32.mrf.mxu0
        %2922 = vmatprep.mubr.bf16.mxu0 0
        %2923 = vmatmul.mubr.bf16.gmra.mxu0 %v2655
        %v2924 = vpop.f32.mrf.mxu0
        %v2925 = vadd.f32 %v2680, %v2924
        %v2926 = vpop.f32.mrf.mxu0
        %v2927 = vpop.f32.mrf.mxu0
        %v2928 = vadd.f32 %v2680, %v2927
        %v2929 = vpop.f32.mrf.mxu0
        %2930 = vmatprep.mubr.bf16.mxu0 0
        %2931 = vmatmul.mubr.bf16.gmra.mxu0 %v2656
        %v2932 = vpop.f32.mrf.mxu0
        %v2933 = vadd.f32 %v2680, %v2932
        %v2934 = vpop.f32.mrf.mxu0
        %v2935 = vpop.f32.mrf.mxu0
        %v2936 = vadd.f32 %v2680, %v2935
        %v2937 = vpop.f32.mrf.mxu0
        %2938 = vmatprep.mubr.bf16.mxu0 0
        %2939 = vmatmul.mubr.bf16.gmra.mxu0 %v2657
        %v2940 = vpop.f32.mrf.mxu0
        %v2941 = vadd.f32 %v2680, %v2940
        %v2942 = vpop.f32.mrf.mxu0
        %v2943 = vpop.f32.mrf.mxu0
        %v2944 = vadd.f32 %v2680, %v2943
        %v2945 = vpop.f32.mrf.mxu0
        %2946 = vmatprep.mubr.bf16.mxu0 0
        %2947 = vmatmul.mubr.bf16.gmra.mxu0 %v2658
        %v2948 = vpop.f32.mrf.mxu0
        %v2949 = vadd.f32 %v2680, %v2948
        %v2950 = vpop.f32.mrf.mxu0
        %v2951 = vpop.f32.mrf.mxu0
        %v2952 = vadd.f32 %v2680, %v2951
        %v2953 = vpop.f32.mrf.mxu0
        %2954 = vdwg.mxu0
        %v2955 = vmax.f32 %v2765, 0.0
        %v2956 = vmax.f32 %v2768, 0.0
        %v2957 = vmax.f32 %v2773, 0.0
        %v2958 = vmax.f32 %v2776, 0.0
        %v2959 = vmax.f32 %v2781, 0.0
        %v2960 = vmax.f32 %v2784, 0.0
        %v2961 = vmax.f32 %v2789, 0.0
        %v2962 = vmax.f32 %v2792, 0.0
        %v2963 = vmax.f32 %v2797, 0.0
        %v2964 = vmax.f32 %v2800, 0.0
        %v2965 = vmax.f32 %v2805, 0.0
        %v2966 = vmax.f32 %v2808, 0.0
        %v2967 = vmax.f32 %v2813, 0.0
        %v2968 = vmax.f32 %v2816, 0.0
        %v2969 = vmax.f32 %v2821, 0.0
        %v2970 = vmax.f32 %v2824, 0.0
        %v2971 = vmax.f32 %v2829, 0.0
        %v2972 = vmax.f32 %v2832, 0.0
        %v2973 = vmax.f32 %v2837, 0.0
        %v2974 = vmax.f32 %v2840, 0.0
        %v2975 = vmax.f32 %v2845, 0.0
        %v2976 = vmax.f32 %v2848, 0.0
        %v2977 = vmax.f32 %v2853, 0.0
        %v2978 = vmax.f32 %v2856, 0.0
        %v2979 = vmax.f32 %v2861, 0.0
        %v2980 = vmax.f32 %v2864, 0.0
        %v2981 = vmax.f32 %v2869, 0.0
        %v2982 = vmax.f32 %v2872, 0.0
        %v2983 = vmax.f32 %v2877, 0.0
        %v2984 = vmax.f32 %v2880, 0.0
        %v2985 = vmax.f32 %v2885, 0.0
        %v2986 = vmax.f32 %v2888, 0.0
        %v2987 = vmax.f32 %v2893, 0.0
        %v2988 = vmax.f32 %v2896, 0.0
        %v2989 = vmax.f32 %v2901, 0.0
        %v2990 = vmax.f32 %v2904, 0.0
        %v2991 = vmax.f32 %v2909, 0.0
        %v2992 = vmax.f32 %v2912, 0.0
        %v2993 = vmax.f32 %v2917, 0.0
        %v2994 = vmax.f32 %v2920, 0.0
        %v2995 = vmax.f32 %v2925, 0.0
        %v2996 = vmax.f32 %v2928, 0.0
        %v2997 = vmax.f32 %v2933, 0.0
        %v2998 = vmax.f32 %v2936, 0.0
        %v2999 = vmax.f32 %v2941, 0.0
        %v3000 = vmax.f32 %v2944, 0.0
        %v3001 = vmax.f32 %v2949, 0.0
        %v3002 = vmax.f32 %v2952, 0.0
        %v3003 = vld [vmem:[%s7] sm:$0x1]
        %v3005 = vlaneseq
        %v3006 = vshrl.u32 %v3005, 7
        %v3007 = vsub.s32 0, %v3006
        %v3008 = vrot.slane %v3003, %v3007
        %v3010 = vmul.f32 %v2955, %v3008
        %v3011 = vmul.f32 %v2956, %v3008
        %v3012 = vmul.f32 %v2957, %v3008
        %v3013 = vmul.f32 %v2958, %v3008
        %v3014 = vmul.f32 %v2959, %v3008
        %v3015 = vmul.f32 %v2960, %v3008
        %v3016 = vmul.f32 %v2961, %v3008
        %v3017 = vmul.f32 %v2962, %v3008
        %v3018 = vmul.f32 %v2963, %v3008
        %v3019 = vmul.f32 %v2964, %v3008
        %v3020 = vmul.f32 %v2965, %v3008
        %v3021 = vmul.f32 %v2966, %v3008
        %v3022 = vmul.f32 %v2967, %v3008
        %v3023 = vmul.f32 %v2968, %v3008
        %v3024 = vmul.f32 %v2969, %v3008
        %v3025 = vmul.f32 %v2970, %v3008
        %v3026 = vmul.f32 %v2971, %v3008
        %v3027 = vmul.f32 %v2972, %v3008
        %v3028 = vmul.f32 %v2973, %v3008
        %v3029 = vmul.f32 %v2974, %v3008
        %v3030 = vmul.f32 %v2975, %v3008
        %v3031 = vmul.f32 %v2976, %v3008
        %v3032 = vmul.f32 %v2977, %v3008
        %v3033 = vmul.f32 %v2978, %v3008
        %v3034 = vmul.f32 %v2979, %v3008
        %v3035 = vmul.f32 %v2980, %v3008
        %v3036 = vmul.f32 %v2981, %v3008
        %v3037 = vmul.f32 %v2982, %v3008
        %v3038 = vmul.f32 %v2983, %v3008
        %v3039 = vmul.f32 %v2984, %v3008
        %v3040 = vmul.f32 %v2985, %v3008
        %v3041 = vmul.f32 %v2986, %v3008
        %v3042 = vmul.f32 %v2987, %v3008
        %v3043 = vmul.f32 %v2988, %v3008
        %v3044 = vmul.f32 %v2989, %v3008
        %v3045 = vmul.f32 %v2990, %v3008
        %v3046 = vmul.f32 %v2991, %v3008
        %v3047 = vmul.f32 %v2992, %v3008
        %v3048 = vmul.f32 %v2993, %v3008
        %v3049 = vmul.f32 %v2994, %v3008
        %v3050 = vmul.f32 %v2995, %v3008
        %v3051 = vmul.f32 %v2996, %v3008
        %v3052 = vmul.f32 %v2997, %v3008
        %v3053 = vmul.f32 %v2998, %v3008
        %v3054 = vmul.f32 %v2999, %v3008
        %v3055 = vmul.f32 %v3000, %v3008
        %v3056 = vmul.f32 %v3001, %v3008
        %v3057 = vmul.f32 %v3002, %v3008
        %vm3058 = vcmask 523264
        %v3059 = vsel %vm3058, %v3010, 0.0
        %3060 = vadd.xlane.f32.xlu0 %v3059
        %v3061 = vpop.xlane.xlu0 %3060
        %v3062 = vsel %vm3058, %v3011, 0.0
        %3063 = vadd.xlane.f32.xlu0 %v3062
        %v3064 = vpop.xlane.xlu0 %3063
        %v3065 = vsel %vm3058, %v3012, 0.0
        %3066 = vadd.xlane.f32.xlu0 %v3065
        %v3067 = vpop.xlane.xlu0 %3066
        %v3068 = vsel %vm3058, %v3013, 0.0
        %3069 = vadd.xlane.f32.xlu0 %v3068
        %v3070 = vpop.xlane.xlu0 %3069
        %v3071 = vsel %vm3058, %v3014, 0.0
        %3072 = vadd.xlane.f32.xlu0 %v3071
        %v3073 = vpop.xlane.xlu0 %3072
        %v3074 = vsel %vm3058, %v3015, 0.0
        %3075 = vadd.xlane.f32.xlu0 %v3074
        %v3076 = vpop.xlane.xlu0 %3075
        %v3077 = vsel %vm3058, %v3016, 0.0
        %3078 = vadd.xlane.f32.xlu0 %v3077
        %v3079 = vpop.xlane.xlu0 %3078
        %v3080 = vsel %vm3058, %v3017, 0.0
        %3081 = vadd.xlane.f32.xlu0 %v3080
        %v3082 = vpop.xlane.xlu0 %3081
        %v3083 = vsel %vm3058, %v3018, 0.0
        %3084 = vadd.xlane.f32.xlu0 %v3083
        %v3085 = vpop.xlane.xlu0 %3084
        %v3086 = vsel %vm3058, %v3019, 0.0
        %3087 = vadd.xlane.f32.xlu0 %v3086
        %v3088 = vpop.xlane.xlu0 %3087
        %v3089 = vsel %vm3058, %v3020, 0.0
        %3090 = vadd.xlane.f32.xlu0 %v3089
        %v3091 = vpop.xlane.xlu0 %3090
        %v3092 = vsel %vm3058, %v3021, 0.0
        %3093 = vadd.xlane.f32.xlu0 %v3092
        %v3094 = vpop.xlane.xlu0 %3093
        %v3095 = vsel %vm3058, %v3022, 0.0
        %3096 = vadd.xlane.f32.xlu0 %v3095
        %v3097 = vpop.xlane.xlu0 %3096
        %v3098 = vsel %vm3058, %v3023, 0.0
        %3099 = vadd.xlane.f32.xlu0 %v3098
        %v3100 = vpop.xlane.xlu0 %3099
        %v3101 = vsel %vm3058, %v3024, 0.0
        %3102 = vadd.xlane.f32.xlu0 %v3101
        %v3103 = vpop.xlane.xlu0 %3102
        %v3104 = vsel %vm3058, %v3025, 0.0
        %3105 = vadd.xlane.f32.xlu0 %v3104
        %v3106 = vpop.xlane.xlu0 %3105
        %v3107 = vsel %vm3058, %v3026, 0.0
        %3108 = vadd.xlane.f32.xlu0 %v3107
        %v3109 = vpop.xlane.xlu0 %3108
        %v3110 = vsel %vm3058, %v3027, 0.0
        %3111 = vadd.xlane.f32.xlu0 %v3110
        %v3112 = vpop.xlane.xlu0 %3111
        %v3113 = vsel %vm3058, %v3028, 0.0
        %3114 = vadd.xlane.f32.xlu0 %v3113
        %v3115 = vpop.xlane.xlu0 %3114
        %v3116 = vsel %vm3058, %v3029, 0.0
        %3117 = vadd.xlane.f32.xlu0 %v3116
        %v3118 = vpop.xlane.xlu0 %3117
        %v3119 = vsel %vm3058, %v3030, 0.0
        %3120 = vadd.xlane.f32.xlu0 %v3119
        %v3121 = vpop.xlane.xlu0 %3120
        %v3122 = vsel %vm3058, %v3031, 0.0
        %3123 = vadd.xlane.f32.xlu0 %v3122
        %v3124 = vpop.xlane.xlu0 %3123
        %v3125 = vsel %vm3058, %v3032, 0.0
        %3126 = vadd.xlane.f32.xlu0 %v3125
        %v3127 = vpop.xlane.xlu0 %3126
        %v3128 = vsel %vm3058, %v3033, 0.0
        %3129 = vadd.xlane.f32.xlu0 %v3128
        %v3130 = vpop.xlane.xlu0 %3129
        %v3131 = vsel %vm3058, %v3034, 0.0
        %3132 = vadd.xlane.f32.xlu0 %v3131
        %v3133 = vpop.xlane.xlu0 %3132
        %v3134 = vsel %vm3058, %v3035, 0.0
        %3135 = vadd.xlane.f32.xlu0 %v3134
        %v3136 = vpop.xlane.xlu0 %3135
        %v3137 = vsel %vm3058, %v3036, 0.0
        %3138 = vadd.xlane.f32.xlu0 %v3137
        %v3139 = vpop.xlane.xlu0 %3138
        %v3140 = vsel %vm3058, %v3037, 0.0
        %3141 = vadd.xlane.f32.xlu0 %v3140
        %v3142 = vpop.xlane.xlu0 %3141
        %v3143 = vsel %vm3058, %v3038, 0.0
        %3144 = vadd.xlane.f32.xlu0 %v3143
        %v3145 = vpop.xlane.xlu0 %3144
        %v3146 = vsel %vm3058, %v3039, 0.0
        %3147 = vadd.xlane.f32.xlu0 %v3146
        %v3148 = vpop.xlane.xlu0 %3147
        %v3149 = vsel %vm3058, %v3040, 0.0
        %3150 = vadd.xlane.f32.xlu0 %v3149
        %v3151 = vpop.xlane.xlu0 %3150
        %v3152 = vsel %vm3058, %v3041, 0.0
        %3153 = vadd.xlane.f32.xlu0 %v3152
        %v3154 = vpop.xlane.xlu0 %3153
        %v3155 = vsel %vm3058, %v3042, 0.0
        %3156 = vadd.xlane.f32.xlu0 %v3155
        %v3157 = vpop.xlane.xlu0 %3156
        %v3158 = vsel %vm3058, %v3043, 0.0
        %3159 = vadd.xlane.f32.xlu0 %v3158
        %v3160 = vpop.xlane.xlu0 %3159
        %v3161 = vsel %vm3058, %v3044, 0.0
        %3162 = vadd.xlane.f32.xlu0 %v3161
        %v3163 = vpop.xlane.xlu0 %3162
        %v3164 = vsel %vm3058, %v3045, 0.0
        %3165 = vadd.xlane.f32.xlu0 %v3164
        %v3166 = vpop.xlane.xlu0 %3165
        %v3167 = vsel %vm3058, %v3046, 0.0
        %3168 = vadd.xlane.f32.xlu0 %v3167
        %v3169 = vpop.xlane.xlu0 %3168
        %v3170 = vsel %vm3058, %v3047, 0.0
        %3171 = vadd.xlane.f32.xlu0 %v3170
        %v3172 = vpop.xlane.xlu0 %3171
        %v3173 = vsel %vm3058, %v3048, 0.0
        %3174 = vadd.xlane.f32.xlu0 %v3173
        %v3175 = vpop.xlane.xlu0 %3174
        %v3176 = vsel %vm3058, %v3049, 0.0
        %3177 = vadd.xlane.f32.xlu0 %v3176
        %v3178 = vpop.xlane.xlu0 %3177
        %v3179 = vsel %vm3058, %v3050, 0.0
        %3180 = vadd.xlane.f32.xlu0 %v3179
        %v3181 = vpop.xlane.xlu0 %3180
        %v3182 = vsel %vm3058, %v3051, 0.0
        %3183 = vadd.xlane.f32.xlu0 %v3182
        %v3184 = vpop.xlane.xlu0 %3183
        %v3185 = vsel %vm3058, %v3052, 0.0
        %3186 = vadd.xlane.f32.xlu0 %v3185
        %v3187 = vpop.xlane.xlu0 %3186
        %v3188 = vsel %vm3058, %v3053, 0.0
        %3189 = vadd.xlane.f32.xlu0 %v3188
        %v3190 = vpop.xlane.xlu0 %3189
        %v3191 = vsel %vm3058, %v3054, 0.0
        %3192 = vadd.xlane.f32.xlu0 %v3191
        %v3193 = vpop.xlane.xlu0 %3192
        %v3194 = vsel %vm3058, %v3055, 0.0
        %3195 = vadd.xlane.f32.xlu0 %v3194
        %v3196 = vpop.xlane.xlu0 %3195
        %v3197 = vsel %vm3058, %v3056, 0.0
        %3198 = vadd.xlane.f32.xlu0 %v3197
        %v3199 = vpop.xlane.xlu0 %3198
        %v3200 = vsel %vm3058, %v3057, 0.0
        %3201 = vadd.xlane.f32.xlu0 %v3200
        %v3202 = vpop.xlane.xlu0 %3201
        %s3203 = sld [smem:[#allocation2]]
        %v3204 = vstv %s3203
        %v3205 = vadd.f32 %v3061, %v3204
        %v3206 = vadd.f32 %v3064, %v3204
        %v3207 = vadd.f32 %v3067, %v3204
        %v3208 = vadd.f32 %v3070, %v3204
        %v3209 = vadd.f32 %v3073, %v3204
        %v3210 = vadd.f32 %v3076, %v3204
        %v3211 = vadd.f32 %v3079, %v3204
        %v3212 = vadd.f32 %v3082, %v3204
        %v3213 = vadd.f32 %v3085, %v3204
        %v3214 = vadd.f32 %v3088, %v3204
        %v3215 = vadd.f32 %v3091, %v3204
        %v3216 = vadd.f32 %v3094, %v3204
        %v3217 = vadd.f32 %v3097, %v3204
        %v3218 = vadd.f32 %v3100, %v3204
        %v3219 = vadd.f32 %v3103, %v3204
        %v3220 = vadd.f32 %v3106, %v3204
        %v3221 = vadd.f32 %v3109, %v3204
        %v3222 = vadd.f32 %v3112, %v3204
        %v3223 = vadd.f32 %v3115, %v3204
        %v3224 = vadd.f32 %v3118, %v3204
        %v3225 = vadd.f32 %v3121, %v3204
        %v3226 = vadd.f32 %v3124, %v3204
        %v3227 = vadd.f32 %v3127, %v3204
        %v3228 = vadd.f32 %v3130, %v3204
        %v3229 = vadd.f32 %v3133, %v3204
        %v3230 = vadd.f32 %v3136, %v3204
        %v3231 = vadd.f32 %v3139, %v3204
        %v3232 = vadd.f32 %v3142, %v3204
        %v3233 = vadd.f32 %v3145, %v3204
        %v3234 = vadd.f32 %v3148, %v3204
        %v3235 = vadd.f32 %v3151, %v3204
        %v3236 = vadd.f32 %v3154, %v3204
        %v3237 = vadd.f32 %v3157, %v3204
        %v3238 = vadd.f32 %v3160, %v3204
        %v3239 = vadd.f32 %v3163, %v3204
        %v3240 = vadd.f32 %v3166, %v3204
        %v3241 = vadd.f32 %v3169, %v3204
        %v3242 = vadd.f32 %v3172, %v3204
        %v3243 = vadd.f32 %v3175, %v3204
        %v3244 = vadd.f32 %v3178, %v3204
        %v3245 = vadd.f32 %v3181, %v3204
        %v3246 = vadd.f32 %v3184, %v3204
        %v3247 = vadd.f32 %v3187, %v3204
        %v3248 = vadd.f32 %v3190, %v3204
        %v3249 = vadd.f32 %v3193, %v3204
        %v3250 = vadd.f32 %v3196, %v3204
        %v3251 = vadd.f32 %v3199, %v3204
        %v3252 = vadd.f32 %v3202, %v3204
        %vm3253 = vcmask 7168
        %v3254 = vsel %vm3253, %v3205, %v3221
        %v3255 = vsel %vm3253, %v3206, %v3222
        %v3256 = vsel %vm3253, %v3207, %v3223
        %v3257 = vsel %vm3253, %v3208, %v3224
        %v3258 = vsel %vm3253, %v3209, %v3225
        %v3259 = vsel %vm3253, %v3210, %v3226
        %v3260 = vsel %vm3253, %v3211, %v3227
        %v3261 = vsel %vm3253, %v3212, %v3228
        %v3262 = vsel %vm3253, %v3213, %v3229
        %v3263 = vsel %vm3253, %v3214, %v3230
        %v3264 = vsel %vm3253, %v3215, %v3231
        %v3265 = vsel %vm3253, %v3216, %v3232
        %v3266 = vsel %vm3253, %v3217, %v3233
        %v3267 = vsel %vm3253, %v3218, %v3234
        %v3268 = vsel %vm3253, %v3219, %v3235
        %v3269 = vsel %vm3253, %v3220, %v3236
        %vm3270 = vcmask 15360
        %v3271 = vsel %vm3270, %v3254, %v3237
        %v3272 = vsel %vm3270, %v3255, %v3238
        %v3273 = vsel %vm3270, %v3256, %v3239
        %v3274 = vsel %vm3270, %v3257, %v3240
        %v3275 = vsel %vm3270, %v3258, %v3241
        %v3276 = vsel %vm3270, %v3259, %v3242
        %v3277 = vsel %vm3270, %v3260, %v3243
        %v3278 = vsel %vm3270, %v3261, %v3244
        %v3279 = vsel %vm3270, %v3262, %v3245
        %v3280 = vsel %vm3270, %v3263, %v3246
        %v3281 = vsel %vm3270, %v3264, %v3247
        %v3282 = vsel %vm3270, %v3265, %v3248
        %v3283 = vsel %vm3270, %v3266, %v3249
        %v3284 = vsel %vm3270, %v3267, %v3250
        %v3285 = vsel %vm3270, %v3268, %v3251
        %v3286 = vsel %vm3270, %v3269, %v3252
        %vm3287 = vcmask 23552
        %v3288 = vsel %vm3287, %v3271, -inf
        %3289 = vmax.xlane.f32.xlu0 %v3288
        %v3290 = vpop.xlane.xlu0 %3289
        %v3291 = vsel %vm3287, %v3272, -inf
        %3292 = vmax.xlane.f32.xlu0 %v3291
        %v3293 = vpop.xlane.xlu0 %3292
        %v3294 = vsel %vm3287, %v3273, -inf
        %3295 = vmax.xlane.f32.xlu0 %v3294
        %v3296 = vpop.xlane.xlu0 %3295
        %v3297 = vsel %vm3287, %v3274, -inf
        %3298 = vmax.xlane.f32.xlu0 %v3297
        %v3299 = vpop.xlane.xlu0 %3298
        %v3300 = vsel %vm3287, %v3275, -inf
        %3301 = vmax.xlane.f32.xlu0 %v3300
        %v3302 = vpop.xlane.xlu0 %3301
        %v3303 = vsel %vm3287, %v3276, -inf
        %3304 = vmax.xlane.f32.xlu0 %v3303
        %v3305 = vpop.xlane.xlu0 %3304
        %v3306 = vsel %vm3287, %v3277, -inf
        %3307 = vmax.xlane.f32.xlu0 %v3306
        %v3308 = vpop.xlane.xlu0 %3307
        %v3309 = vsel %vm3287, %v3278, -inf
        %3310 = vmax.xlane.f32.xlu0 %v3309
        %v3311 = vpop.xlane.xlu0 %3310
        %v3312 = vsel %vm3287, %v3279, -inf
        %3313 = vmax.xlane.f32.xlu0 %v3312
        %v3314 = vpop.xlane.xlu0 %3313
        %v3315 = vsel %vm3287, %v3280, -inf
        %3316 = vmax.xlane.f32.xlu0 %v3315
        %v3317 = vpop.xlane.xlu0 %3316
        %v3318 = vsel %vm3287, %v3281, -inf
        %3319 = vmax.xlane.f32.xlu0 %v3318
        %v3320 = vpop.xlane.xlu0 %3319
        %v3321 = vsel %vm3287, %v3282, -inf
        %3322 = vmax.xlane.f32.xlu0 %v3321
        %v3323 = vpop.xlane.xlu0 %3322
        %v3324 = vsel %vm3287, %v3283, -inf
        %3325 = vmax.xlane.f32.xlu0 %v3324
        %v3326 = vpop.xlane.xlu0 %3325
        %v3327 = vsel %vm3287, %v3284, -inf
        %3328 = vmax.xlane.f32.xlu0 %v3327
        %v3329 = vpop.xlane.xlu0 %3328
        %v3330 = vsel %vm3287, %v3285, -inf
        %3331 = vmax.xlane.f32.xlu0 %v3330
        %v3332 = vpop.xlane.xlu0 %3331
        %v3333 = vsel %vm3287, %v3286, -inf
        %3334 = vmax.xlane.f32.xlu0 %v3333
        %v3335 = vpop.xlane.xlu0 %3334
        %v3336 = vsub.f32 %v3271, %v3290
        %v3337 = vsub.f32 %v3272, %v3293
        %v3338 = vsub.f32 %v3273, %v3296
        %v3339 = vsub.f32 %v3274, %v3299
        %v3340 = vsub.f32 %v3275, %v3302
        %v3341 = vsub.f32 %v3276, %v3305
        %v3342 = vsub.f32 %v3277, %v3308
        %v3343 = vsub.f32 %v3278, %v3311
        %v3344 = vsub.f32 %v3279, %v3314
        %v3345 = vsub.f32 %v3280, %v3317
        %v3346 = vsub.f32 %v3281, %v3320
        %v3347 = vsub.f32 %v3282, %v3323
        %v3348 = vsub.f32 %v3283, %v3326
        %v3349 = vsub.f32 %v3284, %v3329
        %v3350 = vsub.f32 %v3285, %v3332
        %v3351 = vsub.f32 %v3286, %v3335
        %v3352 = vmul.f32 %v3336, 1.442695
        %v3353 = vpow.pop %v3352
        %v3354 = vmul.f32 %v3337, 1.442695
        %v3355 = vpow.pop %v3354
        %v3356 = vmul.f32 %v3338, 1.442695
        %v3357 = vpow.pop %v3356
        %v3358 = vmul.f32 %v3339, 1.442695
        %v3359 = vpow.pop %v3358
        %v3360 = vmul.f32 %v3340, 1.442695
        %v3361 = vpow.pop %v3360
        %v3362 = vmul.f32 %v3341, 1.442695
        %v3363 = vpow.pop %v3362
        %v3364 = vmul.f32 %v3342, 1.442695
        %v3365 = vpow.pop %v3364
        %v3366 = vmul.f32 %v3343, 1.442695
        %v3367 = vpow.pop %v3366
        %v3368 = vmul.f32 %v3344, 1.442695
        %v3369 = vpow.pop %v3368
        %v3370 = vmul.f32 %v3345, 1.442695
        %v3371 = vpow.pop %v3370
        %v3372 = vmul.f32 %v3346, 1.442695
        %v3373 = vpow.pop %v3372
        %v3374 = vmul.f32 %v3347, 1.442695
        %v3375 = vpow.pop %v3374
        %v3376 = vmul.f32 %v3348, 1.442695
        %v3377 = vpow.pop %v3376
        %v3378 = vmul.f32 %v3349, 1.442695
        %v3379 = vpow.pop %v3378
        %v3380 = vmul.f32 %v3350, 1.442695
        %v3381 = vpow.pop %v3380
        %v3382 = vmul.f32 %v3351, 1.442695
        %v3383 = vpow.pop %v3382
        %v3384 = vsel %vm3287, %v3353, 0.0
        %3385 = vadd.xlane.f32.xlu0 %v3384
        %v3386 = vpop.xlane.xlu0 %3385
        %v3387 = vsel %vm3287, %v3355, 0.0
        %3388 = vadd.xlane.f32.xlu0 %v3387
        %v3389 = vpop.xlane.xlu0 %3388
        %v3390 = vsel %vm3287, %v3357, 0.0
        %3391 = vadd.xlane.f32.xlu0 %v3390
        %v3392 = vpop.xlane.xlu0 %3391
        %v3393 = vsel %vm3287, %v3359, 0.0
        %3394 = vadd.xlane.f32.xlu0 %v3393
        %v3395 = vpop.xlane.xlu0 %3394
        %v3396 = vsel %vm3287, %v3361, 0.0
        %3397 = vadd.xlane.f32.xlu0 %v3396
        %v3398 = vpop.xlane.xlu0 %3397
        %v3399 = vsel %vm3287, %v3363, 0.0
        %3400 = vadd.xlane.f32.xlu0 %v3399
        %v3401 = vpop.xlane.xlu0 %3400
        %v3402 = vsel %vm3287, %v3365, 0.0
        %3403 = vadd.xlane.f32.xlu0 %v3402
        %v3404 = vpop.xlane.xlu0 %3403
        %v3405 = vsel %vm3287, %v3367, 0.0
        %3406 = vadd.xlane.f32.xlu0 %v3405
        %v3407 = vpop.xlane.xlu0 %3406
        %v3408 = vsel %vm3287, %v3369, 0.0
        %3409 = vadd.xlane.f32.xlu0 %v3408
        %v3410 = vpop.xlane.xlu0 %3409
        %v3411 = vsel %vm3287, %v3371, 0.0
        %3412 = vadd.xlane.f32.xlu0 %v3411
        %v3413 = vpop.xlane.xlu0 %3412
        %v3414 = vsel %vm3287, %v3373, 0.0
        %3415 = vadd.xlane.f32.xlu0 %v3414
        %v3416 = vpop.xlane.xlu0 %3415
        %v3417 = vsel %vm3287, %v3375, 0.0
        %3418 = vadd.xlane.f32.xlu0 %v3417
        %v3419 = vpop.xlane.xlu0 %3418
        %v3420 = vsel %vm3287, %v3377, 0.0
        %3421 = vadd.xlane.f32.xlu0 %v3420
        %v3422 = vpop.xlane.xlu0 %3421
        %v3423 = vsel %vm3287, %v3379, 0.0
        %3424 = vadd.xlane.f32.xlu0 %v3423
        %v3425 = vpop.xlane.xlu0 %3424
        %v3426 = vsel %vm3287, %v3381, 0.0
        %3427 = vadd.xlane.f32.xlu0 %v3426
        %v3428 = vpop.xlane.xlu0 %3427
        %v3429 = vsel %vm3287, %v3383, 0.0
        %3430 = vadd.xlane.f32.xlu0 %v3429
        %v3431 = vpop.xlane.xlu0 %3430
        %v3432 = vrcp.pop %v3386
        %v3433 = vmul.f32 %v3353, %v3432
        %v3434 = vrcp.pop %v3389
        %v3435 = vmul.f32 %v3355, %v3434
        %v3436 = vrcp.pop %v3392
        %v3437 = vmul.f32 %v3357, %v3436
        %v3438 = vrcp.pop %v3395
        %v3439 = vmul.f32 %v3359, %v3438
        %v3440 = vrcp.pop %v3398
        %v3441 = vmul.f32 %v3361, %v3440
        %v3442 = vrcp.pop %v3401
        %v3443 = vmul.f32 %v3363, %v3442
        %v3444 = vrcp.pop %v3404
        %v3445 = vmul.f32 %v3365, %v3444
        %v3446 = vrcp.pop %v3407
        %v3447 = vmul.f32 %v3367, %v3446
        %v3448 = vrcp.pop %v3410
        %v3449 = vmul.f32 %v3369, %v3448
        %v3450 = vrcp.pop %v3413
        %v3451 = vmul.f32 %v3371, %v3450
        %v3452 = vrcp.pop %v3416
        %v3453 = vmul.f32 %v3373, %v3452
        %v3454 = vrcp.pop %v3419
        %v3455 = vmul.f32 %v3375, %v3454
        %v3456 = vrcp.pop %v3422
        %v3457 = vmul.f32 %v3377, %v3456
        %v3458 = vrcp.pop %v3425
        %v3459 = vmul.f32 %v3379, %v3458
        %v3460 = vrcp.pop %v3428
        %v3461 = vmul.f32 %v3381, %v3460
        %v3462 = vrcp.pop %v3431
        %v3463 = vmul.f32 %v3383, %v3462
        %v3464 = vld [vmem:[%s10] sm:$0x1]
        %v3466 = vlaneseq
        %v3467 = vshrl.u32 %v3466, 7
        %v3468 = vsub.s32 0, %v3467
        %v3469 = vrot.slane %v3464, %v3468
        %v3471 = vadd.f32 %v2571, %v3469
        %v3472 = vadd.f32 %v2572, %v3469
        %v3473 = vadd.f32 %v2573, %v3469
        %v3474 = vadd.f32 %v2574, %v3469
        %v3475 = vadd.f32 %v2575, %v3469
        %v3476 = vadd.f32 %v2576, %v3469
        %v3477 = vadd.f32 %v2577, %v3469
        %v3478 = vadd.f32 %v2578, %v3469
        %v3479 = vadd.f32 %v2579, %v3469
        %v3480 = vadd.f32 %v2580, %v3469
        %v3481 = vadd.f32 %v2581, %v3469
        %v3482 = vadd.f32 %v2582, %v3469
        %v3483 = vadd.f32 %v2583, %v3469
        %v3484 = vadd.f32 %v2584, %v3469
        %v3485 = vadd.f32 %v2585, %v3469
        %v3486 = vadd.f32 %v2586, %v3469
        %v3487 = vmax.f32 %v3471, 0.0
        %v3488 = vmax.f32 %v3472, 0.0
        %v3489 = vmax.f32 %v3473, 0.0
        %v3490 = vmax.f32 %v3474, 0.0
        %v3491 = vmax.f32 %v3475, 0.0
        %v3492 = vmax.f32 %v3476, 0.0
        %v3493 = vmax.f32 %v3477, 0.0
        %v3494 = vmax.f32 %v3478, 0.0
        %v3495 = vmax.f32 %v3479, 0.0
        %v3496 = vmax.f32 %v3480, 0.0
        %v3497 = vmax.f32 %v3481, 0.0
        %v3498 = vmax.f32 %v3482, 0.0
        %v3499 = vmax.f32 %v3483, 0.0
        %v3500 = vmax.f32 %v3484, 0.0
        %v3501 = vmax.f32 %v3485, 0.0
        %v3502 = vmax.f32 %v3486, 0.0
        %v3503 = vpack.c.bf16 %v3488, %v3487
        %v3504 = vpack.c.bf16 %v3490, %v3489
        %v3505 = vpack.c.bf16 %v3492, %v3491
        %v3506 = vpack.c.bf16 %v3494, %v3493
        %v3507 = vpack.c.bf16 %v3496, %v3495
        %v3508 = vpack.c.bf16 %v3498, %v3497
        %v3509 = vpack.c.bf16 %v3500, %v3499
        %v3510 = vpack.c.bf16 %v3502, %v3501
        %v3511 = vld [vmem:[%s11] sm:$0xf]
        %v3512 = vld [vmem:[%s11 + $0x4] sm:$0xf]
        %v3513 = vld [vmem:[%s11 + $0x8] sm:$0xf]
        %v3514 = vld [vmem:[%s11 + $0xc] sm:$0xf]
        %v3515 = vld [vmem:[%s11 + $0x10] sm:$0xf]
        %v3516 = vld [vmem:[%s11 + $0x14] sm:$0xf]
        %v3517 = vld [vmem:[%s11 + $0x18] sm:$0xf]
        %v3518 = vld [vmem:[%s11 + $0x1c] sm:$0xf]
        %v3519 = vld [vmem:[%s11 + $0x20] sm:$0xf]
        %v3520 = vld [vmem:[%s11 + $0x24] sm:$0xf]
        %v3521 = vld [vmem:[%s11 + $0x28] sm:$0xf]
        %v3522 = vld [vmem:[%s11 + $0x2c] sm:$0xf]
        %v3523 = vld [vmem:[%s11 + $0x30] sm:$0xf]
        %v3524 = vld [vmem:[%s11 + $0x34] sm:$0xf]
        %v3525 = vld [vmem:[%s11 + $0x38] sm:$0xf]
        %v3526 = vld [vmem:[%s11 + $0x3c] sm:$0xf]
        %v3527 = vld [vmem:[%s12] sm:$0x1]
        %v3529 = vlaneseq
        %v3530 = vshrl.u32 %v3529, 7
        %v3531 = vsub.s32 0, %v3530
        %v3532 = vrot.slane %v3527, %v3531
        %v3550 = vunpack.c.l.b16 %v3511
        %v3551 = vunpack.c.l.b16 %v3512
        %v3552 = vunpack.c.l.b16 %v3513
        %v3553 = vunpack.c.l.b16 %v3514
        %v3554 = vunpack.c.l.b16 %v3515
        %v3555 = vunpack.c.l.b16 %v3516
        %v3556 = vunpack.c.l.b16 %v3517
        %v3557 = vunpack.c.l.b16 %v3518
        %v3558 = vunpack.c.l.b16 %v3519
        %v3559 = vunpack.c.l.b16 %v3520
        %v3560 = vunpack.c.l.b16 %v3521
        %v3561 = vunpack.c.l.b16 %v3522
        %v3562 = vunpack.c.l.b16 %v3523
        %v3563 = vunpack.c.l.b16 %v3524
        %v3564 = vunpack.c.l.b16 %v3525
        %v3565 = vunpack.c.l.b16 %v3526
        %v3566 = vpack.c.b16 %v3551, %v3550
        %v3567 = vpack.c.b16 %v3553, %v3552
        %v3568 = vpack.c.b16 %v3555, %v3554
        %v3569 = vpack.c.b16 %v3557, %v3556
        %v3570 = vpack.c.b16 %v3559, %v3558
        %v3571 = vpack.c.b16 %v3561, %v3560
        %v3572 = vpack.c.b16 %v3563, %v3562
        %v3573 = vpack.c.b16 %v3565, %v3564
        %3582 = vmatprep.subr.bf16.mxu0 0
        %3583 = vmatpush1.bf16.msra.mxu0 %v3573
        %3584 = vmatprep.subr.bf16.mxu0 0
        %3585 = vmatpush1.bf16.msra.mxu0 %v3572
        %3586 = vmatprep.subr.bf16.mxu0 0
        %3587 = vmatpush1.bf16.msra.mxu0 %v3571
        %3588 = vmatprep.subr.bf16.mxu0 0
        %3589 = vmatpush1.bf16.msra.mxu0 %v3570
        %3590 = vmatprep.subr.bf16.mxu0 0
        %3591 = vmatpush1.bf16.msra.mxu0 %v3569
        %3592 = vmatprep.subr.bf16.mxu0 0
        %3593 = vmatpush1.bf16.msra.mxu0 %v3568
        %3594 = vmatprep.subr.bf16.mxu0 0
        %3595 = vmatpush1.bf16.msra.mxu0 %v3567
        %3596 = vmatprep.subr.bf16.mxu0 0
        %3597 = vmatpush1.bf16.msra.mxu0 %v3566
        %3598 = vmatprep.subr.bf16.mxu0 0
        %3599 = vmatpush2.bf16.msra.mxu0 0
        %3600 = vmatprep.subr.bf16.mxu0 0
        %3601 = vmatpush2.bf16.msra.mxu0 0
        %3602 = vmatprep.subr.bf16.mxu0 0
        %3603 = vmatpush2.bf16.msra.mxu0 0
        %3604 = vmatprep.subr.bf16.mxu0 0
        %3605 = vmatpush2.bf16.msra.mxu0 0
        %3606 = vmatprep.subr.bf16.mxu0 0
        %3607 = vmatpush2.bf16.msra.mxu0 0
        %3608 = vmatprep.subr.bf16.mxu0 0
        %3609 = vmatpush2.bf16.msra.mxu0 0
        %3610 = vmatprep.subr.bf16.mxu0 0
        %3611 = vmatpush2.bf16.msra.mxu0 0
        %3612 = vmatprep.subr.bf16.mxu0 0
        %3613 = vmatpush2.bf16.msra.mxu0 0
        %3614 = vmatprep.mubr.bf16.mxu0 0
        %3615 = vmatmul.mubr.bf16.gmra.mxu0 %v3503
        %v3616 = vpop.f32.mrf.mxu0
        %v3617 = vadd.f32 %v3532, %v3616
        %v3618 = vpop.f32.mrf.mxu0
        %v3619 = vpop.f32.mrf.mxu0
        %v3620 = vadd.f32 %v3532, %v3619
        %v3621 = vpop.f32.mrf.mxu0
        %3622 = vmatprep.mubr.bf16.mxu0 0
        %3623 = vmatmul.mubr.bf16.gmra.mxu0 %v3504
        %v3624 = vpop.f32.mrf.mxu0
        %v3625 = vadd.f32 %v3532, %v3624
        %v3626 = vpop.f32.mrf.mxu0
        %v3627 = vpop.f32.mrf.mxu0
        %v3628 = vadd.f32 %v3532, %v3627
        %v3629 = vpop.f32.mrf.mxu0
        %3630 = vmatprep.mubr.bf16.mxu0 0
        %3631 = vmatmul.mubr.bf16.gmra.mxu0 %v3505
        %v3632 = vpop.f32.mrf.mxu0
        %v3633 = vadd.f32 %v3532, %v3632
        %v3634 = vpop.f32.mrf.mxu0
        %v3635 = vpop.f32.mrf.mxu0
        %v3636 = vadd.f32 %v3532, %v3635
        %v3637 = vpop.f32.mrf.mxu0
        %3638 = vmatprep.mubr.bf16.mxu0 0
        %3639 = vmatmul.mubr.bf16.gmra.mxu0 %v3506
        %v3640 = vpop.f32.mrf.mxu0
        %v3641 = vadd.f32 %v3532, %v3640
        %v3642 = vpop.f32.mrf.mxu0
        %v3643 = vpop.f32.mrf.mxu0
        %v3644 = vadd.f32 %v3532, %v3643
        %v3645 = vpop.f32.mrf.mxu0
        %3646 = vmatprep.mubr.bf16.mxu0 0
        %3647 = vmatmul.mubr.bf16.gmra.mxu0 %v3507
        %v3648 = vpop.f32.mrf.mxu0
        %v3649 = vadd.f32 %v3532, %v3648
        %v3650 = vpop.f32.mrf.mxu0
        %v3651 = vpop.f32.mrf.mxu0
        %v3652 = vadd.f32 %v3532, %v3651
        %v3653 = vpop.f32.mrf.mxu0
        %3654 = vmatprep.mubr.bf16.mxu0 0
        %3655 = vmatmul.mubr.bf16.gmra.mxu0 %v3508
        %v3656 = vpop.f32.mrf.mxu0
        %v3657 = vadd.f32 %v3532, %v3656
        %v3658 = vpop.f32.mrf.mxu0
        %v3659 = vpop.f32.mrf.mxu0
        %v3660 = vadd.f32 %v3532, %v3659
        %v3661 = vpop.f32.mrf.mxu0
        %3662 = vmatprep.mubr.bf16.mxu0 0
        %3663 = vmatmul.mubr.bf16.gmra.mxu0 %v3509
        %v3664 = vpop.f32.mrf.mxu0
        %v3665 = vadd.f32 %v3532, %v3664
        %v3666 = vpop.f32.mrf.mxu0
        %v3667 = vpop.f32.mrf.mxu0
        %v3668 = vadd.f32 %v3532, %v3667
        %v3669 = vpop.f32.mrf.mxu0
        %3670 = vmatprep.mubr.bf16.mxu0 0
        %3671 = vmatmul.mubr.bf16.gmra.mxu0 %v3510
        %v3672 = vpop.f32.mrf.mxu0
        %v3673 = vadd.f32 %v3532, %v3672
        %v3674 = vpop.f32.mrf.mxu0
        %v3675 = vpop.f32.mrf.mxu0
        %v3676 = vadd.f32 %v3532, %v3675
        %v3677 = vpop.f32.mrf.mxu0
        %3678 = vdwg.mxu0
        %v3679 = vsel %vm3287, %v3617, -inf
        %3680 = vmax.xlane.f32.xlu0 %v3679
        %v3681 = vpop.xlane.xlu0 %3680
        %v3682 = vsel %vm3287, %v3620, -inf
        %3683 = vmax.xlane.f32.xlu0 %v3682
        %v3684 = vpop.xlane.xlu0 %3683
        %v3685 = vsel %vm3287, %v3625, -inf
        %3686 = vmax.xlane.f32.xlu0 %v3685
        %v3687 = vpop.xlane.xlu0 %3686
        %v3688 = vsel %vm3287, %v3628, -inf
        %3689 = vmax.xlane.f32.xlu0 %v3688
        %v3690 = vpop.xlane.xlu0 %3689
        %v3691 = vsel %vm3287, %v3633, -inf
        %3692 = vmax.xlane.f32.xlu0 %v3691
        %v3693 = vpop.xlane.xlu0 %3692
        %v3694 = vsel %vm3287, %v3636, -inf
        %3695 = vmax.xlane.f32.xlu0 %v3694
        %v3696 = vpop.xlane.xlu0 %3695
        %v3697 = vsel %vm3287, %v3641, -inf
        %3698 = vmax.xlane.f32.xlu0 %v3697
        %v3699 = vpop.xlane.xlu0 %3698
        %v3700 = vsel %vm3287, %v3644, -inf
        %3701 = vmax.xlane.f32.xlu0 %v3700
        %v3702 = vpop.xlane.xlu0 %3701
        %v3703 = vsel %vm3287, %v3649, -inf
        %3704 = vmax.xlane.f32.xlu0 %v3703
        %v3705 = vpop.xlane.xlu0 %3704
        %v3706 = vsel %vm3287, %v3652, -inf
        %3707 = vmax.xlane.f32.xlu0 %v3706
        %v3708 = vpop.xlane.xlu0 %3707
        %v3709 = vsel %vm3287, %v3657, -inf
        %3710 = vmax.xlane.f32.xlu0 %v3709
        %v3711 = vpop.xlane.xlu0 %3710
        %v3712 = vsel %vm3287, %v3660, -inf
        %3713 = vmax.xlane.f32.xlu0 %v3712
        %v3714 = vpop.xlane.xlu0 %3713
        %v3715 = vsel %vm3287, %v3665, -inf
        %3716 = vmax.xlane.f32.xlu0 %v3715
        %v3717 = vpop.xlane.xlu0 %3716
        %v3718 = vsel %vm3287, %v3668, -inf
        %3719 = vmax.xlane.f32.xlu0 %v3718
        %v3720 = vpop.xlane.xlu0 %3719
        %v3721 = vsel %vm3287, %v3673, -inf
        %3722 = vmax.xlane.f32.xlu0 %v3721
        %v3723 = vpop.xlane.xlu0 %3722
        %v3724 = vsel %vm3287, %v3676, -inf
        %3725 = vmax.xlane.f32.xlu0 %v3724
        %v3726 = vpop.xlane.xlu0 %3725
        %v3727 = vsub.f32 %v3617, %v3681
        %v3728 = vsub.f32 %v3620, %v3684
        %v3729 = vsub.f32 %v3625, %v3687
        %v3730 = vsub.f32 %v3628, %v3690
        %v3731 = vsub.f32 %v3633, %v3693
        %v3732 = vsub.f32 %v3636, %v3696
        %v3733 = vsub.f32 %v3641, %v3699
        %v3734 = vsub.f32 %v3644, %v3702
        %v3735 = vsub.f32 %v3649, %v3705
        %v3736 = vsub.f32 %v3652, %v3708
        %v3737 = vsub.f32 %v3657, %v3711
        %v3738 = vsub.f32 %v3660, %v3714
        %v3739 = vsub.f32 %v3665, %v3717
        %v3740 = vsub.f32 %v3668, %v3720
        %v3741 = vsub.f32 %v3673, %v3723
        %v3742 = vsub.f32 %v3676, %v3726
        %v3743 = vmul.f32 %v3727, 1.442695
        %v3744 = vpow.pop %v3743
        %v3745 = vmul.f32 %v3728, 1.442695
        %v3746 = vpow.pop %v3745
        %v3747 = vmul.f32 %v3729, 1.442695
        %v3748 = vpow.pop %v3747
        %v3749 = vmul.f32 %v3730, 1.442695
        %v3750 = vpow.pop %v3749
        %v3751 = vmul.f32 %v3731, 1.442695
        %v3752 = vpow.pop %v3751
        %v3753 = vmul.f32 %v3732, 1.442695
        %v3754 = vpow.pop %v3753
        %v3755 = vmul.f32 %v3733, 1.442695
        %v3756 = vpow.pop %v3755
        %v3757 = vmul.f32 %v3734, 1.442695
        %v3758 = vpow.pop %v3757
        %v3759 = vmul.f32 %v3735, 1.442695
        %v3760 = vpow.pop %v3759
        %v3761 = vmul.f32 %v3736, 1.442695
        %v3762 = vpow.pop %v3761
        %v3763 = vmul.f32 %v3737, 1.442695
        %v3764 = vpow.pop %v3763
        %v3765 = vmul.f32 %v3738, 1.442695
        %v3766 = vpow.pop %v3765
        %v3767 = vmul.f32 %v3739, 1.442695
        %v3768 = vpow.pop %v3767
        %v3769 = vmul.f32 %v3740, 1.442695
        %v3770 = vpow.pop %v3769
        %v3771 = vmul.f32 %v3741, 1.442695
        %v3772 = vpow.pop %v3771
        %v3773 = vmul.f32 %v3742, 1.442695
        %v3774 = vpow.pop %v3773
        %v3775 = vsel %vm3287, %v3744, 0.0
        %3776 = vadd.xlane.f32.xlu0 %v3775
        %v3777 = vpop.xlane.xlu0 %3776
        %v3778 = vsel %vm3287, %v3746, 0.0
        %3779 = vadd.xlane.f32.xlu0 %v3778
        %v3780 = vpop.xlane.xlu0 %3779
        %v3781 = vsel %vm3287, %v3748, 0.0
        %3782 = vadd.xlane.f32.xlu0 %v3781
        %v3783 = vpop.xlane.xlu0 %3782
        %v3784 = vsel %vm3287, %v3750, 0.0
        %3785 = vadd.xlane.f32.xlu0 %v3784
        %v3786 = vpop.xlane.xlu0 %3785
        %v3787 = vsel %vm3287, %v3752, 0.0
        %3788 = vadd.xlane.f32.xlu0 %v3787
        %v3789 = vpop.xlane.xlu0 %3788
        %v3790 = vsel %vm3287, %v3754, 0.0
        %3791 = vadd.xlane.f32.xlu0 %v3790
        %v3792 = vpop.xlane.xlu0 %3791
        %v3793 = vsel %vm3287, %v3756, 0.0
        %3794 = vadd.xlane.f32.xlu0 %v3793
        %v3795 = vpop.xlane.xlu0 %3794
        %v3796 = vsel %vm3287, %v3758, 0.0
        %3797 = vadd.xlane.f32.xlu0 %v3796
        %v3798 = vpop.xlane.xlu0 %3797
        %v3799 = vsel %vm3287, %v3760, 0.0
        %3800 = vadd.xlane.f32.xlu0 %v3799
        %v3801 = vpop.xlane.xlu0 %3800
        %v3802 = vsel %vm3287, %v3762, 0.0
        %3803 = vadd.xlane.f32.xlu0 %v3802
        %v3804 = vpop.xlane.xlu0 %3803
        %v3805 = vsel %vm3287, %v3764, 0.0
        %3806 = vadd.xlane.f32.xlu0 %v3805
        %v3807 = vpop.xlane.xlu0 %3806
        %v3808 = vsel %vm3287, %v3766, 0.0
        %3809 = vadd.xlane.f32.xlu0 %v3808
        %v3810 = vpop.xlane.xlu0 %3809
        %v3811 = vsel %vm3287, %v3768, 0.0
        %3812 = vadd.xlane.f32.xlu0 %v3811
        %v3813 = vpop.xlane.xlu0 %3812
        %v3814 = vsel %vm3287, %v3770, 0.0
        %3815 = vadd.xlane.f32.xlu0 %v3814
        %v3816 = vpop.xlane.xlu0 %3815
        %v3817 = vsel %vm3287, %v3772, 0.0
        %3818 = vadd.xlane.f32.xlu0 %v3817
        %v3819 = vpop.xlane.xlu0 %3818
        %v3820 = vsel %vm3287, %v3774, 0.0
        %3821 = vadd.xlane.f32.xlu0 %v3820
        %v3822 = vpop.xlane.xlu0 %3821
        %v3823 = vrcp.pop %v3777
        %v3824 = vmul.f32 %v3744, %v3823
        %v3825 = vrcp.pop %v3780
        %v3826 = vmul.f32 %v3746, %v3825
        %v3827 = vrcp.pop %v3783
        %v3828 = vmul.f32 %v3748, %v3827
        %v3829 = vrcp.pop %v3786
        %v3830 = vmul.f32 %v3750, %v3829
        %v3831 = vrcp.pop %v3789
        %v3832 = vmul.f32 %v3752, %v3831
        %v3833 = vrcp.pop %v3792
        %v3834 = vmul.f32 %v3754, %v3833
        %v3835 = vrcp.pop %v3795
        %v3836 = vmul.f32 %v3756, %v3835
        %v3837 = vrcp.pop %v3798
        %v3838 = vmul.f32 %v3758, %v3837
        %v3839 = vrcp.pop %v3801
        %v3840 = vmul.f32 %v3760, %v3839
        %v3841 = vrcp.pop %v3804
        %v3842 = vmul.f32 %v3762, %v3841
        %v3843 = vrcp.pop %v3807
        %v3844 = vmul.f32 %v3764, %v3843
        %v3845 = vrcp.pop %v3810
        %v3846 = vmul.f32 %v3766, %v3845
        %v3847 = vrcp.pop %v3813
        %v3848 = vmul.f32 %v3768, %v3847
        %v3849 = vrcp.pop %v3816
        %v3850 = vmul.f32 %v3770, %v3849
        %v3851 = vrcp.pop %v3819
        %v3852 = vmul.f32 %v3772, %v3851
        %v3853 = vrcp.pop %v3822
        %v3854 = vmul.f32 %v3774, %v3853
        %v3855 = vmul.f32 %v3433, %v3824
        %v3856 = vmul.f32 %v3435, %v3826
        %v3857 = vmul.f32 %v3437, %v3828
        %v3858 = vmul.f32 %v3439, %v3830
        %v3859 = vmul.f32 %v3441, %v3832
        %v3860 = vmul.f32 %v3443, %v3834
        %v3861 = vmul.f32 %v3445, %v3836
        %v3862 = vmul.f32 %v3447, %v3838
        %v3863 = vmul.f32 %v3449, %v3840
        %v3864 = vmul.f32 %v3451, %v3842
        %v3865 = vmul.f32 %v3453, %v3844
        %v3866 = vmul.f32 %v3455, %v3846
        %v3867 = vmul.f32 %v3457, %v3848
        %v3868 = vmul.f32 %v3459, %v3850
        %v3869 = vmul.f32 %v3461, %v3852
        %v3870 = vmul.f32 %v3463, %v3854
        %v3871 = vsel %vm3287, %v3855, 0.0
        %3872 = vadd.xlane.f32.xlu0 %v3871
        %v3873 = vpop.xlane.xlu0 %3872
        %v3874 = vsel %vm3287, %v3856, 0.0
        %3875 = vadd.xlane.f32.xlu0 %v3874
        %v3876 = vpop.xlane.xlu0 %3875
        %v3877 = vsel %vm3287, %v3857, 0.0
        %3878 = vadd.xlane.f32.xlu0 %v3877
        %v3879 = vpop.xlane.xlu0 %3878
        %v3880 = vsel %vm3287, %v3858, 0.0
        %3881 = vadd.xlane.f32.xlu0 %v3880
        %v3882 = vpop.xlane.xlu0 %3881
        %v3883 = vsel %vm3287, %v3859, 0.0
        %3884 = vadd.xlane.f32.xlu0 %v3883
        %v3885 = vpop.xlane.xlu0 %3884
        %v3886 = vsel %vm3287, %v3860, 0.0
        %3887 = vadd.xlane.f32.xlu0 %v3886
        %v3888 = vpop.xlane.xlu0 %3887
        %v3889 = vsel %vm3287, %v3861, 0.0
        %3890 = vadd.xlane.f32.xlu0 %v3889
        %v3891 = vpop.xlane.xlu0 %3890
        %v3892 = vsel %vm3287, %v3862, 0.0
        %3893 = vadd.xlane.f32.xlu0 %v3892
        %v3894 = vpop.xlane.xlu0 %3893
        %v3895 = vsel %vm3287, %v3863, 0.0
        %3896 = vadd.xlane.f32.xlu0 %v3895
        %v3897 = vpop.xlane.xlu0 %3896
        %v3898 = vsel %vm3287, %v3864, 0.0
        %3899 = vadd.xlane.f32.xlu0 %v3898
        %v3900 = vpop.xlane.xlu0 %3899
        %v3901 = vsel %vm3287, %v3865, 0.0
        %3902 = vadd.xlane.f32.xlu0 %v3901
        %v3903 = vpop.xlane.xlu0 %3902
        %v3904 = vsel %vm3287, %v3866, 0.0
        %3905 = vadd.xlane.f32.xlu0 %v3904
        %v3906 = vpop.xlane.xlu0 %3905
        %v3907 = vsel %vm3287, %v3867, 0.0
        %3908 = vadd.xlane.f32.xlu0 %v3907
        %v3909 = vpop.xlane.xlu0 %3908
        %v3910 = vsel %vm3287, %v3868, 0.0
        %3911 = vadd.xlane.f32.xlu0 %v3910
        %v3912 = vpop.xlane.xlu0 %3911
        %v3913 = vsel %vm3287, %v3869, 0.0
        %3914 = vadd.xlane.f32.xlu0 %v3913
        %v3915 = vpop.xlane.xlu0 %3914
        %v3916 = vsel %vm3287, %v3870, 0.0
        %3917 = vadd.xlane.f32.xlu0 %v3916
        %v3918 = vpop.xlane.xlu0 %3917
        %v3919 = vadd.f32 %v3873, 1e-08
        %v3920 = vadd.f32 %v3876, 1e-08
        %v3921 = vadd.f32 %v3879, 1e-08
        %v3922 = vadd.f32 %v3882, 1e-08
        %v3923 = vadd.f32 %v3885, 1e-08
        %v3924 = vadd.f32 %v3888, 1e-08
        %v3925 = vadd.f32 %v3891, 1e-08
        %v3926 = vadd.f32 %v3894, 1e-08
        %v3927 = vadd.f32 %v3897, 1e-08
        %v3928 = vadd.f32 %v3900, 1e-08
        %v3929 = vadd.f32 %v3903, 1e-08
        %v3930 = vadd.f32 %v3906, 1e-08
        %v3931 = vadd.f32 %v3909, 1e-08
        %v3932 = vadd.f32 %v3912, 1e-08
        %v3933 = vadd.f32 %v3915, 1e-08
        %v3934 = vadd.f32 %v3918, 1e-08
        %v3935 = vrcp.pop %v3919
        %v3936 = vmul.f32 %v3855, %v3935
        %v3937 = vrcp.pop %v3920
        %v3938 = vmul.f32 %v3856, %v3937
        %v3939 = vrcp.pop %v3921
        %v3940 = vmul.f32 %v3857, %v3939
        %v3941 = vrcp.pop %v3922
        %v3942 = vmul.f32 %v3858, %v3941
        %v3943 = vrcp.pop %v3923
        %v3944 = vmul.f32 %v3859, %v3943
        %v3945 = vrcp.pop %v3924
        %v3946 = vmul.f32 %v3860, %v3945
        %v3947 = vrcp.pop %v3925
        %v3948 = vmul.f32 %v3861, %v3947
        %v3949 = vrcp.pop %v3926
        %v3950 = vmul.f32 %v3862, %v3949
        %v3951 = vrcp.pop %v3927
        %v3952 = vmul.f32 %v3863, %v3951
        %v3953 = vrcp.pop %v3928
        %v3954 = vmul.f32 %v3864, %v3953
        %v3955 = vrcp.pop %v3929
        %v3956 = vmul.f32 %v3865, %v3955
        %v3957 = vrcp.pop %v3930
        %v3958 = vmul.f32 %v3866, %v3957
        %v3959 = vrcp.pop %v3931
        %v3960 = vmul.f32 %v3867, %v3959
        %v3961 = vrcp.pop %v3932
        %v3962 = vmul.f32 %v3868, %v3961
        %v3963 = vrcp.pop %v3933
        %v3964 = vmul.f32 %v3869, %v3963
        %v3965 = vrcp.pop %v3934
        %v3966 = vmul.f32 %v3870, %v3965
        %v3967 = vld [vmem:[%s578] sm:$0xff]
        %v3968 = vld [vmem:[%s578 + $0x8] sm:$0xff]
        %v3969 = vld [vmem:[%s578 + $0x10] sm:$0xff]
        %v3970 = vld [vmem:[%s578 + $0x18] sm:$0xff]
        %v3971 = vld [vmem:[%s578 + $0x20] sm:$0xff]
        %v3972 = vld [vmem:[%s578 + $0x28] sm:$0xff]
        %v3973 = vld [vmem:[%s578 + $0x30] sm:$0xff]
        %v3974 = vld [vmem:[%s578 + $0x38] sm:$0xff]
        %v3975 = vld [vmem:[%s578 + $0x40] sm:$0xff]
        %v3976 = vld [vmem:[%s578 + $0x48] sm:$0xff]
        %v3977 = vld [vmem:[%s578 + $0x50] sm:$0xff]
        %v3978 = vld [vmem:[%s578 + $0x58] sm:$0xff]
        %v3979 = vld [vmem:[%s578 + $0x60] sm:$0xff]
        %v3980 = vld [vmem:[%s578 + $0x68] sm:$0xff]
        %v3981 = vld [vmem:[%s578 + $0x70] sm:$0xff]
        %v3982 = vld [vmem:[%s578 + $0x78] sm:$0xff]
        %3984 = vset.pattern.permute.xlu0 0
        %3985 = vperm.xlu0 %3984, %v3936
        %v3986 = vpop.permute.xlu0 %3985
        %3989 = vset.pattern.permute.xlu0 0
        %3990 = vperm.xlu0 %3989, %v3938
        %v3991 = vpop.permute.xlu0 %3990
        %3994 = vset.pattern.permute.xlu0 0
        %3995 = vperm.xlu0 %3994, %v3940
        %v3996 = vpop.permute.xlu0 %3995
        %3999 = vset.pattern.permute.xlu0 0
        %4000 = vperm.xlu0 %3999, %v3942
        %v4001 = vpop.permute.xlu0 %4000
        %4004 = vset.pattern.permute.xlu0 0
        %4005 = vperm.xlu0 %4004, %v3944
        %v4006 = vpop.permute.xlu0 %4005
        %4009 = vset.pattern.permute.xlu0 0
        %4010 = vperm.xlu0 %4009, %v3946
        %v4011 = vpop.permute.xlu0 %4010
        %4014 = vset.pattern.permute.xlu0 0
        %4015 = vperm.xlu0 %4014, %v3948
        %v4016 = vpop.permute.xlu0 %4015
        %4019 = vset.pattern.permute.xlu0 0
        %4020 = vperm.xlu0 %4019, %v3950
        %v4021 = vpop.permute.xlu0 %4020
        %4024 = vset.pattern.permute.xlu0 0
        %4025 = vperm.xlu0 %4024, %v3952
        %v4026 = vpop.permute.xlu0 %4025
        %4029 = vset.pattern.permute.xlu0 0
        %4030 = vperm.xlu0 %4029, %v3954
        %v4031 = vpop.permute.xlu0 %4030
        %4034 = vset.pattern.permute.xlu0 0
        %4035 = vperm.xlu0 %4034, %v3956
        %v4036 = vpop.permute.xlu0 %4035
        %4039 = vset.pattern.permute.xlu0 0
        %4040 = vperm.xlu0 %4039, %v3958
        %v4041 = vpop.permute.xlu0 %4040
        %4044 = vset.pattern.permute.xlu0 0
        %4045 = vperm.xlu0 %4044, %v3960
        %v4046 = vpop.permute.xlu0 %4045
        %4049 = vset.pattern.permute.xlu0 0
        %4050 = vperm.xlu0 %4049, %v3962
        %v4051 = vpop.permute.xlu0 %4050
        %4054 = vset.pattern.permute.xlu0 0
        %4055 = vperm.xlu0 %4054, %v3964
        %v4056 = vpop.permute.xlu0 %4055
        %4059 = vset.pattern.permute.xlu0 0
        %4060 = vperm.xlu0 %4059, %v3966
        %v4061 = vpop.permute.xlu0 %4060
        %v4063 = vmul.f32 %v3967, %v3986
        %v4064 = vmul.f32 %v3968, %v3991
        %v4065 = vmul.f32 %v3969, %v3996
        %v4066 = vmul.f32 %v3970, %v4001
        %v4067 = vmul.f32 %v3971, %v4006
        %v4068 = vmul.f32 %v3972, %v4011
        %v4069 = vmul.f32 %v3973, %v4016
        %v4070 = vmul.f32 %v3974, %v4021
        %v4071 = vmul.f32 %v3975, %v4026
        %v4072 = vmul.f32 %v3976, %v4031
        %v4073 = vmul.f32 %v3977, %v4036
        %v4074 = vmul.f32 %v3978, %v4041
        %v4075 = vmul.f32 %v3979, %v4046
        %v4076 = vmul.f32 %v3980, %v4051
        %v4077 = vmul.f32 %v3981, %v4056
        %v4078 = vmul.f32 %v3982, %v4061
        %v4079 = vld [vmem:[%s1577] sm:$0xff]
        %v4080 = vld [vmem:[%s1577 + $0x8] sm:$0xff]
        %v4081 = vld [vmem:[%s1577 + $0x10] sm:$0xff]
        %v4082 = vld [vmem:[%s1577 + $0x18] sm:$0xff]
        %v4083 = vld [vmem:[%s1577 + $0x20] sm:$0xff]
        %v4084 = vld [vmem:[%s1577 + $0x28] sm:$0xff]
        %v4085 = vld [vmem:[%s1577 + $0x30] sm:$0xff]
        %v4086 = vld [vmem:[%s1577 + $0x38] sm:$0xff]
        %v4087 = vld [vmem:[%s1577 + $0x40] sm:$0xff]
        %v4088 = vld [vmem:[%s1577 + $0x48] sm:$0xff]
        %v4089 = vld [vmem:[%s1577 + $0x50] sm:$0xff]
        %v4090 = vld [vmem:[%s1577 + $0x58] sm:$0xff]
        %v4091 = vld [vmem:[%s1577 + $0x60] sm:$0xff]
        %v4092 = vld [vmem:[%s1577 + $0x68] sm:$0xff]
        %v4093 = vld [vmem:[%s1577 + $0x70] sm:$0xff]
        %v4094 = vld [vmem:[%s1577 + $0x78] sm:$0xff]
        %4095 = vset.pattern.permute.xlu0 1
        %4096 = vperm.xlu0 %4095, %v3936
        %v4097 = vpop.permute.xlu0 %4096
        %4099 = vset.pattern.permute.xlu0 1
        %4100 = vperm.xlu0 %4099, %v3938
        %v4101 = vpop.permute.xlu0 %4100
        %4103 = vset.pattern.permute.xlu0 1
        %4104 = vperm.xlu0 %4103, %v3940
        %v4105 = vpop.permute.xlu0 %4104
        %4107 = vset.pattern.permute.xlu0 1
        %4108 = vperm.xlu0 %4107, %v3942
        %v4109 = vpop.permute.xlu0 %4108
        %4111 = vset.pattern.permute.xlu0 1
        %4112 = vperm.xlu0 %4111, %v3944
        %v4113 = vpop.permute.xlu0 %4112
        %4115 = vset.pattern.permute.xlu0 1
        %4116 = vperm.xlu0 %4115, %v3946
        %v4117 = vpop.permute.xlu0 %4116
        %4119 = vset.pattern.permute.xlu0 1
        %4120 = vperm.xlu0 %4119, %v3948
        %v4121 = vpop.permute.xlu0 %4120
        %4123 = vset.pattern.permute.xlu0 1
        %4124 = vperm.xlu0 %4123, %v3950
        %v4125 = vpop.permute.xlu0 %4124
        %4127 = vset.pattern.permute.xlu0 1
        %4128 = vperm.xlu0 %4127, %v3952
        %v4129 = vpop.permute.xlu0 %4128
        %4131 = vset.pattern.permute.xlu0 1
        %4132 = vperm.xlu0 %4131, %v3954
        %v4133 = vpop.permute.xlu0 %4132
        %4135 = vset.pattern.permute.xlu0 1
        %4136 = vperm.xlu0 %4135, %v3956
        %v4137 = vpop.permute.xlu0 %4136
        %4139 = vset.pattern.permute.xlu0 1
        %4140 = vperm.xlu0 %4139, %v3958
        %v4141 = vpop.permute.xlu0 %4140
        %4143 = vset.pattern.permute.xlu0 1
        %4144 = vperm.xlu0 %4143, %v3960
        %v4145 = vpop.permute.xlu0 %4144
        %4147 = vset.pattern.permute.xlu0 1
        %4148 = vperm.xlu0 %4147, %v3962
        %v4149 = vpop.permute.xlu0 %4148
        %4151 = vset.pattern.permute.xlu0 1
        %4152 = vperm.xlu0 %4151, %v3964
        %v4153 = vpop.permute.xlu0 %4152
        %4155 = vset.pattern.permute.xlu0 1
        %4156 = vperm.xlu0 %4155, %v3966
        %v4157 = vpop.permute.xlu0 %4156
        %v4159 = vmul.f32 %v4079, %v4097
        %v4160 = vmul.f32 %v4080, %v4101
        %v4161 = vmul.f32 %v4081, %v4105
        %v4162 = vmul.f32 %v4082, %v4109
        %v4163 = vmul.f32 %v4083, %v4113
        %v4164 = vmul.f32 %v4084, %v4117
        %v4165 = vmul.f32 %v4085, %v4121
        %v4166 = vmul.f32 %v4086, %v4125
        %v4167 = vmul.f32 %v4087, %v4129
        %v4168 = vmul.f32 %v4088, %v4133
        %v4169 = vmul.f32 %v4089, %v4137
        %v4170 = vmul.f32 %v4090, %v4141
        %v4171 = vmul.f32 %v4091, %v4145
        %v4172 = vmul.f32 %v4092, %v4149
        %v4173 = vmul.f32 %v4093, %v4153
        %v4174 = vmul.f32 %v4094, %v4157
        %v4175 = vadd.f32 %v4063, %v4159
        %v4176 = vadd.f32 %v4064, %v4160
        %v4177 = vadd.f32 %v4065, %v4161
        %v4178 = vadd.f32 %v4066, %v4162
        %v4179 = vadd.f32 %v4067, %v4163
        %v4180 = vadd.f32 %v4068, %v4164
        %v4181 = vadd.f32 %v4069, %v4165
        %v4182 = vadd.f32 %v4070, %v4166
        %v4183 = vadd.f32 %v4071, %v4167
        %v4184 = vadd.f32 %v4072, %v4168
        %v4185 = vadd.f32 %v4073, %v4169
        %v4186 = vadd.f32 %v4074, %v4170
        %v4187 = vadd.f32 %v4075, %v4171
        %v4188 = vadd.f32 %v4076, %v4172
        %v4189 = vadd.f32 %v4077, %v4173
        %v4190 = vadd.f32 %v4078, %v4174
        %v4191 = vld [vmem:[%s2384] sm:$0xff]
        %v4192 = vld [vmem:[%s2384 + $0x8] sm:$0xff]
        %v4193 = vld [vmem:[%s2384 + $0x10] sm:$0xff]
        %v4194 = vld [vmem:[%s2384 + $0x18] sm:$0xff]
        %v4195 = vld [vmem:[%s2384 + $0x20] sm:$0xff]
        %v4196 = vld [vmem:[%s2384 + $0x28] sm:$0xff]
        %v4197 = vld [vmem:[%s2384 + $0x30] sm:$0xff]
        %v4198 = vld [vmem:[%s2384 + $0x38] sm:$0xff]
        %v4199 = vld [vmem:[%s2384 + $0x40] sm:$0xff]
        %v4200 = vld [vmem:[%s2384 + $0x48] sm:$0xff]
        %v4201 = vld [vmem:[%s2384 + $0x50] sm:$0xff]
        %v4202 = vld [vmem:[%s2384 + $0x58] sm:$0xff]
        %v4203 = vld [vmem:[%s2384 + $0x60] sm:$0xff]
        %v4204 = vld [vmem:[%s2384 + $0x68] sm:$0xff]
        %v4205 = vld [vmem:[%s2384 + $0x70] sm:$0xff]
        %v4206 = vld [vmem:[%s2384 + $0x78] sm:$0xff]
        %4207 = vset.pattern.permute.xlu0 2
        %4208 = vperm.xlu0 %4207, %v3936
        %v4209 = vpop.permute.xlu0 %4208
        %4211 = vset.pattern.permute.xlu0 2
        %4212 = vperm.xlu0 %4211, %v3938
        %v4213 = vpop.permute.xlu0 %4212
        %4215 = vset.pattern.permute.xlu0 2
        %4216 = vperm.xlu0 %4215, %v3940
        %v4217 = vpop.permute.xlu0 %4216
        %4219 = vset.pattern.permute.xlu0 2
        %4220 = vperm.xlu0 %4219, %v3942
        %v4221 = vpop.permute.xlu0 %4220
        %4223 = vset.pattern.permute.xlu0 2
        %4224 = vperm.xlu0 %4223, %v3944
        %v4225 = vpop.permute.xlu0 %4224
        %4227 = vset.pattern.permute.xlu0 2
        %4228 = vperm.xlu0 %4227, %v3946
        %v4229 = vpop.permute.xlu0 %4228
        %4231 = vset.pattern.permute.xlu0 2
        %4232 = vperm.xlu0 %4231, %v3948
        %v4233 = vpop.permute.xlu0 %4232
        %4235 = vset.pattern.permute.xlu0 2
        %4236 = vperm.xlu0 %4235, %v3950
        %v4237 = vpop.permute.xlu0 %4236
        %4239 = vset.pattern.permute.xlu0 2
        %4240 = vperm.xlu0 %4239, %v3952
        %v4241 = vpop.permute.xlu0 %4240
        %4243 = vset.pattern.permute.xlu0 2
        %4244 = vperm.xlu0 %4243, %v3954
        %v4245 = vpop.permute.xlu0 %4244
        %4247 = vset.pattern.permute.xlu0 2
        %4248 = vperm.xlu0 %4247, %v3956
        %v4249 = vpop.permute.xlu0 %4248
        %4251 = vset.pattern.permute.xlu0 2
        %4252 = vperm.xlu0 %4251, %v3958
        %v4253 = vpop.permute.xlu0 %4252
        %4255 = vset.pattern.permute.xlu0 2
        %4256 = vperm.xlu0 %4255, %v3960
        %v4257 = vpop.permute.xlu0 %4256
        %4259 = vset.pattern.permute.xlu0 2
        %4260 = vperm.xlu0 %4259, %v3962
        %v4261 = vpop.permute.xlu0 %4260
        %4263 = vset.pattern.permute.xlu0 2
        %4264 = vperm.xlu0 %4263, %v3964
        %v4265 = vpop.permute.xlu0 %4264
        %4267 = vset.pattern.permute.xlu0 2
        %4268 = vperm.xlu0 %4267, %v3966
        %v4269 = vpop.permute.xlu0 %4268
        %v4271 = vmul.f32 %v4191, %v4209
        %v4272 = vmul.f32 %v4192, %v4213
        %v4273 = vmul.f32 %v4193, %v4217
        %v4274 = vmul.f32 %v4194, %v4221
        %v4275 = vmul.f32 %v4195, %v4225
        %v4276 = vmul.f32 %v4196, %v4229
        %v4277 = vmul.f32 %v4197, %v4233
        %v4278 = vmul.f32 %v4198, %v4237
        %v4279 = vmul.f32 %v4199, %v4241
        %v4280 = vmul.f32 %v4200, %v4245
        %v4281 = vmul.f32 %v4201, %v4249
        %v4282 = vmul.f32 %v4202, %v4253
        %v4283 = vmul.f32 %v4203, %v4257
        %v4284 = vmul.f32 %v4204, %v4261
        %v4285 = vmul.f32 %v4205, %v4265
        %v4286 = vmul.f32 %v4206, %v4269
        %v4287 = vadd.f32 %v4175, %v4271
        %v4288 = vadd.f32 %v4176, %v4272
        %v4289 = vadd.f32 %v4177, %v4273
        %v4290 = vadd.f32 %v4178, %v4274
        %v4291 = vadd.f32 %v4179, %v4275
        %v4292 = vadd.f32 %v4180, %v4276
        %v4293 = vadd.f32 %v4181, %v4277
        %v4294 = vadd.f32 %v4182, %v4278
        %v4295 = vadd.f32 %v4183, %v4279
        %v4296 = vadd.f32 %v4184, %v4280
        %v4297 = vadd.f32 %v4185, %v4281
        %v4298 = vadd.f32 %v4186, %v4282
        %v4299 = vadd.f32 %v4187, %v4283
        %v4300 = vadd.f32 %v4188, %v4284
        %v4301 = vadd.f32 %v4189, %v4285
        %v4302 = vadd.f32 %v4190, %v4286
        %4303 = vst [vmem:[%s571] sm:$0xff] %v4287
        %4304 = vst [vmem:[%s571 + $0x8] sm:$0xff] %v4288
        %4305 = vst [vmem:[%s571 + $0x10] sm:$0xff] %v4289
        %4306 = vst [vmem:[%s571 + $0x18] sm:$0xff] %v4290
        %4307 = vst [vmem:[%s571 + $0x20] sm:$0xff] %v4291
        %4308 = vst [vmem:[%s571 + $0x28] sm:$0xff] %v4292
        %4309 = vst [vmem:[%s571 + $0x30] sm:$0xff] %v4293
        %4310 = vst [vmem:[%s571 + $0x38] sm:$0xff] %v4294
        %4311 = vst [vmem:[%s571 + $0x40] sm:$0xff] %v4295
        %4312 = vst [vmem:[%s571 + $0x48] sm:$0xff] %v4296
        %4313 = vst [vmem:[%s571 + $0x50] sm:$0xff] %v4297
        %4314 = vst [vmem:[%s571 + $0x58] sm:$0xff] %v4298
        %4315 = vst [vmem:[%s571 + $0x60] sm:$0xff] %v4299
        %4316 = vst [vmem:[%s571 + $0x68] sm:$0xff] %v4300
        %4317 = vst [vmem:[%s571 + $0x70] sm:$0xff] %v4301
        %4318 = vst [vmem:[%s571 + $0x78] sm:$0xff] %v4302
        %4335 = vrot.lane.b32.xlu0 %v3824, 3
        %v4336 = vpop.permute.xlu0 %4335
        %4337 = vrot.lane.b32.xlu0 %v3826, 3
        %v4338 = vpop.permute.xlu0 %4337
        %4339 = vrot.lane.b32.xlu0 %v3828, 3
        %v4340 = vpop.permute.xlu0 %4339
        %4341 = vrot.lane.b32.xlu0 %v3830, 3
        %v4342 = vpop.permute.xlu0 %4341
        %4343 = vrot.lane.b32.xlu0 %v3832, 3
        %v4344 = vpop.permute.xlu0 %4343
        %4345 = vrot.lane.b32.xlu0 %v3834, 3
        %v4346 = vpop.permute.xlu0 %4345
        %4347 = vrot.lane.b32.xlu0 %v3836, 3
        %v4348 = vpop.permute.xlu0 %4347
        %4349 = vrot.lane.b32.xlu0 %v3838, 3
        %v4350 = vpop.permute.xlu0 %4349
        %4351 = vrot.lane.b32.xlu0 %v3840, 3
        %v4352 = vpop.permute.xlu0 %4351
        %4353 = vrot.lane.b32.xlu0 %v3842, 3
        %v4354 = vpop.permute.xlu0 %4353
        %4355 = vrot.lane.b32.xlu0 %v3844, 3
        %v4356 = vpop.permute.xlu0 %4355
        %4357 = vrot.lane.b32.xlu0 %v3846, 3
        %v4358 = vpop.permute.xlu0 %4357
        %4359 = vrot.lane.b32.xlu0 %v3848, 3
        %v4360 = vpop.permute.xlu0 %4359
        %4361 = vrot.lane.b32.xlu0 %v3850, 3
        %v4362 = vpop.permute.xlu0 %4361
        %4363 = vrot.lane.b32.xlu0 %v3852, 3
        %v4364 = vpop.permute.xlu0 %4363
        %4365 = vrot.lane.b32.xlu0 %v3854, 3
        %v4366 = vpop.permute.xlu0 %4365
        %4383 = vrot.lane.b32.xlu0 %v3936, 6
        %v4384 = vpop.permute.xlu0 %4383
        %4385 = vrot.lane.b32.xlu0 %v3938, 6
        %v4386 = vpop.permute.xlu0 %4385
        %4387 = vrot.lane.b32.xlu0 %v3940, 6
        %v4388 = vpop.permute.xlu0 %4387
        %4389 = vrot.lane.b32.xlu0 %v3942, 6
        %v4390 = vpop.permute.xlu0 %4389
        %4391 = vrot.lane.b32.xlu0 %v3944, 6
        %v4392 = vpop.permute.xlu0 %4391
        %4393 = vrot.lane.b32.xlu0 %v3946, 6
        %v4394 = vpop.permute.xlu0 %4393
        %4395 = vrot.lane.b32.xlu0 %v3948, 6
        %v4396 = vpop.permute.xlu0 %4395
        %4397 = vrot.lane.b32.xlu0 %v3950, 6
        %v4398 = vpop.permute.xlu0 %4397
        %4399 = vrot.lane.b32.xlu0 %v3952, 6
        %v4400 = vpop.permute.xlu0 %4399
        %4401 = vrot.lane.b32.xlu0 %v3954, 6
        %v4402 = vpop.permute.xlu0 %4401
        %4403 = vrot.lane.b32.xlu0 %v3956, 6
        %v4404 = vpop.permute.xlu0 %4403
        %4405 = vrot.lane.b32.xlu0 %v3958, 6
        %v4406 = vpop.permute.xlu0 %4405
        %4407 = vrot.lane.b32.xlu0 %v3960, 6
        %v4408 = vpop.permute.xlu0 %4407
        %4409 = vrot.lane.b32.xlu0 %v3962, 6
        %v4410 = vpop.permute.xlu0 %4409
        %4411 = vrot.lane.b32.xlu0 %v3964, 6
        %v4412 = vpop.permute.xlu0 %4411
        %4413 = vrot.lane.b32.xlu0 %v3966, 6
        %v4414 = vpop.permute.xlu0 %4413
        %v4431 = vsel %vm3287, %v3433, %v4336
        %v4432 = vsel %vm3287, %v3435, %v4338
        %v4433 = vsel %vm3287, %v3437, %v4340
        %v4434 = vsel %vm3287, %v3439, %v4342
        %v4435 = vsel %vm3287, %v3441, %v4344
        %v4436 = vsel %vm3287, %v3443, %v4346
        %v4437 = vsel %vm3287, %v3445, %v4348
        %v4438 = vsel %vm3287, %v3447, %v4350
        %v4439 = vsel %vm3287, %v3449, %v4352
        %v4440 = vsel %vm3287, %v3451, %v4354
        %v4441 = vsel %vm3287, %v3453, %v4356
        %v4442 = vsel %vm3287, %v3455, %v4358
        %v4443 = vsel %vm3287, %v3457, %v4360
        %v4444 = vsel %vm3287, %v3459, %v4362
        %v4445 = vsel %vm3287, %v3461, %v4364
        %v4446 = vsel %vm3287, %v3463, %v4366
        %vm4447 = vcmask 48128
        %v4448 = vsel %vm4447, %v4431, %v4384
        %v4449 = vsel %vm4447, %v4432, %v4386
        %v4450 = vsel %vm4447, %v4433, %v4388
        %v4451 = vsel %vm4447, %v4434, %v4390
        %v4452 = vsel %vm4447, %v4435, %v4392
        %v4453 = vsel %vm4447, %v4436, %v4394
        %v4454 = vsel %vm4447, %v4437, %v4396
        %v4455 = vsel %vm4447, %v4438, %v4398
        %v4456 = vsel %vm4447, %v4439, %v4400
        %v4457 = vsel %vm4447, %v4440, %v4402
        %v4458 = vsel %vm4447, %v4441, %v4404
        %v4459 = vsel %vm4447, %v4442, %v4406
        %v4460 = vsel %vm4447, %v4443, %v4408
        %v4461 = vsel %vm4447, %v4444, %v4410
        %v4462 = vsel %vm4447, %v4445, %v4412
        %v4463 = vsel %vm4447, %v4446, %v4414
        %vm4464 = vcmask 72704
        %v4465 = vsel %vm4464, %v4448, 0.0
        %v4466 = vsel %vm4464, %v4449, 0.0
        %v4467 = vsel %vm4464, %v4450, 0.0
        %v4468 = vsel %vm4464, %v4451, 0.0
        %v4469 = vsel %vm4464, %v4452, 0.0
        %v4470 = vsel %vm4464, %v4453, 0.0
        %v4471 = vsel %vm4464, %v4454, 0.0
        %v4472 = vsel %vm4464, %v4455, 0.0
        %v4473 = vsel %vm4464, %v4456, 0.0
        %v4474 = vsel %vm4464, %v4457, 0.0
        %v4475 = vsel %vm4464, %v4458, 0.0
        %v4476 = vsel %vm4464, %v4459, 0.0
        %v4477 = vsel %vm4464, %v4460, 0.0
        %v4478 = vsel %vm4464, %v4461, 0.0
        %v4479 = vsel %vm4464, %v4462, 0.0
        %v4480 = vsel %vm4464, %v4463, 0.0
        %4481 = vst [vmem:[%s585] sm:$0xff] %v4465
        %4482 = vst [vmem:[%s585 + $0x8] sm:$0xff] %v4466
        %4483 = vst [vmem:[%s585 + $0x10] sm:$0xff] %v4467
        %4484 = vst [vmem:[%s585 + $0x18] sm:$0xff] %v4468
        %4485 = vst [vmem:[%s585 + $0x20] sm:$0xff] %v4469
        %4486 = vst [vmem:[%s585 + $0x28] sm:$0xff] %v4470
        %4487 = vst [vmem:[%s585 + $0x30] sm:$0xff] %v4471
        %4488 = vst [vmem:[%s585 + $0x38] sm:$0xff] %v4472
        %4489 = vst [vmem:[%s585 + $0x40] sm:$0xff] %v4473
        %4490 = vst [vmem:[%s585 + $0x48] sm:$0xff] %v4474
        %4491 = vst [vmem:[%s585 + $0x50] sm:$0xff] %v4475
        %4492 = vst [vmem:[%s585 + $0x58] sm:$0xff] %v4476
        %4493 = vst [vmem:[%s585 + $0x60] sm:$0xff] %v4477
        %4494 = vst [vmem:[%s585 + $0x68] sm:$0xff] %v4478
        %4495 = vst [vmem:[%s585 + $0x70] sm:$0xff] %v4479
        %4496 = vst [vmem:[%s585 + $0x78] sm:$0xff] %v4480
        %s4497 = sand.u32 %s324, 1
        %s4498 = scalar_lea.sflag [#allocation5], %s4497
        %s4499 = sand.u32 %s324, 1
        %s4500 = smul.addr %s4499, 128
        %s4501 = scalar_lea.vmem [#allocation9], %s4500
        %s4502 = sand.u32 %s38, 1
        %s4503 = scalar_lea.sflag [#allocation11], %s4502
        %s4504 = sand.u32 %s350, 1
        %s4505 = smul.addr %s4504, 384
        %s4506 = scalar_lea.vmem [#allocation10], %s4505
        %s4507 = sand.u32 %s38, 1
        %s4508 = scalar_lea.sflag [#allocation11], %s4507
        %s4509 = sand.u32 %s376, 1
        %s4510 = smul.addr %s4509, 128
        %s4511 = scalar_lea.vmem [#allocation12], %s4510
        // Predicated region
        $region85: #{tpu_custom_call.1} parent=71 // pred_check
          %p4512 = pneg %p334
        $region86: #{tpu_custom_call.1} parent=71 // pred_check_branch
          %4514 = sbr.rel (%p4512) target = $region88
        $region87: #{tpu_custom_call.1} parent=71 // pred_region
          %s4515 = smul.u32 16, %s38
          %s4517 = ssub.s32 2048, 2048
          %4518 = vsyncadd %s4498, %s4517
          %s4519 = smul.addr %s4515, 128
          %s4520 = scalar_lea.hbm %s13, %s4519
          %s4521 = sshll.u32 %s4501, 4
          %s4522 = int_to_ptr.vmem [resolvable:$true] %s4521
          %4527 = dma.vmem_to_hbm [thread:$0]  %s4522, 2048, %s4520, %s4498, 128, 128, 8
        $region88: #{tpu_custom_call.1} parent=71 // pred_fallthru
          _
        // Predicated region
        $region89: #{tpu_custom_call.1} parent=71 // pred_check
          %p4528 = pneg %p360
        $region90: #{tpu_custom_call.1} parent=71 // pred_check_branch
          %4530 = sbr.rel (%p4528) target = $region92
        $region91: #{tpu_custom_call.1} parent=71 // pred_region
          #allocation16 [shape = 'u32[6]{0}', space=smem, size = 0x18, scoped, tag = 'DMA stride descriptor']
          %s4531 = smul.u32 16, %s38
          %s4533 = ssub.s32 6144, 6144
          %4534 = vsyncadd %s4503, %s4533
          %s4535 = smul.addr %s4531, 128
          %s4536 = scalar_lea.hbm %s14, %s4535
          %s4538 = sshll.u32 1, 14
          %s4539 = sxor.u32 4294967295, %s4538
          %s4542 = sshll.u32 7, 18
          %s4543 = sxor.u32 4294967295, %s4542
          %s4544 = sand.u32 0, %s4543
          %s4546 = sor.u32 %s4544, 0
          %s4547 = sshll.u32 %s4506, 4
          %s4548 = int_to_ptr.vmem [resolvable:$true] %s4547
          %4554 = sst [smem:[#allocation16]] 2048
          %s4555 = scalar_lea.smem [#allocation16], 1
          %4556 = sst [smem:[%s4555]] 4096
          %s4557 = scalar_lea.smem [#allocation16], 2
          %4558 = sst [smem:[%s4557]] 16
          %s4559 = scalar_lea.smem [#allocation16], 3
          %4560 = sst [smem:[%s4559]] 128
          %s4561 = scalar_lea.smem [#allocation16], 4
          %4562 = sst [smem:[%s4561]] 128
          %s4563 = scalar_lea.smem [#allocation16], 5
          %4564 = sst [smem:[%s4563]] 8
          %4566 = dma.general %s4548, 6144, %s4536, %s4503, 131072, [#allocation16], %s4546, 0
        $region92: #{tpu_custom_call.1} parent=71 // pred_fallthru
          _
        // Predicated region
        $region93: #{tpu_custom_call.1} parent=71 // pred_check
          %p4567 = pneg %p386
        $region94: #{tpu_custom_call.1} parent=71 // pred_check_branch
          %4569 = sbr.rel (%p4567) target = $region96
        $region95: #{tpu_custom_call.1} parent=71 // pred_region
          %s4570 = smul.u32 16, %s38
          %s4572 = ssub.s32 2048, 2048
          %4573 = vsyncadd %s4508, %s4572
          %s4574 = smul.addr %s4570, 128
          %s4575 = scalar_lea.hbm %s15, %s4574
          %s4576 = sshll.u32 %s4511, 4
          %s4577 = int_to_ptr.vmem [resolvable:$true] %s4576
          %4582 = dma.vmem_to_hbm [thread:$0]  %s4577, 2048, %s4575, %s4508, 128, 128, 8
        $region96: #{tpu_custom_call.1} parent=71 // pred_fallthru
          _
      $region72: #{tpu_custom_call.1} parent=5 // pred_fallthru
        _
      %p4583 = scmp.le.s32.totalorder 2, %s33
      // Predicated region
      $region97: #{tpu_custom_call.1} parent=5 // pred_check
        %p4584 = pneg %p4583
      $region98: #{tpu_custom_call.1} parent=5 // pred_check_branch
        %4586 = sbr.rel (%p4584) target = $region100
      $region99: #{tpu_custom_call.1} parent=5 // pred_region
        %s4587 = ssub.s32 %s33, 2
        // Predicated region
        $region101: #{tpu_custom_call.1} parent=99 // pred_check
          %p4588 = pneg %p340
        $region102: #{tpu_custom_call.1} parent=99 // pred_check_branch
          %4590 = sbr.rel (%p4588) target = $region104
        $region103: #{tpu_custom_call.1} parent=99 // pred_region
          %s4591 = sand.u32 %s325, 1
          %s4592 = scalar_lea.sflag [#allocation5], %s4591
          %s4593 = sand.u32 %s325, 1
          %s4594 = smul.addr %s4593, 128
          %s4595 = scalar_lea.vmem [#allocation9], %s4594
          %4596 = dma.done %s4592, 2048
        $region104: #{tpu_custom_call.1} parent=99 // pred_fallthru
          _
        // Predicated region
        $region105: #{tpu_custom_call.1} parent=99 // pred_check
          %p4597 = pneg %p366
        $region106: #{tpu_custom_call.1} parent=99 // pred_check_branch
          %4599 = sbr.rel (%p4597) target = $region108
        $region107: #{tpu_custom_call.1} parent=99 // pred_region
          %s4600 = sand.u32 %s39, 1
          %s4601 = scalar_lea.sflag [#allocation11], %s4600
          %s4602 = sand.u32 %s351, 1
          %s4603 = smul.addr %s4602, 384
          %s4604 = scalar_lea.vmem [#allocation10], %s4603
          %4605 = dma.done %s4601, 6144
        $region108: #{tpu_custom_call.1} parent=99 // pred_fallthru
          _
        // Predicated region
        $region109: #{tpu_custom_call.1} parent=99 // pred_check
          %p4606 = pneg %p392
        $region110: #{tpu_custom_call.1} parent=99 // pred_check_branch
          %4608 = sbr.rel (%p4606) target = $region112
        $region111: #{tpu_custom_call.1} parent=99 // pred_region
          %s4609 = sand.u32 %s39, 1
          %s4610 = scalar_lea.sflag [#allocation11], %s4609
          %s4611 = sand.u32 %s377, 1
          %s4612 = smul.addr %s4611, 128
          %s4613 = scalar_lea.vmem [#allocation12], %s4612
          %4614 = dma.done %s4610, 2048
        $region112: #{tpu_custom_call.1} parent=99 // pred_fallthru
          _
      $region100: #{tpu_custom_call.1} parent=5 // pred_fallthru
        _
    $region6: #{tpu_custom_call.1} parent=1 // loop_footer
      %s37 = sadd.s32 1, %s33
    $region7: #{tpu_custom_call.1} parent=1 // loop_footer_branch
      %32 = sbr.rel target = $region3
    $region8: #{tpu_custom_call.1} parent=1 // loop_exit
      _
    %4615 = vsyncpa [#allocation4], 1
    %s4616 = scalar_lea.sflag [#allocation4], 1
    %4617 = vsyncpa %s4616, 1
    %4618 = vsyncpa [#allocation7], 1
    %4619 = vsyncpa [#allocation5], 1
    %s4620 = scalar_lea.sflag [#allocation5], 1
    %4621 = vsyncpa %s4620, 1
    %4622 = vsyncpa [#allocation11], 1
    %s4623 = scalar_lea.sflag [#allocation11], 1
    %4624 = vsyncpa %s4623, 1

</llo_original>
